<compile_context>
chip_gen: v5e
topology: v5e:2x2
jax: 0.10.0
libtpu: 0.0.40
codegen_flags: <defaults>
</compile_context>

<pallas_src>
import functools

import jax
import jax.numpy as jnp
from jax import lax
from jax.experimental import pallas as pl
from jax.experimental.pallas import tpu as pltpu


def _bottleneck_kernel(H, W, x_ref, w1_ref, b1_ref, w2_ref, b2_ref,
                       w3_ref, b3_ref, o_ref, ext_ref):
    HW = H * W
    Cmid = w1_ref.shape[1]

    # ---- conv1: 1x1 conv == channel matmul (BN scale pre-folded) + bias + ReLU
    out1 = jnp.dot(x_ref[0], w1_ref[...], preferred_element_type=jnp.float32)
    out1 = jnp.maximum(out1 + b1_ref[...], 0.0)                     # (HW, Cmid) f32

    # ---- conv2: 3x3, stride 1, pad 1.
    # Pack the three horizontal taps [x-1 | x | x+1] along the channel axis of a
    # bf16 VMEM scratch with W zero-halo rows above/below.  The three vertical
    # taps then become aligned row slices (offsets 0 / W / 2W) and the conv is
    # 3 matmuls with K = 3*Cmid instead of 9 matmuls with K = Cmid.
    col = lax.broadcasted_iota(jnp.int32, (HW, 1), 0) % W
    left = jnp.where(col >= 1, pltpu.roll(out1, 1, axis=0), 0.0)             # ox = -1
    right = jnp.where(col <= W - 2, pltpu.roll(out1, HW - 1, axis=0), 0.0)   # ox = +1 (shift -1 == HW-1)

    halo = jnp.zeros((W, 3 * Cmid), jnp.bfloat16)
    ext_ref[pl.ds(0, W), :] = halo               # top halo (re-zeroed each step: cheap, grid-split safe)
    ext_ref[pl.ds(W + HW, W), :] = halo          # bottom halo
    ext_ref[pl.ds(W, HW), pl.ds(0, Cmid)] = left.astype(jnp.bfloat16)
    ext_ref[pl.ds(W, HW), pl.ds(Cmid, Cmid)] = out1.astype(jnp.bfloat16)
    ext_ref[pl.ds(W, HW), pl.ds(2 * Cmid, Cmid)] = right.astype(jnp.bfloat16)

    acc = jnp.zeros((HW, Cmid), jnp.float32)
    for ky in range(3):                          # vertical taps: aligned row slices from VMEM
        tap = ext_ref[pl.ds(ky * W, HW), :]      # (HW, 3*Cmid) bf16, streamed straight to the MXU
        acc = acc + jnp.dot(tap, w2_ref[ky], preferred_element_type=jnp.float32)
    out2 = jnp.maximum(acc + b2_ref[...], 0.0)   # (HW, Cmid) f32

    # ---- conv3: 1x1 conv + bias + ReLU
    out3 = jnp.dot(out2.astype(jnp.bfloat16), w3_ref[...],
                   preferred_element_type=jnp.float32)
    out3 = jnp.maximum(out3 + b3_ref[...], 0.0)  # (HW, Cout) f32

    # ---- identity residual (downsample=None) + final ReLU.
    # Re-read the VMEM-resident input block here instead of keeping an f32 copy
    # of x live across the entire kernel.
    o_ref[0] = jnp.maximum(out3 + x_ref[0].astype(jnp.float32), 0.0).astype(o_ref.dtype)


def bottleneck_block(x_nchw, params):
    """x_nchw: (N, C, H, W) float32, matching the PyTorch module's NCHW input."""
    w1, s1, b1, w2_hwio, s2, b2, w3, s3, b3 = params
    N, Cin, H, W = x_nchw.shape
    Cmid = w1.shape[1]
    Cout = w3.shape[1]
    assert Cout == Cin, "identity residual path requires inplane == 4 * midplane"
    # Aligned vertical tap slices (offsets ky*W) rely on W being sublane-friendly.
    assert W % 8 == 0, "pad W to a multiple of 8 (14x14 / 7x7 stages need row padding)"
    HW = H * W

    # Fold the BN scale into the conv weights on the host (fp32), cast matmul
    # operands to bf16.  Only bias + ReLU stay in-kernel.
    w1f = (w1 * s1).astype(jnp.bfloat16)                                    # (Cin, Cmid)
    w2f = (w2_hwio * s2[0]).reshape(3, 3 * Cmid, Cmid).astype(jnp.bfloat16)  # (ky, kx*Cmid+cin, cout)
    w3f = (w3 * s3).astype(jnp.bfloat16)                                    # (Cmid, Cout)
    b1f = b1.astype(jnp.float32)
    b2f = b2.astype(jnp.float32)
    b3f = b3.astype(jnp.float32)

    # TODO(synk): when chaining bottleneck blocks, keep activations in (N, HW, C)
    # between pallas_calls and only transpose at model boundaries.
    x_flat = jnp.transpose(x_nchw, (0, 2, 3, 1)).reshape(N, HW, Cin).astype(jnp.bfloat16)

    def full(shape):
        return pl.BlockSpec(shape, lambda n, _s=shape: (0,) * len(_s))

    kernel = functools.partial(_bottleneck_kernel, H, W)
    out = pl.pallas_call(
        kernel,
        out_shape=jax.ShapeDtypeStruct((N, HW, Cout), jnp.bfloat16),
        grid=(N,),
        in_specs=[
            pl.BlockSpec((1, HW, Cin), lambda n: (n, 0, 0)),
            full((Cin, Cmid)), full((1, Cmid)),
            full((3, 3 * Cmid, Cmid)), full((1, Cmid)),
            full((Cmid, Cout)), full((1, Cout)),
        ],
        out_specs=pl.BlockSpec((1, HW, Cout), lambda n: (n, 0, 0)),
        scratch_shapes=[pltpu.VMEM((HW + 2 * W, 3 * Cmid), jnp.bfloat16)],
        compiler_params=pltpu.CompilerParams(dimension_semantics=("parallel",)),
    )(x_flat, w1f, b1f, w2f, b2f, w3f, b3f)

    # TODO(synk): add a parallel spatial (HW-tile) grid axis with 1-row halo so
    # full 56x56/112x112 maps fit v7x's 64 MiB VMEM and both v7x TensorCores are
    # used at small N; stride>1 / user-supplied downsample is also not covered
    # (this implements the stride=1, downsample=None configuration).
    out = jnp.transpose(out.reshape(N, H, W, Cout), (0, 3, 1, 2))
    return out.astype(x_nchw.dtype)


def init_params(key, inplane, midplane, dtype=jnp.float32):
    """Deterministic synthetic parameters (conv weights + inference-BN affine)."""
    outplane = midplane * 4
    ks = jax.random.split(key, 6)

    def bn(k, c):
        kg, kb, km, kv = jax.random.split(k, 4)
        gamma = 1.0 + 0.1 * jax.random.normal(kg, (c,), dtype)
        beta = 0.1 * jax.random.normal(kb, (c,), dtype)
        mean = 0.1 * jax.random.normal(km, (c,), dtype)
        var = jnp.abs(jax.random.normal(kv, (c,), dtype)) + 0.5
        scale = gamma / jnp.sqrt(var + 1e-5)
        bias = beta - mean * scale
        return scale.reshape(1, c), bias.reshape(1, c)

    w1 = jax.random.normal(ks[0], (inplane, midplane), dtype) / (inplane ** 0.5)
    s1, b1 = bn(ks[1], midplane)
    w2_hwio = jax.random.normal(ks[2], (3, 3, midplane, midplane), dtype) / ((9 * midplane) ** 0.5)
    s2, b2 = bn(ks[3], midplane)
    w3 = jax.random.normal(ks[4], (midplane, outplane), dtype) / (midplane ** 0.5)
    s3, b3 = bn(ks[5], outplane)
    return (w1, s1, b1, w2_hwio, s2, b2, w3, s3, b3)


def ref_forward(x_nchw, params):
    """Pure-JAX fp32 reference of the module's forward (inference-mode BN)."""
    w1, s1, b1, w2_hwio, s2, b2, w3, s3, b3 = params
    x = jnp.transpose(x_nchw, (0, 2, 3, 1))   # NHWC
    relu = lambda a: jnp.maximum(a, 0.0)
    o = relu(jnp.einsum('nhwc,cd->nhwd', x, w1) * s1[0] + b1[0])
    o = lax.conv_general_dilated(o, w2_hwio, (1, 1), 'SAME',
                                 dimension_numbers=('NHWC', 'HWIO', 'NHWC'))
    o = relu(o * s2[0] + b2[0])
    o = relu(jnp.einsum('nhwc,cd->nhwd', o, w3) * s3[0] + b3[0])
    o = relu(o + x)
    return jnp.transpose(o, (0, 3, 1, 2))     # back to NCHW


if __name__ == "__main__":
    key = jax.random.PRNGKey(0)
    kx, kp = jax.random.split(key)

    N, H, W = 2, 16, 16
    midplane = 64
    inplane = midplane * 4   # == outplane -> identity residual valid; Cout=256 lane-dense

    x = jax.random.normal(kx, (N, inplane, H, W), jnp.float32)   # NCHW like PyTorch
    params = init_params(kp, inplane, midplane)

    out = jax.block_until_ready(bottleneck_block(x, params))
    ref = ref_forward(x, params)

    err = float(jnp.max(jnp.abs(out.astype(jnp.float32) - ref)))
    scale = float(jnp.max(jnp.abs(ref)))
    assert out.shape == (N, inplane, H, W)
    # Kernel matmuls / residual / output are bf16 (f32 accumulation); compare
    # with a relative tolerance against the fp32 reference.
    assert err / max(scale, 1.0) < 5e-2, f"max abs err {err} (ref scale {scale})"
    print("KERNEL_OK")
</pallas_src>

<mosaic_0001>
module attributes {stable_mosaic.version = 11 : i64} {
  func.func @_bottleneck_kernel(%arg0: i32, %arg1: memref<1x256x256xbf16, #tpu.memory_space<vmem>>, %arg2: memref<256x64xbf16, #tpu.memory_space<vmem>>, %arg3: memref<1x64xf32, #tpu.memory_space<vmem>>, %arg4: memref<3x192x64xbf16, #tpu.memory_space<vmem>>, %arg5: memref<1x64xf32, #tpu.memory_space<vmem>>, %arg6: memref<64x256xbf16, #tpu.memory_space<vmem>>, %arg7: memref<1x256xf32, #tpu.memory_space<vmem>>, %arg8: memref<1x256x256xbf16, #tpu.memory_space<vmem>>, %arg9: memref<288x192xbf16, #tpu.memory_space<vmem>>) attributes {dimension_semantics = [#tpu.dimension_semantics<parallel>], iteration_bounds = array<i64: 2>, scalar_prefetch = 0 : i64, scratch_operands = 1 : i64, tpu.core_type = #tpu.core_type<tc>, window_params = [{transform_indices = @transform_0, window_bounds = array<i64: 1, 256, 256>}, {pipeline_mode = #tpu.pipeline_mode<synchronous>, transform_indices = @transform_1, window_bounds = array<i64: 256, 64>}, {pipeline_mode = #tpu.pipeline_mode<synchronous>, transform_indices = @transform_2, window_bounds = array<i64: 1, 64>}, {pipeline_mode = #tpu.pipeline_mode<synchronous>, transform_indices = @transform_3, window_bounds = array<i64: 3, 192, 64>}, {pipeline_mode = #tpu.pipeline_mode<synchronous>, transform_indices = @transform_4, window_bounds = array<i64: 1, 64>}, {pipeline_mode = #tpu.pipeline_mode<synchronous>, transform_indices = @transform_5, window_bounds = array<i64: 64, 256>}, {pipeline_mode = #tpu.pipeline_mode<synchronous>, transform_indices = @transform_6, window_bounds = array<i64: 1, 256>}, {transform_indices = @transform_7, window_bounds = array<i64: 1, 256, 256>}]} {
    %c0 = arith.constant 0 : index
    %c0_0 = arith.constant 0 : index
    %c0_1 = arith.constant 0 : index
    %0 = vector.load %arg1[%c0, %c0_0, %c0_1] : memref<1x256x256xbf16, #tpu.memory_space<vmem>>, vector<1x256x256xbf16>
    %1 = vector.shape_cast %0 : vector<1x256x256xbf16> to vector<256x256xbf16>
    %c0_2 = arith.constant 0 : index
    %c0_3 = arith.constant 0 : index
    %2 = vector.load %arg2[%c0_2, %c0_3] : memref<256x64xbf16, #tpu.memory_space<vmem>>, vector<256x64xbf16>
    %cst = arith.constant dense<0.000000e+00> : vector<256x64xf32>
    %3 = tpu.matmul %1, %2, %cst {dimension_numbers = #tpu.dot_dimension_numbers<[1], [0], [0], [1], [0, 0, 1, 1], [], []>} : vector<256x256xbf16>, vector<256x64xbf16>, vector<256x64xf32> -> vector<256x64xf32>
    %c0_4 = arith.constant 0 : index
    %c0_5 = arith.constant 0 : index
    %4 = vector.load %arg3[%c0_4, %c0_5] : memref<1x64xf32, #tpu.memory_space<vmem>>, vector<1x64xf32>
    %5 = vector.broadcast %4 : vector<1x64xf32> to vector<256x64xf32>
    %6 = arith.addf %3, %5 : vector<256x64xf32>
    %cst_6 = arith.constant 0.000000e+00 : f32
    %7 = vector.broadcast %cst_6 : f32 to vector<256x64xf32>
    %8 = arith.maximumf %6, %7 : vector<256x64xf32>
    %9 = tpu.iota {dimensions = array<i32: 0>} : vector<256x1xi32>
    %c16_i32 = arith.constant 16 : i32
    %c0_i32 = arith.constant 0 : i32
    %10 = arith.cmpi eq, %c16_i32, %c0_i32 : i32
    %c1_i32 = arith.constant 1 : i32
    %11 = arith.select %10, %c1_i32, %c16_i32 : i32
    %12 = vector.broadcast %11 : i32 to vector<256x1xi32>
    %13 = arith.remsi %9, %12 : vector<256x1xi32>
    %c0_i32_7 = arith.constant 0 : i32
    %14 = vector.broadcast %c0_i32_7 : i32 to vector<256x1xi32>
    %15 = arith.cmpi ne, %13, %14 : vector<256x1xi32>
    %c0_i32_8 = arith.constant 0 : i32
    %16 = vector.broadcast %c0_i32_8 : i32 to vector<256x1xi32>
    %17 = arith.cmpi slt, %13, %16 : vector<256x1xi32>
    %c0_i32_9 = arith.constant 0 : i32
    %18 = arith.cmpi slt, %11, %c0_i32_9 : i32
    %19 = vector.broadcast %18 : i1 to vector<256x1xi1>
    %20 = vector.broadcast %19 : vector<256x1xi1> to vector<256x1xi1>
    %21 = arith.xori %17, %20 : vector<256x1xi1>
    %22 = arith.andi %21, %15 : vector<256x1xi1>
    %23 = vector.broadcast %11 : i32 to vector<256x1xi32>
    %24 = arith.addi %13, %23 : vector<256x1xi32>
    %25 = arith.select %22, %24, %13 : vector<256x1xi1>, vector<256x1xi32>
    %c1_i32_10 = arith.constant 1 : i32
    %26 = vector.broadcast %c1_i32_10 : i32 to vector<256x1xi32>
    %27 = arith.cmpi sge, %25, %26 : vector<256x1xi32>
    %c1_i32_11 = arith.constant 1 : i32
    %28 = tpu.dynamic_rotate %8 by %c1_i32_11 dim 0 : vector<256x64xf32>, i32 -> vector<256x64xf32>
    %cst_12 = arith.constant 0.000000e+00 : f32
    %29 = vector.shape_cast %27 : vector<256x1xi1> to vector<256x1xi1>
    %30 = vector.broadcast %29 : vector<256x1xi1> to vector<256x64xi1>
    %31 = vector.broadcast %cst_12 : f32 to vector<256x64xf32>
    %32 = arith.select %30, %28, %31 : vector<256x64xi1>, vector<256x64xf32>
    %c14_i32 = arith.constant 14 : i32
    %33 = vector.broadcast %c14_i32 : i32 to vector<256x1xi32>
    %34 = arith.cmpi sle, %25, %33 : vector<256x1xi32>
    %c255_i32 = arith.constant 255 : i32
    %35 = tpu.dynamic_rotate %8 by %c255_i32 dim 0 : vector<256x64xf32>, i32 -> vector<256x64xf32>
    %cst_13 = arith.constant 0.000000e+00 : f32
    %36 = vector.shape_cast %34 : vector<256x1xi1> to vector<256x1xi1>
    %37 = vector.broadcast %36 : vector<256x1xi1> to vector<256x64xi1>
    %38 = vector.broadcast %cst_13 : f32 to vector<256x64xf32>
    %39 = arith.select %37, %35, %38 : vector<256x64xi1>, vector<256x64xf32>
    %cst_14 = arith.constant 0.000000e+00 : bf16
    %40 = vector.broadcast %cst_14 : bf16 to vector<16x192xbf16>
    %c0_15 = arith.constant 0 : index
    %c0_16 = arith.constant 0 : index
    %41 = vector.load %arg9[%c0_15, %c0_16] : memref<288x192xbf16, #tpu.memory_space<vmem>>, vector<16x192xbf16>
    tpu.vector_store %arg9[%c0_15, %c0_16], %40 {strides = array<i32>} : memref<288x192xbf16, #tpu.memory_space<vmem>>, vector<16x192xbf16>,
    %c272 = arith.constant 272 : index
    %c0_17 = arith.constant 0 : index
    %42 = vector.load %arg9[%c272, %c0_17] : memref<288x192xbf16, #tpu.memory_space<vmem>>, vector<16x192xbf16>
    tpu.vector_store %arg9[%c272, %c0_17], %40 {strides = array<i32>} : memref<288x192xbf16, #tpu.memory_space<vmem>>, vector<16x192xbf16>,
    %43 = arith.truncf %32 : vector<256x64xf32> to vector<256x64xbf16>
    %c16 = arith.constant 16 : index
    %c0_18 = arith.constant 0 : index
    %44 = vector.load %arg9[%c16, %c0_18] : memref<288x192xbf16, #tpu.memory_space<vmem>>, vector<256x64xbf16>
    tpu.vector_store %arg9[%c16, %c0_18], %43 {strides = array<i32>} : memref<288x192xbf16, #tpu.memory_space<vmem>>, vector<256x64xbf16>,
    %45 = arith.truncf %8 : vector<256x64xf32> to vector<256x64xbf16>
    %c16_19 = arith.constant 16 : index
    %c64 = arith.constant 64 : index
    %46 = vector.load %arg9[%c16_19, %c64] : memref<288x192xbf16, #tpu.memory_space<vmem>>, vector<256x64xbf16>
    tpu.vector_store %arg9[%c16_19, %c64], %45 {strides = array<i32>} : memref<288x192xbf16, #tpu.memory_space<vmem>>, vector<256x64xbf16>,
    %47 = arith.truncf %39 : vector<256x64xf32> to vector<256x64xbf16>
    %c16_20 = arith.constant 16 : index
    %c128 = arith.constant 128 : index
    %48 = vector.load %arg9[%c16_20, %c128] : memref<288x192xbf16, #tpu.memory_space<vmem>>, vector<256x64xbf16>
    tpu.vector_store %arg9[%c16_20, %c128], %47 {strides = array<i32>} : memref<288x192xbf16, #tpu.memory_space<vmem>>, vector<256x64xbf16>,
    %cst_21 = arith.constant 0.000000e+00 : f32
    %49 = vector.broadcast %cst_21 : f32 to vector<256x64xf32>
    %c0_22 = arith.constant 0 : index
    %c0_23 = arith.constant 0 : index
    %50 = vector.load %arg9[%c0_22, %c0_23] : memref<288x192xbf16, #tpu.memory_space<vmem>>, vector<256x192xbf16>
    %c0_24 = arith.constant 0 : index
    %c0_25 = arith.constant 0 : index
    %c0_26 = arith.constant 0 : index
    %51 = vector.load %arg4[%c0_24, %c0_25, %c0_26] : memref<3x192x64xbf16, #tpu.memory_space<vmem>>, vector<1x192x64xbf16>
    %52 = vector.shape_cast %51 : vector<1x192x64xbf16> to vector<192x64xbf16>
    %cst_27 = arith.constant dense<0.000000e+00> : vector<256x64xf32>
    %53 = tpu.matmul %50, %52, %cst_27 {dimension_numbers = #tpu.dot_dimension_numbers<[1], [0], [0], [1], [0, 0, 1, 1], [], []>} : vector<256x192xbf16>, vector<192x64xbf16>, vector<256x64xf32> -> vector<256x64xf32>
    %54 = arith.addf %49, %53 : vector<256x64xf32>
    %c16_28 = arith.constant 16 : index
    %c0_29 = arith.constant 0 : index
    %55 = vector.load %arg9[%c16_28, %c0_29] : memref<288x192xbf16, #tpu.memory_space<vmem>>, vector<256x192xbf16>
    %c1 = arith.constant 1 : index
    %c0_30 = arith.constant 0 : index
    %c0_31 = arith.constant 0 : index
    %56 = vector.load %arg4[%c1, %c0_30, %c0_31] : memref<3x192x64xbf16, #tpu.memory_space<vmem>>, vector<1x192x64xbf16>
    %57 = vector.shape_cast %56 : vector<1x192x64xbf16> to vector<192x64xbf16>
    %cst_32 = arith.constant dense<0.000000e+00> : vector<256x64xf32>
    %58 = tpu.matmul %55, %57, %cst_32 {dimension_numbers = #tpu.dot_dimension_numbers<[1], [0], [0], [1], [0, 0, 1, 1], [], []>} : vector<256x192xbf16>, vector<192x64xbf16>, vector<256x64xf32> -> vector<256x64xf32>
    %59 = arith.addf %54, %58 : vector<256x64xf32>
    %c32 = arith.constant 32 : index
    %c0_33 = arith.constant 0 : index
    %60 = vector.load %arg9[%c32, %c0_33] : memref<288x192xbf16, #tpu.memory_space<vmem>>, vector<256x192xbf16>
    %c2 = arith.constant 2 : index
    %c0_34 = arith.constant 0 : index
    %c0_35 = arith.constant 0 : index
    %61 = vector.load %arg4[%c2, %c0_34, %c0_35] : memref<3x192x64xbf16, #tpu.memory_space<vmem>>, vector<1x192x64xbf16>
    %62 = vector.shape_cast %61 : vector<1x192x64xbf16> to vector<192x64xbf16>
    %cst_36 = arith.constant dense<0.000000e+00> : vector<256x64xf32>
    %63 = tpu.matmul %60, %62, %cst_36 {dimension_numbers = #tpu.dot_dimension_numbers<[1], [0], [0], [1], [0, 0, 1, 1], [], []>} : vector<256x192xbf16>, vector<192x64xbf16>, vector<256x64xf32> -> vector<256x64xf32>
    %64 = arith.addf %59, %63 : vector<256x64xf32>
    %c0_37 = arith.constant 0 : index
    %c0_38 = arith.constant 0 : index
    %65 = vector.load %arg5[%c0_37, %c0_38] : memref<1x64xf32, #tpu.memory_space<vmem>>, vector<1x64xf32>
    %66 = vector.broadcast %65 : vector<1x64xf32> to vector<256x64xf32>
    %67 = arith.addf %64, %66 : vector<256x64xf32>
    %cst_39 = arith.constant 0.000000e+00 : f32
    %68 = vector.broadcast %cst_39 : f32 to vector<256x64xf32>
    %69 = arith.maximumf %67, %68 : vector<256x64xf32>
    %70 = arith.truncf %69 : vector<256x64xf32> to vector<256x64xbf16>
    %c0_40 = arith.constant 0 : index
    %c0_41 = arith.constant 0 : index
    %71 = vector.load %arg6[%c0_40, %c0_41] : memref<64x256xbf16, #tpu.memory_space<vmem>>, vector<64x256xbf16>
    %cst_42 = arith.constant dense<0.000000e+00> : vector<256x256xf32>
    %72 = tpu.matmul %70, %71, %cst_42 {dimension_numbers = #tpu.dot_dimension_numbers<[1], [0], [0], [1], [0, 0, 1, 1], [], []>} : vector<256x64xbf16>, vector<64x256xbf16>, vector<256x256xf32> -> vector<256x256xf32>
    %c0_43 = arith.constant 0 : index
    %c0_44 = arith.constant 0 : index
    %73 = vector.load %arg7[%c0_43, %c0_44] : memref<1x256xf32, #tpu.memory_space<vmem>>, vector<1x256xf32>
    %74 = vector.broadcast %73 : vector<1x256xf32> to vector<256x256xf32>
    %75 = arith.addf %72, %74 : vector<256x256xf32>
    %cst_45 = arith.constant 0.000000e+00 : f32
    %76 = vector.broadcast %cst_45 : f32 to vector<256x256xf32>
    %77 = arith.maximumf %75, %76 : vector<256x256xf32>
    %c0_46 = arith.constant 0 : index
    %c0_47 = arith.constant 0 : index
    %c0_48 = arith.constant 0 : index
    %78 = vector.load %arg1[%c0_46, %c0_47, %c0_48] : memref<1x256x256xbf16, #tpu.memory_space<vmem>>, vector<1x256x256xbf16>
    %79 = vector.shape_cast %78 : vector<1x256x256xbf16> to vector<256x256xbf16>
    %80 = arith.extf %79 : vector<256x256xbf16> to vector<256x256xf32>
    %81 = arith.addf %77, %80 : vector<256x256xf32>
    %cst_49 = arith.constant 0.000000e+00 : f32
    %82 = vector.broadcast %cst_49 : f32 to vector<256x256xf32>
    %83 = arith.maximumf %81, %82 : vector<256x256xf32>
    %84 = arith.truncf %83 : vector<256x256xf32> to vector<256x256xbf16>
    %c0_50 = arith.constant 0 : index
    %c0_51 = arith.constant 0 : index
    %c0_52 = arith.constant 0 : index
    %85 = vector.load %arg8[%c0_50, %c0_51, %c0_52] : memref<1x256x256xbf16, #tpu.memory_space<vmem>>, vector<1x256x256xbf16>
    %86 = vector.shape_cast %85 : vector<1x256x256xbf16> to vector<256x256xbf16>
    %87 = vector.shape_cast %84 : vector<256x256xbf16> to vector<1x256x256xbf16>
    tpu.vector_store %arg8[%c0_50, %c0_51, %c0_52], %87 {strides = array<i32>} : memref<1x256x256xbf16, #tpu.memory_space<vmem>>, vector<1x256x256xbf16>,
    return
  }
  func.func @transform_0(%arg0: i32) -> (i32, i32, i32) {
    %c0_i32 = arith.constant 0 : i32
    %c0_i32_0 = arith.constant 0 : i32
    %c0_i32_1 = arith.constant 0 : i32
    return %arg0, %c0_i32, %c0_i32_0 : i32, i32, i32
  }
  func.func @transform_1(%arg0: i32) -> (i32, i32) {
    %c0_i32 = arith.constant 0 : i32
    %c0_i32_0 = arith.constant 0 : i32
    %c0_i32_1 = arith.constant 0 : i32
    return %c0_i32, %c0_i32_0 : i32, i32
  }
  func.func @transform_2(%arg0: i32) -> (i32, i32) {
    %c0_i32 = arith.constant 0 : i32
    %c0_i32_0 = arith.constant 0 : i32
    %c0_i32_1 = arith.constant 0 : i32
    return %c0_i32, %c0_i32_0 : i32, i32
  }
  func.func @transform_3(%arg0: i32) -> (i32, i32, i32) {
    %c0_i32 = arith.constant 0 : i32
    %c0_i32_0 = arith.constant 0 : i32
    %c0_i32_1 = arith.constant 0 : i32
    %c0_i32_2 = arith.constant 0 : i32
    return %c0_i32, %c0_i32_0, %c0_i32_1 : i32, i32, i32
  }
  func.func @transform_4(%arg0: i32) -> (i32, i32) {
    %c0_i32 = arith.constant 0 : i32
    %c0_i32_0 = arith.constant 0 : i32
    %c0_i32_1 = arith.constant 0 : i32
    return %c0_i32, %c0_i32_0 : i32, i32
  }
  func.func @transform_5(%arg0: i32) -> (i32, i32) {
    %c0_i32 = arith.constant 0 : i32
    %c0_i32_0 = arith.constant 0 : i32
    %c0_i32_1 = arith.constant 0 : i32
    return %c0_i32, %c0_i32_0 : i32, i32
  }
  func.func @transform_6(%arg0: i32) -> (i32, i32) {
    %c0_i32 = arith.constant 0 : i32
    %c0_i32_0 = arith.constant 0 : i32
    %c0_i32_1 = arith.constant 0 : i32
    return %c0_i32, %c0_i32_0 : i32, i32
  }
  func.func @transform_7(%arg0: i32) -> (i32, i32, i32) {
    %c0_i32 = arith.constant 0 : i32
    %c0_i32_0 = arith.constant 0 : i32
    %c0_i32_1 = arith.constant 0 : i32
    return %arg0, %c0_i32, %c0_i32_0 : i32, i32, i32
  }
}

</mosaic_0001>

<llo_original>
// kernel: tpu_custom_call.1
$region0: #{tpu_custom_call.1}
  #allocation0 [shape = 'u32[]', space=smem, size = 0x4, offset = 0x4, fixed_abs, tag = 'smem constant byte address 0x4 - core index']
  #allocation1 [shape = 'u32[72,128]{1,0:T(1,128)}', space=vmem, size = 0x9000, scoped, tag = 'internal scratch']
  #allocation2 [shape = 'bf16[288,192]{1,0:T(8,128)(2,1)}', space=vmem, size = 0x24000, scoped, tag = 'scratch operand']
  %s0 = inlined_call_operand.hbm [shape: bf16[2,256,256], index: 0, kind: input, shape index: {}]
  %s1 = inlined_call_operand.vmem [shape: bf16[256,64], index: 1, kind: input, shape index: {}]
  %s2 = inlined_call_operand.vmem [shape: f32[1,64], index: 2, kind: input, shape index: {}]
  %s3 = inlined_call_operand.vmem [shape: bf16[3,192,64], index: 3, kind: input, shape index: {}]
  %s4 = inlined_call_operand.vmem [shape: f32[1,64], index: 4, kind: input, shape index: {}]
  %s5 = inlined_call_operand.vmem [shape: bf16[64,256], index: 5, kind: input, shape index: {}]
  %s6 = inlined_call_operand.vmem [shape: f32[1,256], index: 6, kind: input, shape index: {}]
  %s7 = inlined_call_operand.hbm [shape: bf16[2,256,256], index: 7, kind: output, shape index: {}]
  %s8 = sld [smem:[#allocation0]]
  $region65: #{tpu_custom_call.1} parent=0
    _
  %s10 = ssub.s32 1, %s8
  %s11 = scalar_select 0, %s10, %s8
  $region1: #{tpu_custom_call.1} parent=0
    #allocation3 [shape = 'u8[262144]{0}', space=vmem, size = 0x40000, scoped, tag = 'input window, operand 0']
    #allocation4 [shape = 's32[2]{0}', space=sflag, size = 0x8, scoped, tag = 'scoped memory for tpu_custom_call.1']
    #allocation5 [shape = 's32[2]{0}', space=sflag, size = 0x8, scoped, tag = 'scoped memory for tpu_custom_call.1']
    #allocation6 [shape = 'u8[262144]{0}', space=vmem, size = 0x40000, scoped, tag = 'output window, operand 0']
    %12 = vsyncpa [#allocation4], 0
    %s13 = scalar_lea.sflag [#allocation4], 1
    %14 = vsyncpa %s13, 0
    %15 = vsyncpa [#allocation5], 0
    %s16 = scalar_lea.sflag [#allocation5], 1
    %17 = vsyncpa %s16, 0
    loop: start=0, step=1, limit=4
    $region2: #{tpu_custom_call.1} parent=1 // loop_pre_header
      _
    $region3: #{tpu_custom_call.1} parent=1 // loop_header
      %s19 = sphi 0, %s23
      %p20 = scmp.ge.s32.totalorder %s19, 4
      %s29 = sphi 0, %s31
      %s32 = sphi 0, %s29
      %s33 = sphi 0, %s32
      %s49 = sphi 0, %s33
      %s53 = sphi 0, %s53
      %s55 = sphi 0, %s53
      %s56 = sphi 0, %s55
      %s70 = sphi 0, %s56
      %s74 = sphi 0, %s74
      %s76 = sphi 0, %s74
      %s77 = sphi 0, %s76
      %s91 = sphi 0, %s77
      %s95 = sphi 0, %s95
      %s97 = sphi 0, %s95
      %s98 = sphi 0, %s97
      %s112 = sphi 0, %s98
      %s116 = sphi 0, %s116
      %s118 = sphi 0, %s116
      %s119 = sphi 0, %s118
      %s133 = sphi 0, %s119
      %s137 = sphi 0, %s137
      %s139 = sphi 0, %s137
      %s140 = sphi 0, %s139
      %s154 = sphi 0, %s140
      %s158 = sphi 0, %s158
      %s160 = sphi 0, %s158
      %s161 = sphi 0, %s160
      %s175 = sphi 0, %s161
      %s181 = sphi 0, %s183
      %s184 = sphi 0, %s181
      %s185 = sphi 0, %s184
      %s201 = sphi 0, %s185
    $region4: #{tpu_custom_call.1} parent=1 // loop_header_branch
      %22 = sbr.rel (%p20) target = $region8
    $region5: #{tpu_custom_call.1} parent=1 // loop_body
      %s24 = ssub.s32 %s19, 1
      %s25 = ssub.s32 %s19, 2
      %s26 = sadd.s32 %s19, 1
      %s27 = ssub.s32 %s19, %s26
      %p28 = scmp.eq.s32.totalorder %s27, 0
      %s30 = sadd.s32 %s29, 1
      %s31 = scalar_select %p28, %s29, %s30
      %p34 = pneg %p28
      %p35 = scmp.eq.s32.totalorder %s19, 1
      %p36 = por %p34, %p35
      %p37 = scmp.ne.s32.totalorder %s29, %s32
      %p38 = scmp.eq.s32.totalorder %s19, 0
      %p39 = por %p37, %p38
      %p40 = scmp.ne.s32.totalorder %s29, %s32
      %p41 = scmp.eq.s32.totalorder %s24, 1
      %p42 = por %p40, %p41
      %p43 = scmp.ne.s32.totalorder %s32, %s33
      %p44 = scmp.eq.s32.totalorder %s24, 0
      %p45 = por %p43, %p44
      %p46 = scmp.ne.s32.totalorder %s32, %s33
      %p47 = scmp.eq.s32.totalorder %s25, 1
      %p48 = por %p46, %p47
      %p50 = scmp.ne.s32.totalorder %s33, %s49
      %p51 = scmp.eq.s32.totalorder %s25, 0
      %p52 = por %p50, %p51
      %s54 = sadd.s32 %s53, 1
      %p57 = scmp.eq.s32.totalorder %s19, 1
      %p58 = scmp.ne.s32.totalorder %s53, %s55
      %p59 = scmp.eq.s32.totalorder %s19, 0
      %p60 = por %p58, %p59
      %p61 = scmp.ne.s32.totalorder %s53, %s55
      %p62 = scmp.eq.s32.totalorder %s24, 1
      %p63 = por %p61, %p62
      %p64 = scmp.ne.s32.totalorder %s55, %s56
      %p65 = scmp.eq.s32.totalorder %s24, 0
      %p66 = por %p64, %p65
      %p67 = scmp.ne.s32.totalorder %s55, %s56
      %p68 = scmp.eq.s32.totalorder %s25, 1
      %p69 = por %p67, %p68
      %p71 = scmp.ne.s32.totalorder %s56, %s70
      %p72 = scmp.eq.s32.totalorder %s25, 0
      %p73 = por %p71, %p72
      %s75 = sadd.s32 %s74, 1
      %p78 = scmp.eq.s32.totalorder %s19, 1
      %p79 = scmp.ne.s32.totalorder %s74, %s76
      %p80 = scmp.eq.s32.totalorder %s19, 0
      %p81 = por %p79, %p80
      %p82 = scmp.ne.s32.totalorder %s74, %s76
      %p83 = scmp.eq.s32.totalorder %s24, 1
      %p84 = por %p82, %p83
      %p85 = scmp.ne.s32.totalorder %s76, %s77
      %p86 = scmp.eq.s32.totalorder %s24, 0
      %p87 = por %p85, %p86
      %p88 = scmp.ne.s32.totalorder %s76, %s77
      %p89 = scmp.eq.s32.totalorder %s25, 1
      %p90 = por %p88, %p89
      %p92 = scmp.ne.s32.totalorder %s77, %s91
      %p93 = scmp.eq.s32.totalorder %s25, 0
      %p94 = por %p92, %p93
      %s96 = sadd.s32 %s95, 1
      %p99 = scmp.eq.s32.totalorder %s19, 1
      %p100 = scmp.ne.s32.totalorder %s95, %s97
      %p101 = scmp.eq.s32.totalorder %s19, 0
      %p102 = por %p100, %p101
      %p103 = scmp.ne.s32.totalorder %s95, %s97
      %p104 = scmp.eq.s32.totalorder %s24, 1
      %p105 = por %p103, %p104
      %p106 = scmp.ne.s32.totalorder %s97, %s98
      %p107 = scmp.eq.s32.totalorder %s24, 0
      %p108 = por %p106, %p107
      %p109 = scmp.ne.s32.totalorder %s97, %s98
      %p110 = scmp.eq.s32.totalorder %s25, 1
      %p111 = por %p109, %p110
      %p113 = scmp.ne.s32.totalorder %s98, %s112
      %p114 = scmp.eq.s32.totalorder %s25, 0
      %p115 = por %p113, %p114
      %s117 = sadd.s32 %s116, 1
      %p120 = scmp.eq.s32.totalorder %s19, 1
      %p121 = scmp.ne.s32.totalorder %s116, %s118
      %p122 = scmp.eq.s32.totalorder %s19, 0
      %p123 = por %p121, %p122
      %p124 = scmp.ne.s32.totalorder %s116, %s118
      %p125 = scmp.eq.s32.totalorder %s24, 1
      %p126 = por %p124, %p125
      %p127 = scmp.ne.s32.totalorder %s118, %s119
      %p128 = scmp.eq.s32.totalorder %s24, 0
      %p129 = por %p127, %p128
      %p130 = scmp.ne.s32.totalorder %s118, %s119
      %p131 = scmp.eq.s32.totalorder %s25, 1
      %p132 = por %p130, %p131
      %p134 = scmp.ne.s32.totalorder %s119, %s133
      %p135 = scmp.eq.s32.totalorder %s25, 0
      %p136 = por %p134, %p135
      %s138 = sadd.s32 %s137, 1
      %p141 = scmp.eq.s32.totalorder %s19, 1
      %p142 = scmp.ne.s32.totalorder %s137, %s139
      %p143 = scmp.eq.s32.totalorder %s19, 0
      %p144 = por %p142, %p143
      %p145 = scmp.ne.s32.totalorder %s137, %s139
      %p146 = scmp.eq.s32.totalorder %s24, 1
      %p147 = por %p145, %p146
      %p148 = scmp.ne.s32.totalorder %s139, %s140
      %p149 = scmp.eq.s32.totalorder %s24, 0
      %p150 = por %p148, %p149
      %p151 = scmp.ne.s32.totalorder %s139, %s140
      %p152 = scmp.eq.s32.totalorder %s25, 1
      %p153 = por %p151, %p152
      %p155 = scmp.ne.s32.totalorder %s140, %s154
      %p156 = scmp.eq.s32.totalorder %s25, 0
      %p157 = por %p155, %p156
      %s159 = sadd.s32 %s158, 1
      %p162 = scmp.eq.s32.totalorder %s19, 1
      %p163 = scmp.ne.s32.totalorder %s158, %s160
      %p164 = scmp.eq.s32.totalorder %s19, 0
      %p165 = por %p163, %p164
      %p166 = scmp.ne.s32.totalorder %s158, %s160
      %p167 = scmp.eq.s32.totalorder %s24, 1
      %p168 = por %p166, %p167
      %p169 = scmp.ne.s32.totalorder %s160, %s161
      %p170 = scmp.eq.s32.totalorder %s24, 0
      %p171 = por %p169, %p170
      %p172 = scmp.ne.s32.totalorder %s160, %s161
      %p173 = scmp.eq.s32.totalorder %s25, 1
      %p174 = por %p172, %p173
      %p176 = scmp.ne.s32.totalorder %s161, %s175
      %p177 = scmp.eq.s32.totalorder %s25, 0
      %p178 = por %p176, %p177
      %s179 = ssub.s32 %s19, %s26
      %p180 = scmp.eq.s32.totalorder %s179, 0
      %s182 = sadd.s32 %s181, 1
      %s183 = scalar_select %p180, %s181, %s182
      %p186 = pneg %p180
      %p187 = scmp.eq.s32.totalorder %s19, 1
      %p188 = por %p186, %p187
      %p189 = scmp.ne.s32.totalorder %s181, %s184
      %p190 = scmp.eq.s32.totalorder %s19, 0
      %p191 = por %p189, %p190
      %p192 = scmp.ne.s32.totalorder %s181, %s184
      %p193 = scmp.eq.s32.totalorder %s24, 1
      %p194 = por %p192, %p193
      %p195 = scmp.ne.s32.totalorder %s184, %s185
      %p196 = scmp.eq.s32.totalorder %s24, 0
      %p197 = por %p195, %p196
      %p198 = scmp.ne.s32.totalorder %s184, %s185
      %p199 = scmp.eq.s32.totalorder %s25, 1
      %p200 = por %p198, %p199
      %p202 = scmp.ne.s32.totalorder %s185, %s201
      %p203 = scmp.eq.s32.totalorder %s25, 0
      %p204 = por %p202, %p203
      %p205 = scmp.le.s32.totalorder 1, %s19
      %p206 = scmp.lt.s32.totalorder %s19, 3
      %p207 = pnand %p205, %p206
      %p208 = pneg %p207
      // Predicated region
      $region9: #{tpu_custom_call.1} parent=5 // pred_check
        _
      $region10: #{tpu_custom_call.1} parent=5 // pred_check_branch
        %210 = sbr.rel (%p207) target = $region12
      $region11: #{tpu_custom_call.1} parent=5 // pred_region
        %s211 = ssub.s32 %s19, 1
        // Predicated region
        $region13: #{tpu_custom_call.1} parent=11 // pred_check
          %p212 = pneg %p66
        $region14: #{tpu_custom_call.1} parent=11 // pred_check_branch
          %214 = sbr.rel (%p212) target = $region16
        $region15: #{tpu_custom_call.1} parent=11 // pred_region
          _
        $region16: #{tpu_custom_call.1} parent=11 // pred_fallthru
          _
        // Predicated region
        $region17: #{tpu_custom_call.1} parent=11 // pred_check
          %p215 = pneg %p87
        $region18: #{tpu_custom_call.1} parent=11 // pred_check_branch
          %217 = sbr.rel (%p215) target = $region20
        $region19: #{tpu_custom_call.1} parent=11 // pred_region
          _
        $region20: #{tpu_custom_call.1} parent=11 // pred_fallthru
          _
        // Predicated region
        $region21: #{tpu_custom_call.1} parent=11 // pred_check
          %p218 = pneg %p108
        $region22: #{tpu_custom_call.1} parent=11 // pred_check_branch
          %220 = sbr.rel (%p218) target = $region24
        $region23: #{tpu_custom_call.1} parent=11 // pred_region
          _
        $region24: #{tpu_custom_call.1} parent=11 // pred_fallthru
          _
        // Predicated region
        $region25: #{tpu_custom_call.1} parent=11 // pred_check
          %p221 = pneg %p129
        $region26: #{tpu_custom_call.1} parent=11 // pred_check_branch
          %223 = sbr.rel (%p221) target = $region28
        $region27: #{tpu_custom_call.1} parent=11 // pred_region
          _
        $region28: #{tpu_custom_call.1} parent=11 // pred_fallthru
          _
        // Predicated region
        $region29: #{tpu_custom_call.1} parent=11 // pred_check
          %p224 = pneg %p150
        $region30: #{tpu_custom_call.1} parent=11 // pred_check_branch
          %226 = sbr.rel (%p224) target = $region32
        $region31: #{tpu_custom_call.1} parent=11 // pred_region
          _
        $region32: #{tpu_custom_call.1} parent=11 // pred_fallthru
          _
        // Predicated region
        $region33: #{tpu_custom_call.1} parent=11 // pred_check
          %p227 = pneg %p171
        $region34: #{tpu_custom_call.1} parent=11 // pred_check_branch
          %229 = sbr.rel (%p227) target = $region36
        $region35: #{tpu_custom_call.1} parent=11 // pred_region
          _
        $region36: #{tpu_custom_call.1} parent=11 // pred_fallthru
          _
      $region12: #{tpu_custom_call.1} parent=5 // pred_fallthru
        _
      %p230 = scmp.lt.s32.totalorder %s19, 2
      // Predicated region
      $region37: #{tpu_custom_call.1} parent=5 // pred_check
        %p231 = pneg %p230
      $region38: #{tpu_custom_call.1} parent=5 // pred_check_branch
        %233 = sbr.rel (%p231) target = $region40
      $region39: #{tpu_custom_call.1} parent=5 // pred_region
        // Predicated region
        $region41: #{tpu_custom_call.1} parent=39 // pred_check
          %p234 = pneg %p39
        $region42: #{tpu_custom_call.1} parent=39 // pred_check_branch
          %236 = sbr.rel (%p234) target = $region44
        $region43: #{tpu_custom_call.1} parent=39 // pred_region
          %s237 = sand.u32 %s29, 1
          %s238 = scalar_lea.sflag [#allocation4], %s237
          %s239 = sand.u32 %s29, 1
          %s240 = smul.addr %s239, 256
          %s241 = scalar_lea.vmem [#allocation3], %s240
          %243 = vsyncadd %s238, 0
          %s244 = smul.addr %s19, 64
          %s245 = smul.addr %s244, 4
          %s246 = scalar_lea.hbm %s0, %s245
          %s247 = sshll.u32 %s246, 4
          %s248 = int_to_ptr.hbm [resolvable:$true] %s247
          %s249 = sshll.u32 %s241, 4
          %s250 = int_to_ptr.vmem [resolvable:$true] %s249
          %255 = dma.hbm_to_vmem [thread:$0]  %s248, 4096, %s250, %s238, 128, 128, 8
        $region44: #{tpu_custom_call.1} parent=39 // pred_fallthru
          _
      $region40: #{tpu_custom_call.1} parent=5 // pred_fallthru
        _
      %p256 = scmp.le.s32.totalorder 1, %s19
      %p257 = scmp.lt.s32.totalorder %s19, 3
      %p258 = pnand %p256, %p257
      %p259 = pneg %p258
      // Predicated region
      $region45: #{tpu_custom_call.1} parent=5 // pred_check
        _
      $region46: #{tpu_custom_call.1} parent=5 // pred_check_branch
        %261 = sbr.rel (%p258) target = $region48
      $region47: #{tpu_custom_call.1} parent=5 // pred_region
        %s262 = ssub.s32 %s19, 1
        %s263 = sand.u32 %s32, 1
        %s264 = scalar_lea.sflag [#allocation4], %s263
        %s265 = sand.u32 %s32, 1
        %s266 = smul.addr %s265, 256
        %s267 = scalar_lea.vmem [#allocation3], %s266
        // Predicated region
        $region49: #{tpu_custom_call.1} parent=47 // pred_check
          %p268 = pneg %p45
        $region50: #{tpu_custom_call.1} parent=47 // pred_check_branch
          %270 = sbr.rel (%p268) target = $region52
        $region51: #{tpu_custom_call.1} parent=47 // pred_region
          %272 = dma.done %s264, 4096
        $region52: #{tpu_custom_call.1} parent=47 // pred_fallthru
          _
        %s273 = sand.u32 %s32, 1
        %s274 = scalar_lea.sflag [#allocation4], %s273
        %s275 = sand.u32 %s32, 1
        %s276 = smul.addr %s275, 256
        %s277 = scalar_lea.vmem [#allocation3], %s276
        %p278 = pneg %p45
        %p279 = pneg %p42
        %p280 = pneg %p66
        %p281 = pneg %p63
        %p282 = pneg %p87
        %p283 = pneg %p84
        %p284 = pneg %p108
        %p285 = pneg %p105
        %p286 = pneg %p129
        %p287 = pneg %p126
        %p288 = pneg %p150
        %p289 = pneg %p147
        %p290 = pneg %p171
        %p291 = pneg %p168
        %p292 = pneg %p197
        %p293 = pneg %p194
        %s294 = sand.u32 %s184, 1
        %s295 = scalar_lea.sflag [#allocation5], %s294
        %s296 = sand.u32 %s184, 1
        %s297 = smul.addr %s296, 256
        %s298 = scalar_lea.vmem [#allocation6], %s297
        %v300 = vld [vmem:[%s267] sm:$0xff]
        %v301 = vld [vmem:[%s267 + $0x8] sm:$0xff]
        %v302 = vld [vmem:[%s267 + $0x10] sm:$0xff]
        %v303 = vld [vmem:[%s267 + $0x18] sm:$0xff]
        %v304 = vld [vmem:[%s267 + $0x20] sm:$0xff]
        %v305 = vld [vmem:[%s267 + $0x28] sm:$0xff]
        %v306 = vld [vmem:[%s267 + $0x30] sm:$0xff]
        %v307 = vld [vmem:[%s267 + $0x38] sm:$0xff]
        %v308 = vld [vmem:[%s267 + $0x40] sm:$0xff]
        %v309 = vld [vmem:[%s267 + $0x48] sm:$0xff]
        %v310 = vld [vmem:[%s267 + $0x50] sm:$0xff]
        %v311 = vld [vmem:[%s267 + $0x58] sm:$0xff]
        %v312 = vld [vmem:[%s267 + $0x60] sm:$0xff]
        %v313 = vld [vmem:[%s267 + $0x68] sm:$0xff]
        %v314 = vld [vmem:[%s267 + $0x70] sm:$0xff]
        %v315 = vld [vmem:[%s267 + $0x78] sm:$0xff]
        %v316 = vld [vmem:[%s267 + $0x80] sm:$0xff]
        %v317 = vld [vmem:[%s267 + $0x88] sm:$0xff]
        %v318 = vld [vmem:[%s267 + $0x90] sm:$0xff]
        %v319 = vld [vmem:[%s267 + $0x98] sm:$0xff]
        %v320 = vld [vmem:[%s267 + $0xa0] sm:$0xff]
        %v321 = vld [vmem:[%s267 + $0xa8] sm:$0xff]
        %v322 = vld [vmem:[%s267 + $0xb0] sm:$0xff]
        %v323 = vld [vmem:[%s267 + $0xb8] sm:$0xff]
        %v324 = vld [vmem:[%s267 + $0xc0] sm:$0xff]
        %v325 = vld [vmem:[%s267 + $0xc8] sm:$0xff]
        %v326 = vld [vmem:[%s267 + $0xd0] sm:$0xff]
        %v327 = vld [vmem:[%s267 + $0xd8] sm:$0xff]
        %v328 = vld [vmem:[%s267 + $0xe0] sm:$0xff]
        %v329 = vld [vmem:[%s267 + $0xe8] sm:$0xff]
        %v330 = vld [vmem:[%s267 + $0xf0] sm:$0xff]
        %v331 = vld [vmem:[%s267 + $0xf8] sm:$0xff]
        %v332 = vld [vmem:[%s1] sm:$0xf]
        %v333 = vld [vmem:[%s1 + $0x4] sm:$0xf]
        %v334 = vld [vmem:[%s1 + $0x8] sm:$0xf]
        %v335 = vld [vmem:[%s1 + $0xc] sm:$0xf]
        %v336 = vld [vmem:[%s1 + $0x10] sm:$0xf]
        %v337 = vld [vmem:[%s1 + $0x14] sm:$0xf]
        %v338 = vld [vmem:[%s1 + $0x18] sm:$0xf]
        %v339 = vld [vmem:[%s1 + $0x1c] sm:$0xf]
        %v340 = vld [vmem:[%s1 + $0x20] sm:$0xf]
        %v341 = vld [vmem:[%s1 + $0x24] sm:$0xf]
        %v342 = vld [vmem:[%s1 + $0x28] sm:$0xf]
        %v343 = vld [vmem:[%s1 + $0x2c] sm:$0xf]
        %v344 = vld [vmem:[%s1 + $0x30] sm:$0xf]
        %v345 = vld [vmem:[%s1 + $0x34] sm:$0xf]
        %v346 = vld [vmem:[%s1 + $0x38] sm:$0xf]
        %v347 = vld [vmem:[%s1 + $0x3c] sm:$0xf]
        %v348 = vld [vmem:[%s1 + $0x40] sm:$0xf]
        %v349 = vld [vmem:[%s1 + $0x44] sm:$0xf]
        %v350 = vld [vmem:[%s1 + $0x48] sm:$0xf]
        %v351 = vld [vmem:[%s1 + $0x4c] sm:$0xf]
        %v352 = vld [vmem:[%s1 + $0x50] sm:$0xf]
        %v353 = vld [vmem:[%s1 + $0x54] sm:$0xf]
        %v354 = vld [vmem:[%s1 + $0x58] sm:$0xf]
        %v355 = vld [vmem:[%s1 + $0x5c] sm:$0xf]
        %v356 = vld [vmem:[%s1 + $0x60] sm:$0xf]
        %v357 = vld [vmem:[%s1 + $0x64] sm:$0xf]
        %v358 = vld [vmem:[%s1 + $0x68] sm:$0xf]
        %v359 = vld [vmem:[%s1 + $0x6c] sm:$0xf]
        %v360 = vld [vmem:[%s1 + $0x70] sm:$0xf]
        %v361 = vld [vmem:[%s1 + $0x74] sm:$0xf]
        %v362 = vld [vmem:[%s1 + $0x78] sm:$0xf]
        %v363 = vld [vmem:[%s1 + $0x7c] sm:$0xf]
        %v364 = vld [vmem:[%s2] sm:$0x1]
        %v366 = vperm.slane %v364, 0
        %v400 = vunpack.c.l.b16 %v300
        %v401 = vunpack.c.h.b16 %v300
        %v402 = vunpack.c.l.b16 %v301
        %v403 = vunpack.c.h.b16 %v301
        %v404 = vunpack.c.l.b16 %v302
        %v405 = vunpack.c.h.b16 %v302
        %v406 = vunpack.c.l.b16 %v303
        %v407 = vunpack.c.h.b16 %v303
        %v408 = vunpack.c.l.b16 %v304
        %v409 = vunpack.c.h.b16 %v304
        %v410 = vunpack.c.l.b16 %v305
        %v411 = vunpack.c.h.b16 %v305
        %v412 = vunpack.c.l.b16 %v306
        %v413 = vunpack.c.h.b16 %v306
        %v414 = vunpack.c.l.b16 %v307
        %v415 = vunpack.c.h.b16 %v307
        %v416 = vunpack.c.l.b16 %v308
        %v417 = vunpack.c.h.b16 %v308
        %v418 = vunpack.c.l.b16 %v309
        %v419 = vunpack.c.h.b16 %v309
        %v420 = vunpack.c.l.b16 %v310
        %v421 = vunpack.c.h.b16 %v310
        %v422 = vunpack.c.l.b16 %v311
        %v423 = vunpack.c.h.b16 %v311
        %v424 = vunpack.c.l.b16 %v312
        %v425 = vunpack.c.h.b16 %v312
        %v426 = vunpack.c.l.b16 %v313
        %v427 = vunpack.c.h.b16 %v313
        %v428 = vunpack.c.l.b16 %v314
        %v429 = vunpack.c.h.b16 %v314
        %v430 = vunpack.c.l.b16 %v315
        %v431 = vunpack.c.h.b16 %v315
        %v432 = vunpack.c.l.b16 %v316
        %v433 = vunpack.c.h.b16 %v316
        %v434 = vunpack.c.l.b16 %v317
        %v435 = vunpack.c.h.b16 %v317
        %v436 = vunpack.c.l.b16 %v318
        %v437 = vunpack.c.h.b16 %v318
        %v438 = vunpack.c.l.b16 %v319
        %v439 = vunpack.c.h.b16 %v319
        %v440 = vunpack.c.l.b16 %v320
        %v441 = vunpack.c.h.b16 %v320
        %v442 = vunpack.c.l.b16 %v321
        %v443 = vunpack.c.h.b16 %v321
        %v444 = vunpack.c.l.b16 %v322
        %v445 = vunpack.c.h.b16 %v322
        %v446 = vunpack.c.l.b16 %v323
        %v447 = vunpack.c.h.b16 %v323
        %v448 = vunpack.c.l.b16 %v324
        %v449 = vunpack.c.h.b16 %v324
        %v450 = vunpack.c.l.b16 %v325
        %v451 = vunpack.c.h.b16 %v325
        %v452 = vunpack.c.l.b16 %v326
        %v453 = vunpack.c.h.b16 %v326
        %v454 = vunpack.c.l.b16 %v327
        %v455 = vunpack.c.h.b16 %v327
        %v456 = vunpack.c.l.b16 %v328
        %v457 = vunpack.c.h.b16 %v328
        %v458 = vunpack.c.l.b16 %v329
        %v459 = vunpack.c.h.b16 %v329
        %v460 = vunpack.c.l.b16 %v330
        %v461 = vunpack.c.h.b16 %v330
        %v462 = vunpack.c.l.b16 %v331
        %v463 = vunpack.c.h.b16 %v331
        %v464 = vpack.c.b16 %v402, %v400
        %v465 = vpack.c.b16 %v403, %v401
        %v466 = vpack.c.b16 %v406, %v404
        %v467 = vpack.c.b16 %v407, %v405
        %v468 = vpack.c.b16 %v410, %v408
        %v469 = vpack.c.b16 %v411, %v409
        %v470 = vpack.c.b16 %v414, %v412
        %v471 = vpack.c.b16 %v415, %v413
        %v472 = vpack.c.b16 %v418, %v416
        %v473 = vpack.c.b16 %v419, %v417
        %v474 = vpack.c.b16 %v422, %v420
        %v475 = vpack.c.b16 %v423, %v421
        %v476 = vpack.c.b16 %v426, %v424
        %v477 = vpack.c.b16 %v427, %v425
        %v478 = vpack.c.b16 %v430, %v428
        %v479 = vpack.c.b16 %v431, %v429
        %v480 = vpack.c.b16 %v434, %v432
        %v481 = vpack.c.b16 %v435, %v433
        %v482 = vpack.c.b16 %v438, %v436
        %v483 = vpack.c.b16 %v439, %v437
        %v484 = vpack.c.b16 %v442, %v440
        %v485 = vpack.c.b16 %v443, %v441
        %v486 = vpack.c.b16 %v446, %v444
        %v487 = vpack.c.b16 %v447, %v445
        %v488 = vpack.c.b16 %v450, %v448
        %v489 = vpack.c.b16 %v451, %v449
        %v490 = vpack.c.b16 %v454, %v452
        %v491 = vpack.c.b16 %v455, %v453
        %v492 = vpack.c.b16 %v458, %v456
        %v493 = vpack.c.b16 %v459, %v457
        %v494 = vpack.c.b16 %v462, %v460
        %v495 = vpack.c.b16 %v463, %v461
        %v560 = vunpack.c.l.b16 %v332
        %v561 = vunpack.c.l.b16 %v333
        %v562 = vunpack.c.l.b16 %v334
        %v563 = vunpack.c.l.b16 %v335
        %v564 = vunpack.c.l.b16 %v336
        %v565 = vunpack.c.l.b16 %v337
        %v566 = vunpack.c.l.b16 %v338
        %v567 = vunpack.c.l.b16 %v339
        %v568 = vunpack.c.l.b16 %v340
        %v569 = vunpack.c.l.b16 %v341
        %v570 = vunpack.c.l.b16 %v342
        %v571 = vunpack.c.l.b16 %v343
        %v572 = vunpack.c.l.b16 %v344
        %v573 = vunpack.c.l.b16 %v345
        %v574 = vunpack.c.l.b16 %v346
        %v575 = vunpack.c.l.b16 %v347
        %v576 = vunpack.c.l.b16 %v348
        %v577 = vunpack.c.l.b16 %v349
        %v578 = vunpack.c.l.b16 %v350
        %v579 = vunpack.c.l.b16 %v351
        %v580 = vunpack.c.l.b16 %v352
        %v581 = vunpack.c.l.b16 %v353
        %v582 = vunpack.c.l.b16 %v354
        %v583 = vunpack.c.l.b16 %v355
        %v584 = vunpack.c.l.b16 %v356
        %v585 = vunpack.c.l.b16 %v357
        %v586 = vunpack.c.l.b16 %v358
        %v587 = vunpack.c.l.b16 %v359
        %v588 = vunpack.c.l.b16 %v360
        %v589 = vunpack.c.l.b16 %v361
        %v590 = vunpack.c.l.b16 %v362
        %v591 = vunpack.c.l.b16 %v363
        %v592 = vpack.c.b16 %v561, %v560
        %v593 = vpack.c.b16 %v563, %v562
        %v594 = vpack.c.b16 %v565, %v564
        %v595 = vpack.c.b16 %v567, %v566
        %v596 = vpack.c.b16 %v569, %v568
        %v597 = vpack.c.b16 %v571, %v570
        %v598 = vpack.c.b16 %v573, %v572
        %v599 = vpack.c.b16 %v575, %v574
        %v600 = vpack.c.b16 %v577, %v576
        %v601 = vpack.c.b16 %v579, %v578
        %v602 = vpack.c.b16 %v581, %v580
        %v603 = vpack.c.b16 %v583, %v582
        %v604 = vpack.c.b16 %v585, %v584
        %v605 = vpack.c.b16 %v587, %v586
        %v606 = vpack.c.b16 %v589, %v588
        %v607 = vpack.c.b16 %v591, %v590
        %624 = vmatpush.bf16.msra.mxu0 %v599
        %625 = vmatpush.bf16.msra.mxu0 %v598
        %626 = vmatpush.bf16.msra.mxu0 %v597
        %627 = vmatpush.bf16.msra.mxu0 %v596
        %628 = vmatpush.bf16.msra.mxu0 %v595
        %629 = vmatpush.bf16.msra.mxu0 %v594
        %630 = vmatpush.bf16.msra.mxu0 %v593
        %631 = vmatpush.bf16.msra.mxu0 %v592
        %632 = vmatmul.bf16.gmra.mxu0 %v464
        %v633 = vpop.f32.mrf.mxu0
        %v634 = vadd.f32 %v366, %v633
        %v635 = vpop.f32.mrf.mxu0
        %v636 = vadd.f32 %v366, %v635
        %637 = vmatmul.bf16.gmra.mxu0 %v466
        %v638 = vpop.f32.mrf.mxu0
        %v639 = vadd.f32 %v366, %v638
        %v640 = vpop.f32.mrf.mxu0
        %v641 = vadd.f32 %v366, %v640
        %642 = vmatmul.bf16.gmra.mxu0 %v468
        %v643 = vpop.f32.mrf.mxu0
        %v644 = vadd.f32 %v366, %v643
        %v645 = vpop.f32.mrf.mxu0
        %v646 = vadd.f32 %v366, %v645
        %647 = vmatmul.bf16.gmra.mxu0 %v470
        %v648 = vpop.f32.mrf.mxu0
        %v649 = vadd.f32 %v366, %v648
        %v650 = vpop.f32.mrf.mxu0
        %v651 = vadd.f32 %v366, %v650
        %652 = vmatmul.bf16.gmra.mxu0 %v472
        %v653 = vpop.f32.mrf.mxu0
        %v654 = vadd.f32 %v366, %v653
        %v655 = vpop.f32.mrf.mxu0
        %v656 = vadd.f32 %v366, %v655
        %657 = vmatmul.bf16.gmra.mxu0 %v474
        %v658 = vpop.f32.mrf.mxu0
        %v659 = vadd.f32 %v366, %v658
        %v660 = vpop.f32.mrf.mxu0
        %v661 = vadd.f32 %v366, %v660
        %662 = vmatmul.bf16.gmra.mxu0 %v476
        %v663 = vpop.f32.mrf.mxu0
        %v664 = vadd.f32 %v366, %v663
        %v665 = vpop.f32.mrf.mxu0
        %v666 = vadd.f32 %v366, %v665
        %667 = vmatmul.bf16.gmra.mxu0 %v478
        %v668 = vpop.f32.mrf.mxu0
        %v669 = vadd.f32 %v366, %v668
        %v670 = vpop.f32.mrf.mxu0
        %v671 = vadd.f32 %v366, %v670
        %672 = vmatmul.bf16.gmra.mxu0 %v480
        %v673 = vpop.f32.mrf.mxu0
        %v674 = vadd.f32 %v366, %v673
        %v675 = vpop.f32.mrf.mxu0
        %v676 = vadd.f32 %v366, %v675
        %677 = vmatmul.bf16.gmra.mxu0 %v482
        %v678 = vpop.f32.mrf.mxu0
        %v679 = vadd.f32 %v366, %v678
        %v680 = vpop.f32.mrf.mxu0
        %v681 = vadd.f32 %v366, %v680
        %682 = vmatmul.bf16.gmra.mxu0 %v484
        %v683 = vpop.f32.mrf.mxu0
        %v684 = vadd.f32 %v366, %v683
        %v685 = vpop.f32.mrf.mxu0
        %v686 = vadd.f32 %v366, %v685
        %687 = vmatmul.bf16.gmra.mxu0 %v486
        %v688 = vpop.f32.mrf.mxu0
        %v689 = vadd.f32 %v366, %v688
        %v690 = vpop.f32.mrf.mxu0
        %v691 = vadd.f32 %v366, %v690
        %692 = vmatmul.bf16.gmra.mxu0 %v488
        %v693 = vpop.f32.mrf.mxu0
        %v694 = vadd.f32 %v366, %v693
        %v695 = vpop.f32.mrf.mxu0
        %v696 = vadd.f32 %v366, %v695
        %697 = vmatmul.bf16.gmra.mxu0 %v490
        %v698 = vpop.f32.mrf.mxu0
        %v699 = vadd.f32 %v366, %v698
        %v700 = vpop.f32.mrf.mxu0
        %v701 = vadd.f32 %v366, %v700
        %702 = vmatmul.bf16.gmra.mxu0 %v492
        %v703 = vpop.f32.mrf.mxu0
        %v704 = vadd.f32 %v366, %v703
        %v705 = vpop.f32.mrf.mxu0
        %v706 = vadd.f32 %v366, %v705
        %707 = vmatmul.bf16.gmra.mxu0 %v494
        %v708 = vpop.f32.mrf.mxu0
        %v709 = vadd.f32 %v366, %v708
        %v710 = vpop.f32.mrf.mxu0
        %v711 = vadd.f32 %v366, %v710
        %712 = vdwg.mxu0
        %713 = vmatpush.bf16.msra.mxu0 %v607
        %714 = vmatpush.bf16.msra.mxu0 %v606
        %715 = vmatpush.bf16.msra.mxu0 %v605
        %716 = vmatpush.bf16.msra.mxu0 %v604
        %717 = vmatpush.bf16.msra.mxu0 %v603
        %718 = vmatpush.bf16.msra.mxu0 %v602
        %719 = vmatpush.bf16.msra.mxu0 %v601
        %720 = vmatpush.bf16.msra.mxu0 %v600
        %721 = vmatmul.bf16.gmra.mxu0 %v465
        %v722 = vpop.f32.mrf.mxu0
        %v723 = vadd.f32 %v634, %v722
        %v724 = vpop.f32.mrf.mxu0
        %v725 = vadd.f32 %v636, %v724
        %726 = vmatmul.bf16.gmra.mxu0 %v467
        %v727 = vpop.f32.mrf.mxu0
        %v728 = vadd.f32 %v639, %v727
        %v729 = vpop.f32.mrf.mxu0
        %v730 = vadd.f32 %v641, %v729
        %731 = vmatmul.bf16.gmra.mxu0 %v469
        %v732 = vpop.f32.mrf.mxu0
        %v733 = vadd.f32 %v644, %v732
        %v734 = vpop.f32.mrf.mxu0
        %v735 = vadd.f32 %v646, %v734
        %736 = vmatmul.bf16.gmra.mxu0 %v471
        %v737 = vpop.f32.mrf.mxu0
        %v738 = vadd.f32 %v649, %v737
        %v739 = vpop.f32.mrf.mxu0
        %v740 = vadd.f32 %v651, %v739
        %741 = vmatmul.bf16.gmra.mxu0 %v473
        %v742 = vpop.f32.mrf.mxu0
        %v743 = vadd.f32 %v654, %v742
        %v744 = vpop.f32.mrf.mxu0
        %v745 = vadd.f32 %v656, %v744
        %746 = vmatmul.bf16.gmra.mxu0 %v475
        %v747 = vpop.f32.mrf.mxu0
        %v748 = vadd.f32 %v659, %v747
        %v749 = vpop.f32.mrf.mxu0
        %v750 = vadd.f32 %v661, %v749
        %751 = vmatmul.bf16.gmra.mxu0 %v477
        %v752 = vpop.f32.mrf.mxu0
        %v753 = vadd.f32 %v664, %v752
        %v754 = vpop.f32.mrf.mxu0
        %v755 = vadd.f32 %v666, %v754
        %756 = vmatmul.bf16.gmra.mxu0 %v479
        %v757 = vpop.f32.mrf.mxu0
        %v758 = vadd.f32 %v669, %v757
        %v759 = vpop.f32.mrf.mxu0
        %v760 = vadd.f32 %v671, %v759
        %761 = vmatmul.bf16.gmra.mxu0 %v481
        %v762 = vpop.f32.mrf.mxu0
        %v763 = vadd.f32 %v674, %v762
        %v764 = vpop.f32.mrf.mxu0
        %v765 = vadd.f32 %v676, %v764
        %766 = vmatmul.bf16.gmra.mxu0 %v483
        %v767 = vpop.f32.mrf.mxu0
        %v768 = vadd.f32 %v679, %v767
        %v769 = vpop.f32.mrf.mxu0
        %v770 = vadd.f32 %v681, %v769
        %771 = vmatmul.bf16.gmra.mxu0 %v485
        %v772 = vpop.f32.mrf.mxu0
        %v773 = vadd.f32 %v684, %v772
        %v774 = vpop.f32.mrf.mxu0
        %v775 = vadd.f32 %v686, %v774
        %776 = vmatmul.bf16.gmra.mxu0 %v487
        %v777 = vpop.f32.mrf.mxu0
        %v778 = vadd.f32 %v689, %v777
        %v779 = vpop.f32.mrf.mxu0
        %v780 = vadd.f32 %v691, %v779
        %781 = vmatmul.bf16.gmra.mxu0 %v489
        %v782 = vpop.f32.mrf.mxu0
        %v783 = vadd.f32 %v694, %v782
        %v784 = vpop.f32.mrf.mxu0
        %v785 = vadd.f32 %v696, %v784
        %786 = vmatmul.bf16.gmra.mxu0 %v491
        %v787 = vpop.f32.mrf.mxu0
        %v788 = vadd.f32 %v699, %v787
        %v789 = vpop.f32.mrf.mxu0
        %v790 = vadd.f32 %v701, %v789
        %791 = vmatmul.bf16.gmra.mxu0 %v493
        %v792 = vpop.f32.mrf.mxu0
        %v793 = vadd.f32 %v704, %v792
        %v794 = vpop.f32.mrf.mxu0
        %v795 = vadd.f32 %v706, %v794
        %796 = vmatmul.bf16.gmra.mxu0 %v495
        %v797 = vpop.f32.mrf.mxu0
        %v798 = vadd.f32 %v709, %v797
        %v799 = vpop.f32.mrf.mxu0
        %v800 = vadd.f32 %v711, %v799
        %801 = vdwg.mxu0
        %v802 = vmax.f32 %v723, 0.0
        %v803 = vmax.f32 %v725, 0.0
        %v804 = vmax.f32 %v728, 0.0
        %v805 = vmax.f32 %v730, 0.0
        %v806 = vmax.f32 %v733, 0.0
        %v807 = vmax.f32 %v735, 0.0
        %v808 = vmax.f32 %v738, 0.0
        %v809 = vmax.f32 %v740, 0.0
        %v810 = vmax.f32 %v743, 0.0
        %v811 = vmax.f32 %v745, 0.0
        %v812 = vmax.f32 %v748, 0.0
        %v813 = vmax.f32 %v750, 0.0
        %v814 = vmax.f32 %v753, 0.0
        %v815 = vmax.f32 %v755, 0.0
        %v816 = vmax.f32 %v758, 0.0
        %v817 = vmax.f32 %v760, 0.0
        %v818 = vmax.f32 %v763, 0.0
        %v819 = vmax.f32 %v765, 0.0
        %v820 = vmax.f32 %v768, 0.0
        %v821 = vmax.f32 %v770, 0.0
        %v822 = vmax.f32 %v773, 0.0
        %v823 = vmax.f32 %v775, 0.0
        %v824 = vmax.f32 %v778, 0.0
        %v825 = vmax.f32 %v780, 0.0
        %v826 = vmax.f32 %v783, 0.0
        %v827 = vmax.f32 %v785, 0.0
        %v828 = vmax.f32 %v788, 0.0
        %v829 = vmax.f32 %v790, 0.0
        %v830 = vmax.f32 %v793, 0.0
        %v831 = vmax.f32 %v795, 0.0
        %v832 = vmax.f32 %v798, 0.0
        %v833 = vmax.f32 %v800, 0.0
        %v834 = vlaneseq
        %v835 = vshrl.u32 %v834, 7
        %v836 = vadd.s32 %v835, 8
        %v837 = vadd.s32 %v835, 16
        %v838 = vadd.s32 %v835, 24
        %v839 = vadd.s32 %v835, 32
        %v840 = vadd.s32 %v835, 40
        %v841 = vadd.s32 %v835, 48
        %v842 = vadd.s32 %v835, 56
        %v843 = vadd.s32 %v835, 64
        %v844 = vadd.s32 %v835, 72
        %v845 = vadd.s32 %v835, 80
        %v846 = vadd.s32 %v835, 88
        %v847 = vadd.s32 %v835, 96
        %v848 = vadd.s32 %v835, 104
        %v849 = vadd.s32 %v835, 112
        %v850 = vadd.s32 %v835, 120
        %v851 = vadd.s32 %v835, 128
        %v852 = vadd.s32 %v835, 136
        %v853 = vadd.s32 %v835, 144
        %v854 = vadd.s32 %v835, 152
        %v855 = vadd.s32 %v835, 160
        %v856 = vadd.s32 %v835, 168
        %v857 = vadd.s32 %v835, 176
        %v858 = vadd.s32 %v835, 184
        %v859 = vadd.s32 %v835, 192
        %v860 = vadd.s32 %v835, 200
        %v861 = vadd.s32 %v835, 208
        %v862 = vadd.s32 %v835, 216
        %v863 = vadd.s32 %v835, 224
        %v864 = vadd.s32 %v835, 232
        %v865 = vadd.s32 %v835, 240
        %v866 = vadd.s32 %v835, 248
        %vm867 = vcmp.lt.s32.totalorder %v835, 0
        %v868 = vsub.s32 0, %v835
        %v869 = vsel %vm867, %v868, %v835
        %v870 = vshrl.u32 %v869, 4
        %v871 = vand.u32 %v869, 15
        %v872 = vsub.s32 0, %v871
        %v873 = vsel %vm867, %v872, %v871
        %vm874 = vcmp.lt.s32.totalorder %v836, 0
        %v875 = vsub.s32 0, %v836
        %v876 = vsel %vm874, %v875, %v836
        %v877 = vshrl.u32 %v876, 4
        %v878 = vand.u32 %v876, 15
        %v879 = vsub.s32 0, %v878
        %v880 = vsel %vm874, %v879, %v878
        %vm881 = vcmp.lt.s32.totalorder %v837, 0
        %v882 = vsub.s32 0, %v837
        %v883 = vsel %vm881, %v882, %v837
        %v884 = vshrl.u32 %v883, 4
        %v885 = vand.u32 %v883, 15
        %v886 = vsub.s32 0, %v885
        %v887 = vsel %vm881, %v886, %v885
        %vm888 = vcmp.lt.s32.totalorder %v838, 0
        %v889 = vsub.s32 0, %v838
        %v890 = vsel %vm888, %v889, %v838
        %v891 = vshrl.u32 %v890, 4
        %v892 = vand.u32 %v890, 15
        %v893 = vsub.s32 0, %v892
        %v894 = vsel %vm888, %v893, %v892
        %vm895 = vcmp.lt.s32.totalorder %v839, 0
        %v896 = vsub.s32 0, %v839
        %v897 = vsel %vm895, %v896, %v839
        %v898 = vshrl.u32 %v897, 4
        %v899 = vand.u32 %v897, 15
        %v900 = vsub.s32 0, %v899
        %v901 = vsel %vm895, %v900, %v899
        %vm902 = vcmp.lt.s32.totalorder %v840, 0
        %v903 = vsub.s32 0, %v840
        %v904 = vsel %vm902, %v903, %v840
        %v905 = vshrl.u32 %v904, 4
        %v906 = vand.u32 %v904, 15
        %v907 = vsub.s32 0, %v906
        %v908 = vsel %vm902, %v907, %v906
        %vm909 = vcmp.lt.s32.totalorder %v841, 0
        %v910 = vsub.s32 0, %v841
        %v911 = vsel %vm909, %v910, %v841
        %v912 = vshrl.u32 %v911, 4
        %v913 = vand.u32 %v911, 15
        %v914 = vsub.s32 0, %v913
        %v915 = vsel %vm909, %v914, %v913
        %vm916 = vcmp.lt.s32.totalorder %v842, 0
        %v917 = vsub.s32 0, %v842
        %v918 = vsel %vm916, %v917, %v842
        %v919 = vshrl.u32 %v918, 4
        %v920 = vand.u32 %v918, 15
        %v921 = vsub.s32 0, %v920
        %v922 = vsel %vm916, %v921, %v920
        %vm923 = vcmp.lt.s32.totalorder %v843, 0
        %v924 = vsub.s32 0, %v843
        %v925 = vsel %vm923, %v924, %v843
        %v926 = vshrl.u32 %v925, 4
        %v927 = vand.u32 %v925, 15
        %v928 = vsub.s32 0, %v927
        %v929 = vsel %vm923, %v928, %v927
        %vm930 = vcmp.lt.s32.totalorder %v844, 0
        %v931 = vsub.s32 0, %v844
        %v932 = vsel %vm930, %v931, %v844
        %v933 = vshrl.u32 %v932, 4
        %v934 = vand.u32 %v932, 15
        %v935 = vsub.s32 0, %v934
        %v936 = vsel %vm930, %v935, %v934
        %vm937 = vcmp.lt.s32.totalorder %v845, 0
        %v938 = vsub.s32 0, %v845
        %v939 = vsel %vm937, %v938, %v845
        %v940 = vshrl.u32 %v939, 4
        %v941 = vand.u32 %v939, 15
        %v942 = vsub.s32 0, %v941
        %v943 = vsel %vm937, %v942, %v941
        %vm944 = vcmp.lt.s32.totalorder %v846, 0
        %v945 = vsub.s32 0, %v846
        %v946 = vsel %vm944, %v945, %v846
        %v947 = vshrl.u32 %v946, 4
        %v948 = vand.u32 %v946, 15
        %v949 = vsub.s32 0, %v948
        %v950 = vsel %vm944, %v949, %v948
        %vm951 = vcmp.lt.s32.totalorder %v847, 0
        %v952 = vsub.s32 0, %v847
        %v953 = vsel %vm951, %v952, %v847
        %v954 = vshrl.u32 %v953, 4
        %v955 = vand.u32 %v953, 15
        %v956 = vsub.s32 0, %v955
        %v957 = vsel %vm951, %v956, %v955
        %vm958 = vcmp.lt.s32.totalorder %v848, 0
        %v959 = vsub.s32 0, %v848
        %v960 = vsel %vm958, %v959, %v848
        %v961 = vshrl.u32 %v960, 4
        %v962 = vand.u32 %v960, 15
        %v963 = vsub.s32 0, %v962
        %v964 = vsel %vm958, %v963, %v962
        %vm965 = vcmp.lt.s32.totalorder %v849, 0
        %v966 = vsub.s32 0, %v849
        %v967 = vsel %vm965, %v966, %v849
        %v968 = vshrl.u32 %v967, 4
        %v969 = vand.u32 %v967, 15
        %v970 = vsub.s32 0, %v969
        %v971 = vsel %vm965, %v970, %v969
        %vm972 = vcmp.lt.s32.totalorder %v850, 0
        %v973 = vsub.s32 0, %v850
        %v974 = vsel %vm972, %v973, %v850
        %v975 = vshrl.u32 %v974, 4
        %v976 = vand.u32 %v974, 15
        %v977 = vsub.s32 0, %v976
        %v978 = vsel %vm972, %v977, %v976
        %vm979 = vcmp.lt.s32.totalorder %v851, 0
        %v980 = vsub.s32 0, %v851
        %v981 = vsel %vm979, %v980, %v851
        %v982 = vshrl.u32 %v981, 4
        %v983 = vand.u32 %v981, 15
        %v984 = vsub.s32 0, %v983
        %v985 = vsel %vm979, %v984, %v983
        %vm986 = vcmp.lt.s32.totalorder %v852, 0
        %v987 = vsub.s32 0, %v852
        %v988 = vsel %vm986, %v987, %v852
        %v989 = vshrl.u32 %v988, 4
        %v990 = vand.u32 %v988, 15
        %v991 = vsub.s32 0, %v990
        %v992 = vsel %vm986, %v991, %v990
        %vm993 = vcmp.lt.s32.totalorder %v853, 0
        %v994 = vsub.s32 0, %v853
        %v995 = vsel %vm993, %v994, %v853
        %v996 = vshrl.u32 %v995, 4
        %v997 = vand.u32 %v995, 15
        %v998 = vsub.s32 0, %v997
        %v999 = vsel %vm993, %v998, %v997
        %vm1000 = vcmp.lt.s32.totalorder %v854, 0
        %v1001 = vsub.s32 0, %v854
        %v1002 = vsel %vm1000, %v1001, %v854
        %v1003 = vshrl.u32 %v1002, 4
        %v1004 = vand.u32 %v1002, 15
        %v1005 = vsub.s32 0, %v1004
        %v1006 = vsel %vm1000, %v1005, %v1004
        %vm1007 = vcmp.lt.s32.totalorder %v855, 0
        %v1008 = vsub.s32 0, %v855
        %v1009 = vsel %vm1007, %v1008, %v855
        %v1010 = vshrl.u32 %v1009, 4
        %v1011 = vand.u32 %v1009, 15
        %v1012 = vsub.s32 0, %v1011
        %v1013 = vsel %vm1007, %v1012, %v1011
        %vm1014 = vcmp.lt.s32.totalorder %v856, 0
        %v1015 = vsub.s32 0, %v856
        %v1016 = vsel %vm1014, %v1015, %v856
        %v1017 = vshrl.u32 %v1016, 4
        %v1018 = vand.u32 %v1016, 15
        %v1019 = vsub.s32 0, %v1018
        %v1020 = vsel %vm1014, %v1019, %v1018
        %vm1021 = vcmp.lt.s32.totalorder %v857, 0
        %v1022 = vsub.s32 0, %v857
        %v1023 = vsel %vm1021, %v1022, %v857
        %v1024 = vshrl.u32 %v1023, 4
        %v1025 = vand.u32 %v1023, 15
        %v1026 = vsub.s32 0, %v1025
        %v1027 = vsel %vm1021, %v1026, %v1025
        %vm1028 = vcmp.lt.s32.totalorder %v858, 0
        %v1029 = vsub.s32 0, %v858
        %v1030 = vsel %vm1028, %v1029, %v858
        %v1031 = vshrl.u32 %v1030, 4
        %v1032 = vand.u32 %v1030, 15
        %v1033 = vsub.s32 0, %v1032
        %v1034 = vsel %vm1028, %v1033, %v1032
        %vm1035 = vcmp.lt.s32.totalorder %v859, 0
        %v1036 = vsub.s32 0, %v859
        %v1037 = vsel %vm1035, %v1036, %v859
        %v1038 = vshrl.u32 %v1037, 4
        %v1039 = vand.u32 %v1037, 15
        %v1040 = vsub.s32 0, %v1039
        %v1041 = vsel %vm1035, %v1040, %v1039
        %vm1042 = vcmp.lt.s32.totalorder %v860, 0
        %v1043 = vsub.s32 0, %v860
        %v1044 = vsel %vm1042, %v1043, %v860
        %v1045 = vshrl.u32 %v1044, 4
        %v1046 = vand.u32 %v1044, 15
        %v1047 = vsub.s32 0, %v1046
        %v1048 = vsel %vm1042, %v1047, %v1046
        %vm1049 = vcmp.lt.s32.totalorder %v861, 0
        %v1050 = vsub.s32 0, %v861
        %v1051 = vsel %vm1049, %v1050, %v861
        %v1052 = vshrl.u32 %v1051, 4
        %v1053 = vand.u32 %v1051, 15
        %v1054 = vsub.s32 0, %v1053
        %v1055 = vsel %vm1049, %v1054, %v1053
        %vm1056 = vcmp.lt.s32.totalorder %v862, 0
        %v1057 = vsub.s32 0, %v862
        %v1058 = vsel %vm1056, %v1057, %v862
        %v1059 = vshrl.u32 %v1058, 4
        %v1060 = vand.u32 %v1058, 15
        %v1061 = vsub.s32 0, %v1060
        %v1062 = vsel %vm1056, %v1061, %v1060
        %vm1063 = vcmp.lt.s32.totalorder %v863, 0
        %v1064 = vsub.s32 0, %v863
        %v1065 = vsel %vm1063, %v1064, %v863
        %v1066 = vshrl.u32 %v1065, 4
        %v1067 = vand.u32 %v1065, 15
        %v1068 = vsub.s32 0, %v1067
        %v1069 = vsel %vm1063, %v1068, %v1067
        %vm1070 = vcmp.lt.s32.totalorder %v864, 0
        %v1071 = vsub.s32 0, %v864
        %v1072 = vsel %vm1070, %v1071, %v864
        %v1073 = vshrl.u32 %v1072, 4
        %v1074 = vand.u32 %v1072, 15
        %v1075 = vsub.s32 0, %v1074
        %v1076 = vsel %vm1070, %v1075, %v1074
        %vm1077 = vcmp.lt.s32.totalorder %v865, 0
        %v1078 = vsub.s32 0, %v865
        %v1079 = vsel %vm1077, %v1078, %v865
        %v1080 = vshrl.u32 %v1079, 4
        %v1081 = vand.u32 %v1079, 15
        %v1082 = vsub.s32 0, %v1081
        %v1083 = vsel %vm1077, %v1082, %v1081
        %vm1084 = vcmp.lt.s32.totalorder %v866, 0
        %v1085 = vsub.s32 0, %v866
        %v1086 = vsel %vm1084, %v1085, %v866
        %v1087 = vshrl.u32 %v1086, 4
        %v1088 = vand.u32 %v1086, 15
        %v1089 = vsub.s32 0, %v1088
        %v1090 = vsel %vm1084, %v1089, %v1088
        %vm1091 = vcmp.ne.s32.totalorder %v873, 0
        %vm1092 = vcmp.ne.s32.totalorder %v880, 0
        %vm1093 = vcmp.ne.s32.totalorder %v887, 0
        %vm1094 = vcmp.ne.s32.totalorder %v894, 0
        %vm1095 = vcmp.ne.s32.totalorder %v901, 0
        %vm1096 = vcmp.ne.s32.totalorder %v908, 0
        %vm1097 = vcmp.ne.s32.totalorder %v915, 0
        %vm1098 = vcmp.ne.s32.totalorder %v922, 0
        %vm1099 = vcmp.ne.s32.totalorder %v929, 0
        %vm1100 = vcmp.ne.s32.totalorder %v936, 0
        %vm1101 = vcmp.ne.s32.totalorder %v943, 0
        %vm1102 = vcmp.ne.s32.totalorder %v950, 0
        %vm1103 = vcmp.ne.s32.totalorder %v957, 0
        %vm1104 = vcmp.ne.s32.totalorder %v964, 0
        %vm1105 = vcmp.ne.s32.totalorder %v971, 0
        %vm1106 = vcmp.ne.s32.totalorder %v978, 0
        %vm1107 = vcmp.ne.s32.totalorder %v985, 0
        %vm1108 = vcmp.ne.s32.totalorder %v992, 0
        %vm1109 = vcmp.ne.s32.totalorder %v999, 0
        %vm1110 = vcmp.ne.s32.totalorder %v1006, 0
        %vm1111 = vcmp.ne.s32.totalorder %v1013, 0
        %vm1112 = vcmp.ne.s32.totalorder %v1020, 0
        %vm1113 = vcmp.ne.s32.totalorder %v1027, 0
        %vm1114 = vcmp.ne.s32.totalorder %v1034, 0
        %vm1115 = vcmp.ne.s32.totalorder %v1041, 0
        %vm1116 = vcmp.ne.s32.totalorder %v1048, 0
        %vm1117 = vcmp.ne.s32.totalorder %v1055, 0
        %vm1118 = vcmp.ne.s32.totalorder %v1062, 0
        %vm1119 = vcmp.ne.s32.totalorder %v1069, 0
        %vm1120 = vcmp.ne.s32.totalorder %v1076, 0
        %vm1121 = vcmp.ne.s32.totalorder %v1083, 0
        %vm1122 = vcmp.ne.s32.totalorder %v1090, 0
        %vm1123 = vcmp.lt.s32.totalorder %v873, 0
        %vm1124 = vcmp.lt.s32.totalorder %v880, 0
        %vm1125 = vcmp.lt.s32.totalorder %v887, 0
        %vm1126 = vcmp.lt.s32.totalorder %v894, 0
        %vm1127 = vcmp.lt.s32.totalorder %v901, 0
        %vm1128 = vcmp.lt.s32.totalorder %v908, 0
        %vm1129 = vcmp.lt.s32.totalorder %v915, 0
        %vm1130 = vcmp.lt.s32.totalorder %v922, 0
        %vm1131 = vcmp.lt.s32.totalorder %v929, 0
        %vm1132 = vcmp.lt.s32.totalorder %v936, 0
        %vm1133 = vcmp.lt.s32.totalorder %v943, 0
        %vm1134 = vcmp.lt.s32.totalorder %v950, 0
        %vm1135 = vcmp.lt.s32.totalorder %v957, 0
        %vm1136 = vcmp.lt.s32.totalorder %v964, 0
        %vm1137 = vcmp.lt.s32.totalorder %v971, 0
        %vm1138 = vcmp.lt.s32.totalorder %v978, 0
        %vm1139 = vcmp.lt.s32.totalorder %v985, 0
        %vm1140 = vcmp.lt.s32.totalorder %v992, 0
        %vm1141 = vcmp.lt.s32.totalorder %v999, 0
        %vm1142 = vcmp.lt.s32.totalorder %v1006, 0
        %vm1143 = vcmp.lt.s32.totalorder %v1013, 0
        %vm1144 = vcmp.lt.s32.totalorder %v1020, 0
        %vm1145 = vcmp.lt.s32.totalorder %v1027, 0
        %vm1146 = vcmp.lt.s32.totalorder %v1034, 0
        %vm1147 = vcmp.lt.s32.totalorder %v1041, 0
        %vm1148 = vcmp.lt.s32.totalorder %v1048, 0
        %vm1149 = vcmp.lt.s32.totalorder %v1055, 0
        %vm1150 = vcmp.lt.s32.totalorder %v1062, 0
        %vm1151 = vcmp.lt.s32.totalorder %v1069, 0
        %vm1152 = vcmp.lt.s32.totalorder %v1076, 0
        %vm1153 = vcmp.lt.s32.totalorder %v1083, 0
        %vm1154 = vcmp.lt.s32.totalorder %v1090, 0
        %vm1155 = vmand %vm1123, %vm1091
        %vm1156 = vmand %vm1124, %vm1092
        %vm1157 = vmand %vm1125, %vm1093
        %vm1158 = vmand %vm1126, %vm1094
        %vm1159 = vmand %vm1127, %vm1095
        %vm1160 = vmand %vm1128, %vm1096
        %vm1161 = vmand %vm1129, %vm1097
        %vm1162 = vmand %vm1130, %vm1098
        %vm1163 = vmand %vm1131, %vm1099
        %vm1164 = vmand %vm1132, %vm1100
        %vm1165 = vmand %vm1133, %vm1101
        %vm1166 = vmand %vm1134, %vm1102
        %vm1167 = vmand %vm1135, %vm1103
        %vm1168 = vmand %vm1136, %vm1104
        %vm1169 = vmand %vm1137, %vm1105
        %vm1170 = vmand %vm1138, %vm1106
        %vm1171 = vmand %vm1139, %vm1107
        %vm1172 = vmand %vm1140, %vm1108
        %vm1173 = vmand %vm1141, %vm1109
        %vm1174 = vmand %vm1142, %vm1110
        %vm1175 = vmand %vm1143, %vm1111
        %vm1176 = vmand %vm1144, %vm1112
        %vm1177 = vmand %vm1145, %vm1113
        %vm1178 = vmand %vm1146, %vm1114
        %vm1179 = vmand %vm1147, %vm1115
        %vm1180 = vmand %vm1148, %vm1116
        %vm1181 = vmand %vm1149, %vm1117
        %vm1182 = vmand %vm1150, %vm1118
        %vm1183 = vmand %vm1151, %vm1119
        %vm1184 = vmand %vm1152, %vm1120
        %vm1185 = vmand %vm1153, %vm1121
        %vm1186 = vmand %vm1154, %vm1122
        %v1187 = vadd.s32 %v873, 16
        %v1188 = vadd.s32 %v880, 16
        %v1189 = vadd.s32 %v887, 16
        %v1190 = vadd.s32 %v894, 16
        %v1191 = vadd.s32 %v901, 16
        %v1192 = vadd.s32 %v908, 16
        %v1193 = vadd.s32 %v915, 16
        %v1194 = vadd.s32 %v922, 16
        %v1195 = vadd.s32 %v929, 16
        %v1196 = vadd.s32 %v936, 16
        %v1197 = vadd.s32 %v943, 16
        %v1198 = vadd.s32 %v950, 16
        %v1199 = vadd.s32 %v957, 16
        %v1200 = vadd.s32 %v964, 16
        %v1201 = vadd.s32 %v971, 16
        %v1202 = vadd.s32 %v978, 16
        %v1203 = vadd.s32 %v985, 16
        %v1204 = vadd.s32 %v992, 16
        %v1205 = vadd.s32 %v999, 16
        %v1206 = vadd.s32 %v1006, 16
        %v1207 = vadd.s32 %v1013, 16
        %v1208 = vadd.s32 %v1020, 16
        %v1209 = vadd.s32 %v1027, 16
        %v1210 = vadd.s32 %v1034, 16
        %v1211 = vadd.s32 %v1041, 16
        %v1212 = vadd.s32 %v1048, 16
        %v1213 = vadd.s32 %v1055, 16
        %v1214 = vadd.s32 %v1062, 16
        %v1215 = vadd.s32 %v1069, 16
        %v1216 = vadd.s32 %v1076, 16
        %v1217 = vadd.s32 %v1083, 16
        %v1218 = vadd.s32 %v1090, 16
        %v1219 = vsel %vm1155, %v1187, %v873
        %v1220 = vsel %vm1156, %v1188, %v880
        %v1221 = vsel %vm1157, %v1189, %v887
        %v1222 = vsel %vm1158, %v1190, %v894
        %v1223 = vsel %vm1159, %v1191, %v901
        %v1224 = vsel %vm1160, %v1192, %v908
        %v1225 = vsel %vm1161, %v1193, %v915
        %v1226 = vsel %vm1162, %v1194, %v922
        %v1227 = vsel %vm1163, %v1195, %v929
        %v1228 = vsel %vm1164, %v1196, %v936
        %v1229 = vsel %vm1165, %v1197, %v943
        %v1230 = vsel %vm1166, %v1198, %v950
        %v1231 = vsel %vm1167, %v1199, %v957
        %v1232 = vsel %vm1168, %v1200, %v964
        %v1233 = vsel %vm1169, %v1201, %v971
        %v1234 = vsel %vm1170, %v1202, %v978
        %v1235 = vsel %vm1171, %v1203, %v985
        %v1236 = vsel %vm1172, %v1204, %v992
        %v1237 = vsel %vm1173, %v1205, %v999
        %v1238 = vsel %vm1174, %v1206, %v1006
        %v1239 = vsel %vm1175, %v1207, %v1013
        %v1240 = vsel %vm1176, %v1208, %v1020
        %v1241 = vsel %vm1177, %v1209, %v1027
        %v1242 = vsel %vm1178, %v1210, %v1034
        %v1243 = vsel %vm1179, %v1211, %v1041
        %v1244 = vsel %vm1180, %v1212, %v1048
        %v1245 = vsel %vm1181, %v1213, %v1055
        %v1246 = vsel %vm1182, %v1214, %v1062
        %v1247 = vsel %vm1183, %v1215, %v1069
        %v1248 = vsel %vm1184, %v1216, %v1076
        %v1249 = vsel %vm1185, %v1217, %v1083
        %v1250 = vsel %vm1186, %v1218, %v1090
        %vm1251 = vcmp.ge.s32.totalorder %v1219, 1
        %vm1252 = vcmp.ge.s32.totalorder %v1220, 1
        %vm1253 = vcmp.ge.s32.totalorder %v1221, 1
        %vm1254 = vcmp.ge.s32.totalorder %v1222, 1
        %vm1255 = vcmp.ge.s32.totalorder %v1223, 1
        %vm1256 = vcmp.ge.s32.totalorder %v1224, 1
        %vm1257 = vcmp.ge.s32.totalorder %v1225, 1
        %vm1258 = vcmp.ge.s32.totalorder %v1226, 1
        %vm1259 = vcmp.ge.s32.totalorder %v1227, 1
        %vm1260 = vcmp.ge.s32.totalorder %v1228, 1
        %vm1261 = vcmp.ge.s32.totalorder %v1229, 1
        %vm1262 = vcmp.ge.s32.totalorder %v1230, 1
        %vm1263 = vcmp.ge.s32.totalorder %v1231, 1
        %vm1264 = vcmp.ge.s32.totalorder %v1232, 1
        %vm1265 = vcmp.ge.s32.totalorder %v1233, 1
        %vm1266 = vcmp.ge.s32.totalorder %v1234, 1
        %vm1267 = vcmp.ge.s32.totalorder %v1235, 1
        %vm1268 = vcmp.ge.s32.totalorder %v1236, 1
        %vm1269 = vcmp.ge.s32.totalorder %v1237, 1
        %vm1270 = vcmp.ge.s32.totalorder %v1238, 1
        %vm1271 = vcmp.ge.s32.totalorder %v1239, 1
        %vm1272 = vcmp.ge.s32.totalorder %v1240, 1
        %vm1273 = vcmp.ge.s32.totalorder %v1241, 1
        %vm1274 = vcmp.ge.s32.totalorder %v1242, 1
        %vm1275 = vcmp.ge.s32.totalorder %v1243, 1
        %vm1276 = vcmp.ge.s32.totalorder %v1244, 1
        %vm1277 = vcmp.ge.s32.totalorder %v1245, 1
        %vm1278 = vcmp.ge.s32.totalorder %v1246, 1
        %vm1279 = vcmp.ge.s32.totalorder %v1247, 1
        %vm1280 = vcmp.ge.s32.totalorder %v1248, 1
        %vm1281 = vcmp.ge.s32.totalorder %v1249, 1
        %vm1282 = vcmp.ge.s32.totalorder %v1250, 1
        %v1283 = vrot.slane %v802, 7
        %v1284 = vrot.slane %v803, 7
        %v1285 = vrot.slane %v804, 7
        %v1286 = vrot.slane %v805, 7
        %v1287 = vrot.slane %v806, 7
        %v1288 = vrot.slane %v807, 7
        %v1289 = vrot.slane %v808, 7
        %v1290 = vrot.slane %v809, 7
        %v1291 = vrot.slane %v810, 7
        %v1292 = vrot.slane %v811, 7
        %v1293 = vrot.slane %v812, 7
        %v1294 = vrot.slane %v813, 7
        %v1295 = vrot.slane %v814, 7
        %v1296 = vrot.slane %v815, 7
        %v1297 = vrot.slane %v816, 7
        %v1298 = vrot.slane %v817, 7
        %v1299 = vrot.slane %v818, 7
        %v1300 = vrot.slane %v819, 7
        %v1301 = vrot.slane %v820, 7
        %v1302 = vrot.slane %v821, 7
        %v1303 = vrot.slane %v822, 7
        %v1304 = vrot.slane %v823, 7
        %v1305 = vrot.slane %v824, 7
        %v1306 = vrot.slane %v825, 7
        %v1307 = vrot.slane %v826, 7
        %v1308 = vrot.slane %v827, 7
        %v1309 = vrot.slane %v828, 7
        %v1310 = vrot.slane %v829, 7
        %v1311 = vrot.slane %v830, 7
        %v1312 = vrot.slane %v831, 7
        %v1313 = vrot.slane %v832, 7
        %v1314 = vrot.slane %v833, 7
        %vm1315 = vcmp.lt.s32.totalorder %v835, 1
        %v1316 = vsel %vm1315, %v1313, %v1314
        %v1317 = vsel %vm1315, %v1312, %v1313
        %v1318 = vsel %vm1315, %v1311, %v1312
        %v1319 = vsel %vm1315, %v1310, %v1311
        %v1320 = vsel %vm1315, %v1309, %v1310
        %v1321 = vsel %vm1315, %v1308, %v1309
        %v1322 = vsel %vm1315, %v1307, %v1308
        %v1323 = vsel %vm1315, %v1306, %v1307
        %v1324 = vsel %vm1315, %v1305, %v1306
        %v1325 = vsel %vm1315, %v1304, %v1305
        %v1326 = vsel %vm1315, %v1303, %v1304
        %v1327 = vsel %vm1315, %v1302, %v1303
        %v1328 = vsel %vm1315, %v1301, %v1302
        %v1329 = vsel %vm1315, %v1300, %v1301
        %v1330 = vsel %vm1315, %v1299, %v1300
        %v1331 = vsel %vm1315, %v1298, %v1299
        %v1332 = vsel %vm1315, %v1297, %v1298
        %v1333 = vsel %vm1315, %v1296, %v1297
        %v1334 = vsel %vm1315, %v1295, %v1296
        %v1335 = vsel %vm1315, %v1294, %v1295
        %v1336 = vsel %vm1315, %v1293, %v1294
        %v1337 = vsel %vm1315, %v1292, %v1293
        %v1338 = vsel %vm1315, %v1291, %v1292
        %v1339 = vsel %vm1315, %v1290, %v1291
        %v1340 = vsel %vm1315, %v1289, %v1290
        %v1341 = vsel %vm1315, %v1288, %v1289
        %v1342 = vsel %vm1315, %v1287, %v1288
        %v1343 = vsel %vm1315, %v1286, %v1287
        %v1344 = vsel %vm1315, %v1285, %v1286
        %v1345 = vsel %vm1315, %v1284, %v1285
        %v1346 = vsel %vm1315, %v1283, %v1284
        %v1347 = vsel %vm1315, %v1314, %v1283
        %v1348 = vsel %vm1251, 1, 0
        %v1349 = vsel %vm1252, 1, 0
        %v1350 = vsel %vm1253, 1, 0
        %v1351 = vsel %vm1254, 1, 0
        %v1352 = vsel %vm1255, 1, 0
        %v1353 = vsel %vm1256, 1, 0
        %v1354 = vsel %vm1257, 1, 0
        %v1355 = vsel %vm1258, 1, 0
        %v1356 = vsel %vm1259, 1, 0
        %v1357 = vsel %vm1260, 1, 0
        %v1358 = vsel %vm1261, 1, 0
        %v1359 = vsel %vm1262, 1, 0
        %v1360 = vsel %vm1263, 1, 0
        %v1361 = vsel %vm1264, 1, 0
        %v1362 = vsel %vm1265, 1, 0
        %v1363 = vsel %vm1266, 1, 0
        %v1364 = vsel %vm1267, 1, 0
        %v1365 = vsel %vm1268, 1, 0
        %v1366 = vsel %vm1269, 1, 0
        %v1367 = vsel %vm1270, 1, 0
        %v1368 = vsel %vm1271, 1, 0
        %v1369 = vsel %vm1272, 1, 0
        %v1370 = vsel %vm1273, 1, 0
        %v1371 = vsel %vm1274, 1, 0
        %v1372 = vsel %vm1275, 1, 0
        %v1373 = vsel %vm1276, 1, 0
        %v1374 = vsel %vm1277, 1, 0
        %v1375 = vsel %vm1278, 1, 0
        %v1376 = vsel %vm1279, 1, 0
        %v1377 = vsel %vm1280, 1, 0
        %v1378 = vsel %vm1281, 1, 0
        %v1379 = vsel %vm1282, 1, 0
        %vm1380 = vcmp.eq.s32.totalorder %v1348, 1
        %vm1381 = vcmp.eq.s32.totalorder %v1349, 1
        %vm1382 = vcmp.eq.s32.totalorder %v1350, 1
        %vm1383 = vcmp.eq.s32.totalorder %v1351, 1
        %vm1384 = vcmp.eq.s32.totalorder %v1352, 1
        %vm1385 = vcmp.eq.s32.totalorder %v1353, 1
        %vm1386 = vcmp.eq.s32.totalorder %v1354, 1
        %vm1387 = vcmp.eq.s32.totalorder %v1355, 1
        %vm1388 = vcmp.eq.s32.totalorder %v1356, 1
        %vm1389 = vcmp.eq.s32.totalorder %v1357, 1
        %vm1390 = vcmp.eq.s32.totalorder %v1358, 1
        %vm1391 = vcmp.eq.s32.totalorder %v1359, 1
        %vm1392 = vcmp.eq.s32.totalorder %v1360, 1
        %vm1393 = vcmp.eq.s32.totalorder %v1361, 1
        %vm1394 = vcmp.eq.s32.totalorder %v1362, 1
        %vm1395 = vcmp.eq.s32.totalorder %v1363, 1
        %vm1396 = vcmp.eq.s32.totalorder %v1364, 1
        %vm1397 = vcmp.eq.s32.totalorder %v1365, 1
        %vm1398 = vcmp.eq.s32.totalorder %v1366, 1
        %vm1399 = vcmp.eq.s32.totalorder %v1367, 1
        %vm1400 = vcmp.eq.s32.totalorder %v1368, 1
        %vm1401 = vcmp.eq.s32.totalorder %v1369, 1
        %vm1402 = vcmp.eq.s32.totalorder %v1370, 1
        %vm1403 = vcmp.eq.s32.totalorder %v1371, 1
        %vm1404 = vcmp.eq.s32.totalorder %v1372, 1
        %vm1405 = vcmp.eq.s32.totalorder %v1373, 1
        %vm1406 = vcmp.eq.s32.totalorder %v1374, 1
        %vm1407 = vcmp.eq.s32.totalorder %v1375, 1
        %vm1408 = vcmp.eq.s32.totalorder %v1376, 1
        %vm1409 = vcmp.eq.s32.totalorder %v1377, 1
        %vm1410 = vcmp.eq.s32.totalorder %v1378, 1
        %vm1411 = vcmp.eq.s32.totalorder %v1379, 1
        %v1412 = vsel %vm1380, %v1347, 0.0
        %v1413 = vsel %vm1381, %v1346, 0.0
        %v1414 = vsel %vm1382, %v1345, 0.0
        %v1415 = vsel %vm1383, %v1344, 0.0
        %v1416 = vsel %vm1384, %v1343, 0.0
        %v1417 = vsel %vm1385, %v1342, 0.0
        %v1418 = vsel %vm1386, %v1341, 0.0
        %v1419 = vsel %vm1387, %v1340, 0.0
        %v1420 = vsel %vm1388, %v1339, 0.0
        %v1421 = vsel %vm1389, %v1338, 0.0
        %v1422 = vsel %vm1390, %v1337, 0.0
        %v1423 = vsel %vm1391, %v1336, 0.0
        %v1424 = vsel %vm1392, %v1335, 0.0
        %v1425 = vsel %vm1393, %v1334, 0.0
        %v1426 = vsel %vm1394, %v1333, 0.0
        %v1427 = vsel %vm1395, %v1332, 0.0
        %v1428 = vsel %vm1396, %v1331, 0.0
        %v1429 = vsel %vm1397, %v1330, 0.0
        %v1430 = vsel %vm1398, %v1329, 0.0
        %v1431 = vsel %vm1399, %v1328, 0.0
        %v1432 = vsel %vm1400, %v1327, 0.0
        %v1433 = vsel %vm1401, %v1326, 0.0
        %v1434 = vsel %vm1402, %v1325, 0.0
        %v1435 = vsel %vm1403, %v1324, 0.0
        %v1436 = vsel %vm1404, %v1323, 0.0
        %v1437 = vsel %vm1405, %v1322, 0.0
        %v1438 = vsel %vm1406, %v1321, 0.0
        %v1439 = vsel %vm1407, %v1320, 0.0
        %v1440 = vsel %vm1408, %v1319, 0.0
        %v1441 = vsel %vm1409, %v1318, 0.0
        %v1442 = vsel %vm1410, %v1317, 0.0
        %v1443 = vsel %vm1411, %v1316, 0.0
        %vm1444 = vcmp.le.s32.totalorder %v1219, 14
        %vm1445 = vcmp.le.s32.totalorder %v1220, 14
        %vm1446 = vcmp.le.s32.totalorder %v1221, 14
        %vm1447 = vcmp.le.s32.totalorder %v1222, 14
        %vm1448 = vcmp.le.s32.totalorder %v1223, 14
        %vm1449 = vcmp.le.s32.totalorder %v1224, 14
        %vm1450 = vcmp.le.s32.totalorder %v1225, 14
        %vm1451 = vcmp.le.s32.totalorder %v1226, 14
        %vm1452 = vcmp.le.s32.totalorder %v1227, 14
        %vm1453 = vcmp.le.s32.totalorder %v1228, 14
        %vm1454 = vcmp.le.s32.totalorder %v1229, 14
        %vm1455 = vcmp.le.s32.totalorder %v1230, 14
        %vm1456 = vcmp.le.s32.totalorder %v1231, 14
        %vm1457 = vcmp.le.s32.totalorder %v1232, 14
        %vm1458 = vcmp.le.s32.totalorder %v1233, 14
        %vm1459 = vcmp.le.s32.totalorder %v1234, 14
        %vm1460 = vcmp.le.s32.totalorder %v1235, 14
        %vm1461 = vcmp.le.s32.totalorder %v1236, 14
        %vm1462 = vcmp.le.s32.totalorder %v1237, 14
        %vm1463 = vcmp.le.s32.totalorder %v1238, 14
        %vm1464 = vcmp.le.s32.totalorder %v1239, 14
        %vm1465 = vcmp.le.s32.totalorder %v1240, 14
        %vm1466 = vcmp.le.s32.totalorder %v1241, 14
        %vm1467 = vcmp.le.s32.totalorder %v1242, 14
        %vm1468 = vcmp.le.s32.totalorder %v1243, 14
        %vm1469 = vcmp.le.s32.totalorder %v1244, 14
        %vm1470 = vcmp.le.s32.totalorder %v1245, 14
        %vm1471 = vcmp.le.s32.totalorder %v1246, 14
        %vm1472 = vcmp.le.s32.totalorder %v1247, 14
        %vm1473 = vcmp.le.s32.totalorder %v1248, 14
        %vm1474 = vcmp.le.s32.totalorder %v1249, 14
        %vm1475 = vcmp.le.s32.totalorder %v1250, 14
        %v1476 = vrot.slane %v802, 1
        %v1477 = vrot.slane %v803, 1
        %v1478 = vrot.slane %v804, 1
        %v1479 = vrot.slane %v805, 1
        %v1480 = vrot.slane %v806, 1
        %v1481 = vrot.slane %v807, 1
        %v1482 = vrot.slane %v808, 1
        %v1483 = vrot.slane %v809, 1
        %v1484 = vrot.slane %v810, 1
        %v1485 = vrot.slane %v811, 1
        %v1486 = vrot.slane %v812, 1
        %v1487 = vrot.slane %v813, 1
        %v1488 = vrot.slane %v814, 1
        %v1489 = vrot.slane %v815, 1
        %v1490 = vrot.slane %v816, 1
        %v1491 = vrot.slane %v817, 1
        %v1492 = vrot.slane %v818, 1
        %v1493 = vrot.slane %v819, 1
        %v1494 = vrot.slane %v820, 1
        %v1495 = vrot.slane %v821, 1
        %v1496 = vrot.slane %v822, 1
        %v1497 = vrot.slane %v823, 1
        %v1498 = vrot.slane %v824, 1
        %v1499 = vrot.slane %v825, 1
        %v1500 = vrot.slane %v826, 1
        %v1501 = vrot.slane %v827, 1
        %v1502 = vrot.slane %v828, 1
        %v1503 = vrot.slane %v829, 1
        %v1504 = vrot.slane %v830, 1
        %v1505 = vrot.slane %v831, 1
        %v1506 = vrot.slane %v832, 1
        %v1507 = vrot.slane %v833, 1
        %vm1508 = vcmp.lt.s32.totalorder %v835, 7
        %v1509 = vsel %vm1508, %v1506, %v1507
        %v1510 = vsel %vm1508, %v1505, %v1506
        %v1511 = vsel %vm1508, %v1504, %v1505
        %v1512 = vsel %vm1508, %v1503, %v1504
        %v1513 = vsel %vm1508, %v1502, %v1503
        %v1514 = vsel %vm1508, %v1501, %v1502
        %v1515 = vsel %vm1508, %v1500, %v1501
        %v1516 = vsel %vm1508, %v1499, %v1500
        %v1517 = vsel %vm1508, %v1498, %v1499
        %v1518 = vsel %vm1508, %v1497, %v1498
        %v1519 = vsel %vm1508, %v1496, %v1497
        %v1520 = vsel %vm1508, %v1495, %v1496
        %v1521 = vsel %vm1508, %v1494, %v1495
        %v1522 = vsel %vm1508, %v1493, %v1494
        %v1523 = vsel %vm1508, %v1492, %v1493
        %v1524 = vsel %vm1508, %v1491, %v1492
        %v1525 = vsel %vm1508, %v1490, %v1491
        %v1526 = vsel %vm1508, %v1489, %v1490
        %v1527 = vsel %vm1508, %v1488, %v1489
        %v1528 = vsel %vm1508, %v1487, %v1488
        %v1529 = vsel %vm1508, %v1486, %v1487
        %v1530 = vsel %vm1508, %v1485, %v1486
        %v1531 = vsel %vm1508, %v1484, %v1485
        %v1532 = vsel %vm1508, %v1483, %v1484
        %v1533 = vsel %vm1508, %v1482, %v1483
        %v1534 = vsel %vm1508, %v1481, %v1482
        %v1535 = vsel %vm1508, %v1480, %v1481
        %v1536 = vsel %vm1508, %v1479, %v1480
        %v1537 = vsel %vm1508, %v1478, %v1479
        %v1538 = vsel %vm1508, %v1477, %v1478
        %v1539 = vsel %vm1508, %v1476, %v1477
        %v1540 = vsel %vm1508, %v1507, %v1476
        %v1541 = vsel %vm1444, 1, 0
        %v1542 = vsel %vm1445, 1, 0
        %v1543 = vsel %vm1446, 1, 0
        %v1544 = vsel %vm1447, 1, 0
        %v1545 = vsel %vm1448, 1, 0
        %v1546 = vsel %vm1449, 1, 0
        %v1547 = vsel %vm1450, 1, 0
        %v1548 = vsel %vm1451, 1, 0
        %v1549 = vsel %vm1452, 1, 0
        %v1550 = vsel %vm1453, 1, 0
        %v1551 = vsel %vm1454, 1, 0
        %v1552 = vsel %vm1455, 1, 0
        %v1553 = vsel %vm1456, 1, 0
        %v1554 = vsel %vm1457, 1, 0
        %v1555 = vsel %vm1458, 1, 0
        %v1556 = vsel %vm1459, 1, 0
        %v1557 = vsel %vm1460, 1, 0
        %v1558 = vsel %vm1461, 1, 0
        %v1559 = vsel %vm1462, 1, 0
        %v1560 = vsel %vm1463, 1, 0
        %v1561 = vsel %vm1464, 1, 0
        %v1562 = vsel %vm1465, 1, 0
        %v1563 = vsel %vm1466, 1, 0
        %v1564 = vsel %vm1467, 1, 0
        %v1565 = vsel %vm1468, 1, 0
        %v1566 = vsel %vm1469, 1, 0
        %v1567 = vsel %vm1470, 1, 0
        %v1568 = vsel %vm1471, 1, 0
        %v1569 = vsel %vm1472, 1, 0
        %v1570 = vsel %vm1473, 1, 0
        %v1571 = vsel %vm1474, 1, 0
        %v1572 = vsel %vm1475, 1, 0
        %vm1573 = vcmp.eq.s32.totalorder %v1541, 1
        %vm1574 = vcmp.eq.s32.totalorder %v1542, 1
        %vm1575 = vcmp.eq.s32.totalorder %v1543, 1
        %vm1576 = vcmp.eq.s32.totalorder %v1544, 1
        %vm1577 = vcmp.eq.s32.totalorder %v1545, 1
        %vm1578 = vcmp.eq.s32.totalorder %v1546, 1
        %vm1579 = vcmp.eq.s32.totalorder %v1547, 1
        %vm1580 = vcmp.eq.s32.totalorder %v1548, 1
        %vm1581 = vcmp.eq.s32.totalorder %v1549, 1
        %vm1582 = vcmp.eq.s32.totalorder %v1550, 1
        %vm1583 = vcmp.eq.s32.totalorder %v1551, 1
        %vm1584 = vcmp.eq.s32.totalorder %v1552, 1
        %vm1585 = vcmp.eq.s32.totalorder %v1553, 1
        %vm1586 = vcmp.eq.s32.totalorder %v1554, 1
        %vm1587 = vcmp.eq.s32.totalorder %v1555, 1
        %vm1588 = vcmp.eq.s32.totalorder %v1556, 1
        %vm1589 = vcmp.eq.s32.totalorder %v1557, 1
        %vm1590 = vcmp.eq.s32.totalorder %v1558, 1
        %vm1591 = vcmp.eq.s32.totalorder %v1559, 1
        %vm1592 = vcmp.eq.s32.totalorder %v1560, 1
        %vm1593 = vcmp.eq.s32.totalorder %v1561, 1
        %vm1594 = vcmp.eq.s32.totalorder %v1562, 1
        %vm1595 = vcmp.eq.s32.totalorder %v1563, 1
        %vm1596 = vcmp.eq.s32.totalorder %v1564, 1
        %vm1597 = vcmp.eq.s32.totalorder %v1565, 1
        %vm1598 = vcmp.eq.s32.totalorder %v1566, 1
        %vm1599 = vcmp.eq.s32.totalorder %v1567, 1
        %vm1600 = vcmp.eq.s32.totalorder %v1568, 1
        %vm1601 = vcmp.eq.s32.totalorder %v1569, 1
        %vm1602 = vcmp.eq.s32.totalorder %v1570, 1
        %vm1603 = vcmp.eq.s32.totalorder %v1571, 1
        %vm1604 = vcmp.eq.s32.totalorder %v1572, 1
        %v1605 = vsel %vm1573, %v1539, 0.0
        %v1606 = vsel %vm1574, %v1538, 0.0
        %v1607 = vsel %vm1575, %v1537, 0.0
        %v1608 = vsel %vm1576, %v1536, 0.0
        %v1609 = vsel %vm1577, %v1535, 0.0
        %v1610 = vsel %vm1578, %v1534, 0.0
        %v1611 = vsel %vm1579, %v1533, 0.0
        %v1612 = vsel %vm1580, %v1532, 0.0
        %v1613 = vsel %vm1581, %v1531, 0.0
        %v1614 = vsel %vm1582, %v1530, 0.0
        %v1615 = vsel %vm1583, %v1529, 0.0
        %v1616 = vsel %vm1584, %v1528, 0.0
        %v1617 = vsel %vm1585, %v1527, 0.0
        %v1618 = vsel %vm1586, %v1526, 0.0
        %v1619 = vsel %vm1587, %v1525, 0.0
        %v1620 = vsel %vm1588, %v1524, 0.0
        %v1621 = vsel %vm1589, %v1523, 0.0
        %v1622 = vsel %vm1590, %v1522, 0.0
        %v1623 = vsel %vm1591, %v1521, 0.0
        %v1624 = vsel %vm1592, %v1520, 0.0
        %v1625 = vsel %vm1593, %v1519, 0.0
        %v1626 = vsel %vm1594, %v1518, 0.0
        %v1627 = vsel %vm1595, %v1517, 0.0
        %v1628 = vsel %vm1596, %v1516, 0.0
        %v1629 = vsel %vm1597, %v1515, 0.0
        %v1630 = vsel %vm1598, %v1514, 0.0
        %v1631 = vsel %vm1599, %v1513, 0.0
        %v1632 = vsel %vm1600, %v1512, 0.0
        %v1633 = vsel %vm1601, %v1511, 0.0
        %v1634 = vsel %vm1602, %v1510, 0.0
        %v1635 = vsel %vm1603, %v1509, 0.0
        %v1636 = vsel %vm1604, %v1540, 0.0
        %vm1637 = vcmask 1043456
        %vm1638 = vcmask 523268
        %vm1639 = vmor %vm1638, %vm1637
        %1640 = vst.msk [vmem:[#allocation2] sm:$0xff] %vm1639, 0
        %1641 = vst.msk [vmem:[#allocation2 + $0x8] sm:$0xff] %vm1639, 0
        %1642 = vst.msk [vmem:[#allocation2 + $0x110] sm:$0xff] %vm1639, 0
        %1643 = vst.msk [vmem:[#allocation2 + $0x118] sm:$0xff] %vm1639, 0
        %v1644 = vpack.c.bf16 %v1412, %v1412
        %v1645 = vpack.c.bf16 %v1413, %v1413
        %v1646 = vpack.c.bf16 %v1414, %v1414
        %v1647 = vpack.c.bf16 %v1415, %v1415
        %v1648 = vpack.c.bf16 %v1416, %v1416
        %v1649 = vpack.c.bf16 %v1417, %v1417
        %v1650 = vpack.c.bf16 %v1418, %v1418
        %v1651 = vpack.c.bf16 %v1419, %v1419
        %v1652 = vpack.c.bf16 %v1420, %v1420
        %v1653 = vpack.c.bf16 %v1421, %v1421
        %v1654 = vpack.c.bf16 %v1422, %v1422
        %v1655 = vpack.c.bf16 %v1423, %v1423
        %v1656 = vpack.c.bf16 %v1424, %v1424
        %v1657 = vpack.c.bf16 %v1425, %v1425
        %v1658 = vpack.c.bf16 %v1426, %v1426
        %v1659 = vpack.c.bf16 %v1427, %v1427
        %v1660 = vpack.c.bf16 %v1428, %v1428
        %v1661 = vpack.c.bf16 %v1429, %v1429
        %v1662 = vpack.c.bf16 %v1430, %v1430
        %v1663 = vpack.c.bf16 %v1431, %v1431
        %v1664 = vpack.c.bf16 %v1432, %v1432
        %v1665 = vpack.c.bf16 %v1433, %v1433
        %v1666 = vpack.c.bf16 %v1434, %v1434
        %v1667 = vpack.c.bf16 %v1435, %v1435
        %v1668 = vpack.c.bf16 %v1436, %v1436
        %v1669 = vpack.c.bf16 %v1437, %v1437
        %v1670 = vpack.c.bf16 %v1438, %v1438
        %v1671 = vpack.c.bf16 %v1439, %v1439
        %v1672 = vpack.c.bf16 %v1440, %v1440
        %v1673 = vpack.c.bf16 %v1441, %v1441
        %v1674 = vpack.c.bf16 %v1442, %v1442
        %v1675 = vpack.c.bf16 %v1443, %v1443
        %vm1676 = vcmask 519168
        %1677 = vst.msk [vmem:[#allocation2 + $0x10] sm:$0xf] %vm1676, %v1644
        %1678 = vst.msk [vmem:[#allocation2 + $0x18] sm:$0xf] %vm1676, %v1645
        %1679 = vst.msk [vmem:[#allocation2 + $0x20] sm:$0xf] %vm1676, %v1646
        %1680 = vst.msk [vmem:[#allocation2 + $0x28] sm:$0xf] %vm1676, %v1647
        %1681 = vst.msk [vmem:[#allocation2 + $0x30] sm:$0xf] %vm1676, %v1648
        %1682 = vst.msk [vmem:[#allocation2 + $0x38] sm:$0xf] %vm1676, %v1649
        %1683 = vst.msk [vmem:[#allocation2 + $0x40] sm:$0xf] %vm1676, %v1650
        %1684 = vst.msk [vmem:[#allocation2 + $0x48] sm:$0xf] %vm1676, %v1651
        %1685 = vst.msk [vmem:[#allocation2 + $0x50] sm:$0xf] %vm1676, %v1652
        %1686 = vst.msk [vmem:[#allocation2 + $0x58] sm:$0xf] %vm1676, %v1653
        %1687 = vst.msk [vmem:[#allocation2 + $0x60] sm:$0xf] %vm1676, %v1654
        %1688 = vst.msk [vmem:[#allocation2 + $0x68] sm:$0xf] %vm1676, %v1655
        %1689 = vst.msk [vmem:[#allocation2 + $0x70] sm:$0xf] %vm1676, %v1656
        %1690 = vst.msk [vmem:[#allocation2 + $0x78] sm:$0xf] %vm1676, %v1657
        %1691 = vst.msk [vmem:[#allocation2 + $0x80] sm:$0xf] %vm1676, %v1658
        %1692 = vst.msk [vmem:[#allocation2 + $0x88] sm:$0xf] %vm1676, %v1659
        %1693 = vst.msk [vmem:[#allocation2 + $0x90] sm:$0xf] %vm1676, %v1660
        %1694 = vst.msk [vmem:[#allocation2 + $0x98] sm:$0xf] %vm1676, %v1661
        %1695 = vst.msk [vmem:[#allocation2 + $0xa0] sm:$0xf] %vm1676, %v1662
        %1696 = vst.msk [vmem:[#allocation2 + $0xa8] sm:$0xf] %vm1676, %v1663
        %1697 = vst.msk [vmem:[#allocation2 + $0xb0] sm:$0xf] %vm1676, %v1664
        %1698 = vst.msk [vmem:[#allocation2 + $0xb8] sm:$0xf] %vm1676, %v1665
        %1699 = vst.msk [vmem:[#allocation2 + $0xc0] sm:$0xf] %vm1676, %v1666
        %1700 = vst.msk [vmem:[#allocation2 + $0xc8] sm:$0xf] %vm1676, %v1667
        %1701 = vst.msk [vmem:[#allocation2 + $0xd0] sm:$0xf] %vm1676, %v1668
        %1702 = vst.msk [vmem:[#allocation2 + $0xd8] sm:$0xf] %vm1676, %v1669
        %1703 = vst.msk [vmem:[#allocation2 + $0xe0] sm:$0xf] %vm1676, %v1670
        %1704 = vst.msk [vmem:[#allocation2 + $0xe8] sm:$0xf] %vm1676, %v1671
        %1705 = vst.msk [vmem:[#allocation2 + $0xf0] sm:$0xf] %vm1676, %v1672
        %1706 = vst.msk [vmem:[#allocation2 + $0xf8] sm:$0xf] %vm1676, %v1673
        %1707 = vst.msk [vmem:[#allocation2 + $0x100] sm:$0xf] %vm1676, %v1674
        %1708 = vst.msk [vmem:[#allocation2 + $0x108] sm:$0xf] %vm1676, %v1675
        %v1709 = vpack.c.bf16 %v802, %v802
        %v1710 = vpack.c.bf16 %v803, %v803
        %v1711 = vpack.c.bf16 %v804, %v804
        %v1712 = vpack.c.bf16 %v805, %v805
        %v1713 = vpack.c.bf16 %v806, %v806
        %v1714 = vpack.c.bf16 %v807, %v807
        %v1715 = vpack.c.bf16 %v808, %v808
        %v1716 = vpack.c.bf16 %v809, %v809
        %v1717 = vpack.c.bf16 %v810, %v810
        %v1718 = vpack.c.bf16 %v811, %v811
        %v1719 = vpack.c.bf16 %v812, %v812
        %v1720 = vpack.c.bf16 %v813, %v813
        %v1721 = vpack.c.bf16 %v814, %v814
        %v1722 = vpack.c.bf16 %v815, %v815
        %v1723 = vpack.c.bf16 %v816, %v816
        %v1724 = vpack.c.bf16 %v817, %v817
        %v1725 = vpack.c.bf16 %v818, %v818
        %v1726 = vpack.c.bf16 %v819, %v819
        %v1727 = vpack.c.bf16 %v820, %v820
        %v1728 = vpack.c.bf16 %v821, %v821
        %v1729 = vpack.c.bf16 %v822, %v822
        %v1730 = vpack.c.bf16 %v823, %v823
        %v1731 = vpack.c.bf16 %v824, %v824
        %v1732 = vpack.c.bf16 %v825, %v825
        %v1733 = vpack.c.bf16 %v826, %v826
        %v1734 = vpack.c.bf16 %v827, %v827
        %v1735 = vpack.c.bf16 %v828, %v828
        %v1736 = vpack.c.bf16 %v829, %v829
        %v1737 = vpack.c.bf16 %v830, %v830
        %v1738 = vpack.c.bf16 %v831, %v831
        %v1739 = vpack.c.bf16 %v832, %v832
        %v1740 = vpack.c.bf16 %v833, %v833
        %1773 = vrot.lane.b32.xlu0 %v1709, 64
        %v1774 = vpop.permute.xlu0 %1773
        %1775 = vrot.lane.b32.xlu0 %v1710, 64
        %v1776 = vpop.permute.xlu0 %1775
        %1777 = vrot.lane.b32.xlu0 %v1711, 64
        %v1778 = vpop.permute.xlu0 %1777
        %1779 = vrot.lane.b32.xlu0 %v1712, 64
        %v1780 = vpop.permute.xlu0 %1779
        %1781 = vrot.lane.b32.xlu0 %v1713, 64
        %v1782 = vpop.permute.xlu0 %1781
        %1783 = vrot.lane.b32.xlu0 %v1714, 64
        %v1784 = vpop.permute.xlu0 %1783
        %1785 = vrot.lane.b32.xlu0 %v1715, 64
        %v1786 = vpop.permute.xlu0 %1785
        %1787 = vrot.lane.b32.xlu0 %v1716, 64
        %v1788 = vpop.permute.xlu0 %1787
        %1789 = vrot.lane.b32.xlu0 %v1717, 64
        %v1790 = vpop.permute.xlu0 %1789
        %1791 = vrot.lane.b32.xlu0 %v1718, 64
        %v1792 = vpop.permute.xlu0 %1791
        %1793 = vrot.lane.b32.xlu0 %v1719, 64
        %v1794 = vpop.permute.xlu0 %1793
        %1795 = vrot.lane.b32.xlu0 %v1720, 64
        %v1796 = vpop.permute.xlu0 %1795
        %1797 = vrot.lane.b32.xlu0 %v1721, 64
        %v1798 = vpop.permute.xlu0 %1797
        %1799 = vrot.lane.b32.xlu0 %v1722, 64
        %v1800 = vpop.permute.xlu0 %1799
        %1801 = vrot.lane.b32.xlu0 %v1723, 64
        %v1802 = vpop.permute.xlu0 %1801
        %1803 = vrot.lane.b32.xlu0 %v1724, 64
        %v1804 = vpop.permute.xlu0 %1803
        %1805 = vrot.lane.b32.xlu0 %v1725, 64
        %v1806 = vpop.permute.xlu0 %1805
        %1807 = vrot.lane.b32.xlu0 %v1726, 64
        %v1808 = vpop.permute.xlu0 %1807
        %1809 = vrot.lane.b32.xlu0 %v1727, 64
        %v1810 = vpop.permute.xlu0 %1809
        %1811 = vrot.lane.b32.xlu0 %v1728, 64
        %v1812 = vpop.permute.xlu0 %1811
        %1813 = vrot.lane.b32.xlu0 %v1729, 64
        %v1814 = vpop.permute.xlu0 %1813
        %1815 = vrot.lane.b32.xlu0 %v1730, 64
        %v1816 = vpop.permute.xlu0 %1815
        %1817 = vrot.lane.b32.xlu0 %v1731, 64
        %v1818 = vpop.permute.xlu0 %1817
        %1819 = vrot.lane.b32.xlu0 %v1732, 64
        %v1820 = vpop.permute.xlu0 %1819
        %1821 = vrot.lane.b32.xlu0 %v1733, 64
        %v1822 = vpop.permute.xlu0 %1821
        %1823 = vrot.lane.b32.xlu0 %v1734, 64
        %v1824 = vpop.permute.xlu0 %1823
        %1825 = vrot.lane.b32.xlu0 %v1735, 64
        %v1826 = vpop.permute.xlu0 %1825
        %1827 = vrot.lane.b32.xlu0 %v1736, 64
        %v1828 = vpop.permute.xlu0 %1827
        %1829 = vrot.lane.b32.xlu0 %v1737, 64
        %v1830 = vpop.permute.xlu0 %1829
        %1831 = vrot.lane.b32.xlu0 %v1738, 64
        %v1832 = vpop.permute.xlu0 %1831
        %1833 = vrot.lane.b32.xlu0 %v1739, 64
        %v1834 = vpop.permute.xlu0 %1833
        %1835 = vrot.lane.b32.xlu0 %v1740, 64
        %v1836 = vpop.permute.xlu0 %1835
        %vm1869 = vcmask 1043968
        %1870 = vst.msk [vmem:[#allocation2 + $0x10] sm:$0xf] %vm1869, %v1774
        %1871 = vst.msk [vmem:[#allocation2 + $0x18] sm:$0xf] %vm1869, %v1776
        %1872 = vst.msk [vmem:[#allocation2 + $0x20] sm:$0xf] %vm1869, %v1778
        %1873 = vst.msk [vmem:[#allocation2 + $0x28] sm:$0xf] %vm1869, %v1780
        %1874 = vst.msk [vmem:[#allocation2 + $0x30] sm:$0xf] %vm1869, %v1782
        %1875 = vst.msk [vmem:[#allocation2 + $0x38] sm:$0xf] %vm1869, %v1784
        %1876 = vst.msk [vmem:[#allocation2 + $0x40] sm:$0xf] %vm1869, %v1786
        %1877 = vst.msk [vmem:[#allocation2 + $0x48] sm:$0xf] %vm1869, %v1788
        %1878 = vst.msk [vmem:[#allocation2 + $0x50] sm:$0xf] %vm1869, %v1790
        %1879 = vst.msk [vmem:[#allocation2 + $0x58] sm:$0xf] %vm1869, %v1792
        %1880 = vst.msk [vmem:[#allocation2 + $0x60] sm:$0xf] %vm1869, %v1794
        %1881 = vst.msk [vmem:[#allocation2 + $0x68] sm:$0xf] %vm1869, %v1796
        %1882 = vst.msk [vmem:[#allocation2 + $0x70] sm:$0xf] %vm1869, %v1798
        %1883 = vst.msk [vmem:[#allocation2 + $0x78] sm:$0xf] %vm1869, %v1800
        %1884 = vst.msk [vmem:[#allocation2 + $0x80] sm:$0xf] %vm1869, %v1802
        %1885 = vst.msk [vmem:[#allocation2 + $0x88] sm:$0xf] %vm1869, %v1804
        %1886 = vst.msk [vmem:[#allocation2 + $0x90] sm:$0xf] %vm1869, %v1806
        %1887 = vst.msk [vmem:[#allocation2 + $0x98] sm:$0xf] %vm1869, %v1808
        %1888 = vst.msk [vmem:[#allocation2 + $0xa0] sm:$0xf] %vm1869, %v1810
        %1889 = vst.msk [vmem:[#allocation2 + $0xa8] sm:$0xf] %vm1869, %v1812
        %1890 = vst.msk [vmem:[#allocation2 + $0xb0] sm:$0xf] %vm1869, %v1814
        %1891 = vst.msk [vmem:[#allocation2 + $0xb8] sm:$0xf] %vm1869, %v1816
        %1892 = vst.msk [vmem:[#allocation2 + $0xc0] sm:$0xf] %vm1869, %v1818
        %1893 = vst.msk [vmem:[#allocation2 + $0xc8] sm:$0xf] %vm1869, %v1820
        %1894 = vst.msk [vmem:[#allocation2 + $0xd0] sm:$0xf] %vm1869, %v1822
        %1895 = vst.msk [vmem:[#allocation2 + $0xd8] sm:$0xf] %vm1869, %v1824
        %1896 = vst.msk [vmem:[#allocation2 + $0xe0] sm:$0xf] %vm1869, %v1826
        %1897 = vst.msk [vmem:[#allocation2 + $0xe8] sm:$0xf] %vm1869, %v1828
        %1898 = vst.msk [vmem:[#allocation2 + $0xf0] sm:$0xf] %vm1869, %v1830
        %1899 = vst.msk [vmem:[#allocation2 + $0xf8] sm:$0xf] %vm1869, %v1832
        %1900 = vst.msk [vmem:[#allocation2 + $0x100] sm:$0xf] %vm1869, %v1834
        %1901 = vst.msk [vmem:[#allocation2 + $0x108] sm:$0xf] %vm1869, %v1836
        %v1902 = vpack.c.bf16 %v1605, %v1605
        %v1903 = vpack.c.bf16 %v1606, %v1606
        %v1904 = vpack.c.bf16 %v1607, %v1607
        %v1905 = vpack.c.bf16 %v1608, %v1608
        %v1906 = vpack.c.bf16 %v1609, %v1609
        %v1907 = vpack.c.bf16 %v1610, %v1610
        %v1908 = vpack.c.bf16 %v1611, %v1611
        %v1909 = vpack.c.bf16 %v1612, %v1612
        %v1910 = vpack.c.bf16 %v1613, %v1613
        %v1911 = vpack.c.bf16 %v1614, %v1614
        %v1912 = vpack.c.bf16 %v1615, %v1615
        %v1913 = vpack.c.bf16 %v1616, %v1616
        %v1914 = vpack.c.bf16 %v1617, %v1617
        %v1915 = vpack.c.bf16 %v1618, %v1618
        %v1916 = vpack.c.bf16 %v1619, %v1619
        %v1917 = vpack.c.bf16 %v1620, %v1620
        %v1918 = vpack.c.bf16 %v1621, %v1621
        %v1919 = vpack.c.bf16 %v1622, %v1622
        %v1920 = vpack.c.bf16 %v1623, %v1623
        %v1921 = vpack.c.bf16 %v1624, %v1624
        %v1922 = vpack.c.bf16 %v1625, %v1625
        %v1923 = vpack.c.bf16 %v1626, %v1626
        %v1924 = vpack.c.bf16 %v1627, %v1627
        %v1925 = vpack.c.bf16 %v1628, %v1628
        %v1926 = vpack.c.bf16 %v1629, %v1629
        %v1927 = vpack.c.bf16 %v1630, %v1630
        %v1928 = vpack.c.bf16 %v1631, %v1631
        %v1929 = vpack.c.bf16 %v1632, %v1632
        %v1930 = vpack.c.bf16 %v1633, %v1633
        %v1931 = vpack.c.bf16 %v1634, %v1634
        %v1932 = vpack.c.bf16 %v1635, %v1635
        %v1933 = vpack.c.bf16 %v1636, %v1636
        %1934 = vst.msk [vmem:[#allocation2 + $0x14] sm:$0xf] %vm1676, %v1902
        %1935 = vst.msk [vmem:[#allocation2 + $0x1c] sm:$0xf] %vm1676, %v1903
        %1936 = vst.msk [vmem:[#allocation2 + $0x24] sm:$0xf] %vm1676, %v1904
        %1937 = vst.msk [vmem:[#allocation2 + $0x2c] sm:$0xf] %vm1676, %v1905
        %1938 = vst.msk [vmem:[#allocation2 + $0x34] sm:$0xf] %vm1676, %v1906
        %1939 = vst.msk [vmem:[#allocation2 + $0x3c] sm:$0xf] %vm1676, %v1907
        %1940 = vst.msk [vmem:[#allocation2 + $0x44] sm:$0xf] %vm1676, %v1908
        %1941 = vst.msk [vmem:[#allocation2 + $0x4c] sm:$0xf] %vm1676, %v1909
        %1942 = vst.msk [vmem:[#allocation2 + $0x54] sm:$0xf] %vm1676, %v1910
        %1943 = vst.msk [vmem:[#allocation2 + $0x5c] sm:$0xf] %vm1676, %v1911
        %1944 = vst.msk [vmem:[#allocation2 + $0x64] sm:$0xf] %vm1676, %v1912
        %1945 = vst.msk [vmem:[#allocation2 + $0x6c] sm:$0xf] %vm1676, %v1913
        %1946 = vst.msk [vmem:[#allocation2 + $0x74] sm:$0xf] %vm1676, %v1914
        %1947 = vst.msk [vmem:[#allocation2 + $0x7c] sm:$0xf] %vm1676, %v1915
        %1948 = vst.msk [vmem:[#allocation2 + $0x84] sm:$0xf] %vm1676, %v1916
        %1949 = vst.msk [vmem:[#allocation2 + $0x8c] sm:$0xf] %vm1676, %v1917
        %1950 = vst.msk [vmem:[#allocation2 + $0x94] sm:$0xf] %vm1676, %v1918
        %1951 = vst.msk [vmem:[#allocation2 + $0x9c] sm:$0xf] %vm1676, %v1919
        %1952 = vst.msk [vmem:[#allocation2 + $0xa4] sm:$0xf] %vm1676, %v1920
        %1953 = vst.msk [vmem:[#allocation2 + $0xac] sm:$0xf] %vm1676, %v1921
        %1954 = vst.msk [vmem:[#allocation2 + $0xb4] sm:$0xf] %vm1676, %v1922
        %1955 = vst.msk [vmem:[#allocation2 + $0xbc] sm:$0xf] %vm1676, %v1923
        %1956 = vst.msk [vmem:[#allocation2 + $0xc4] sm:$0xf] %vm1676, %v1924
        %1957 = vst.msk [vmem:[#allocation2 + $0xcc] sm:$0xf] %vm1676, %v1925
        %1958 = vst.msk [vmem:[#allocation2 + $0xd4] sm:$0xf] %vm1676, %v1926
        %1959 = vst.msk [vmem:[#allocation2 + $0xdc] sm:$0xf] %vm1676, %v1927
        %1960 = vst.msk [vmem:[#allocation2 + $0xe4] sm:$0xf] %vm1676, %v1928
        %1961 = vst.msk [vmem:[#allocation2 + $0xec] sm:$0xf] %vm1676, %v1929
        %1962 = vst.msk [vmem:[#allocation2 + $0xf4] sm:$0xf] %vm1676, %v1930
        %1963 = vst.msk [vmem:[#allocation2 + $0xfc] sm:$0xf] %vm1676, %v1931
        %1964 = vst.msk [vmem:[#allocation2 + $0x104] sm:$0xf] %vm1676, %v1932
        %1965 = vst.msk [vmem:[#allocation2 + $0x10c] sm:$0xf] %vm1676, %v1933
        %v1966 = vld [vmem:[#allocation2] sm:$0xff]
        %v1967 = vld [vmem:[#allocation2 + $0x8] sm:$0xff]
        %v1968 = vld [vmem:[#allocation2 + $0x10] sm:$0xff]
        %v1969 = vld [vmem:[#allocation2 + $0x18] sm:$0xff]
        %v1970 = vld [vmem:[#allocation2 + $0x20] sm:$0xff]
        %v1971 = vld [vmem:[#allocation2 + $0x28] sm:$0xff]
        %v1972 = vld [vmem:[#allocation2 + $0x30] sm:$0xff]
        %v1973 = vld [vmem:[#allocation2 + $0x38] sm:$0xff]
        %v1974 = vld [vmem:[#allocation2 + $0x40] sm:$0xff]
        %v1975 = vld [vmem:[#allocation2 + $0x48] sm:$0xff]
        %v1976 = vld [vmem:[#allocation2 + $0x50] sm:$0xff]
        %v1977 = vld [vmem:[#allocation2 + $0x58] sm:$0xff]
        %v1978 = vld [vmem:[#allocation2 + $0x60] sm:$0xff]
        %v1979 = vld [vmem:[#allocation2 + $0x68] sm:$0xff]
        %v1980 = vld [vmem:[#allocation2 + $0x70] sm:$0xff]
        %v1981 = vld [vmem:[#allocation2 + $0x78] sm:$0xff]
        %v1982 = vld [vmem:[#allocation2 + $0x80] sm:$0xff]
        %v1983 = vld [vmem:[#allocation2 + $0x88] sm:$0xff]
        %v1984 = vld [vmem:[#allocation2 + $0x90] sm:$0xff]
        %v1985 = vld [vmem:[#allocation2 + $0x98] sm:$0xff]
        %v1986 = vld [vmem:[#allocation2 + $0xa0] sm:$0xff]
        %v1987 = vld [vmem:[#allocation2 + $0xa8] sm:$0xff]
        %v1988 = vld [vmem:[#allocation2 + $0xb0] sm:$0xff]
        %v1989 = vld [vmem:[#allocation2 + $0xb8] sm:$0xff]
        %v1990 = vld [vmem:[#allocation2 + $0xc0] sm:$0xff]
        %v1991 = vld [vmem:[#allocation2 + $0xc8] sm:$0xff]
        %v1992 = vld [vmem:[#allocation2 + $0xd0] sm:$0xff]
        %v1993 = vld [vmem:[#allocation2 + $0xd8] sm:$0xff]
        %v1994 = vld [vmem:[#allocation2 + $0xe0] sm:$0xff]
        %v1995 = vld [vmem:[#allocation2 + $0xe8] sm:$0xff]
        %v1996 = vld [vmem:[#allocation2 + $0xf0] sm:$0xff]
        %v1997 = vld [vmem:[#allocation2 + $0xf8] sm:$0xff]
        %v1998 = vld [vmem:[%s3] sm:$0xf]
        %v1999 = vld [vmem:[%s3 + $0x4] sm:$0xf]
        %v2000 = vld [vmem:[%s3 + $0x8] sm:$0xf]
        %v2001 = vld [vmem:[%s3 + $0xc] sm:$0xf]
        %v2002 = vld [vmem:[%s3 + $0x10] sm:$0xf]
        %v2003 = vld [vmem:[%s3 + $0x14] sm:$0xf]
        %v2004 = vld [vmem:[%s3 + $0x18] sm:$0xf]
        %v2005 = vld [vmem:[%s3 + $0x1c] sm:$0xf]
        %v2006 = vld [vmem:[%s3 + $0x20] sm:$0xf]
        %v2007 = vld [vmem:[%s3 + $0x24] sm:$0xf]
        %v2008 = vld [vmem:[%s3 + $0x28] sm:$0xf]
        %v2009 = vld [vmem:[%s3 + $0x2c] sm:$0xf]
        %v2010 = vld [vmem:[%s3 + $0x30] sm:$0xf]
        %v2011 = vld [vmem:[%s3 + $0x34] sm:$0xf]
        %v2012 = vld [vmem:[%s3 + $0x38] sm:$0xf]
        %v2013 = vld [vmem:[%s3 + $0x3c] sm:$0xf]
        %v2014 = vld [vmem:[%s3 + $0x40] sm:$0xf]
        %v2015 = vld [vmem:[%s3 + $0x44] sm:$0xf]
        %v2016 = vld [vmem:[%s3 + $0x48] sm:$0xf]
        %v2017 = vld [vmem:[%s3 + $0x4c] sm:$0xf]
        %v2018 = vld [vmem:[%s3 + $0x50] sm:$0xf]
        %v2019 = vld [vmem:[%s3 + $0x54] sm:$0xf]
        %v2020 = vld [vmem:[%s3 + $0x58] sm:$0xf]
        %v2021 = vld [vmem:[%s3 + $0x5c] sm:$0xf]
        %v2022 = vld [vmem:[#allocation2 + $0x100] sm:$0xff]
        %v2023 = vld [vmem:[#allocation2 + $0x108] sm:$0xff]
        %s2024 = scalar_lea.vmem %s3, 96
        %v2025 = vld [vmem:[%s2024] sm:$0xf]
        %v2026 = vld [vmem:[%s2024 + $0x4] sm:$0xf]
        %v2027 = vld [vmem:[%s2024 + $0x8] sm:$0xf]
        %v2028 = vld [vmem:[%s2024 + $0xc] sm:$0xf]
        %v2029 = vld [vmem:[%s2024 + $0x10] sm:$0xf]
        %v2030 = vld [vmem:[%s2024 + $0x14] sm:$0xf]
        %v2031 = vld [vmem:[%s2024 + $0x18] sm:$0xf]
        %v2032 = vld [vmem:[%s2024 + $0x1c] sm:$0xf]
        %v2033 = vld [vmem:[%s2024 + $0x20] sm:$0xf]
        %v2034 = vld [vmem:[%s2024 + $0x24] sm:$0xf]
        %v2035 = vld [vmem:[%s2024 + $0x28] sm:$0xf]
        %v2036 = vld [vmem:[%s2024 + $0x2c] sm:$0xf]
        %v2037 = vld [vmem:[%s2024 + $0x30] sm:$0xf]
        %v2038 = vld [vmem:[%s2024 + $0x34] sm:$0xf]
        %v2039 = vld [vmem:[%s2024 + $0x38] sm:$0xf]
        %v2040 = vld [vmem:[%s2024 + $0x3c] sm:$0xf]
        %v2041 = vld [vmem:[%s2024 + $0x40] sm:$0xf]
        %v2042 = vld [vmem:[%s2024 + $0x44] sm:$0xf]
        %v2043 = vld [vmem:[%s2024 + $0x48] sm:$0xf]
        %v2044 = vld [vmem:[%s2024 + $0x4c] sm:$0xf]
        %v2045 = vld [vmem:[%s2024 + $0x50] sm:$0xf]
        %v2046 = vld [vmem:[%s2024 + $0x54] sm:$0xf]
        %v2047 = vld [vmem:[%s2024 + $0x58] sm:$0xf]
        %v2048 = vld [vmem:[%s2024 + $0x5c] sm:$0xf]
        %v2081 = vunpack.c.l.b16 %v1968
        %v2082 = vunpack.c.h.b16 %v1968
        %v2083 = vunpack.c.l.b16 %v1969
        %v2084 = vunpack.c.h.b16 %v1969
        %v2085 = vunpack.c.l.b16 %v1970
        %v2086 = vunpack.c.h.b16 %v1970
        %v2087 = vunpack.c.l.b16 %v1971
        %v2088 = vunpack.c.h.b16 %v1971
        %v2089 = vunpack.c.l.b16 %v1972
        %v2090 = vunpack.c.h.b16 %v1972
        %v2091 = vunpack.c.l.b16 %v1973
        %v2092 = vunpack.c.h.b16 %v1973
        %v2093 = vunpack.c.l.b16 %v1974
        %v2094 = vunpack.c.h.b16 %v1974
        %v2095 = vunpack.c.l.b16 %v1975
        %v2096 = vunpack.c.h.b16 %v1975
        %v2097 = vunpack.c.l.b16 %v1976
        %v2098 = vunpack.c.h.b16 %v1976
        %v2099 = vunpack.c.l.b16 %v1977
        %v2100 = vunpack.c.h.b16 %v1977
        %v2101 = vunpack.c.l.b16 %v1978
        %v2102 = vunpack.c.h.b16 %v1978
        %v2103 = vunpack.c.l.b16 %v1979
        %v2104 = vunpack.c.h.b16 %v1979
        %v2105 = vunpack.c.l.b16 %v1980
        %v2106 = vunpack.c.h.b16 %v1980
        %v2107 = vunpack.c.l.b16 %v1981
        %v2108 = vunpack.c.h.b16 %v1981
        %v2109 = vunpack.c.l.b16 %v1982
        %v2110 = vunpack.c.h.b16 %v1982
        %v2111 = vunpack.c.l.b16 %v1983
        %v2112 = vunpack.c.h.b16 %v1983
        %v2113 = vunpack.c.l.b16 %v1984
        %v2114 = vunpack.c.h.b16 %v1984
        %v2115 = vunpack.c.l.b16 %v1985
        %v2116 = vunpack.c.h.b16 %v1985
        %v2117 = vunpack.c.l.b16 %v1986
        %v2118 = vunpack.c.h.b16 %v1986
        %v2119 = vunpack.c.l.b16 %v1987
        %v2120 = vunpack.c.h.b16 %v1987
        %v2121 = vunpack.c.l.b16 %v1988
        %v2122 = vunpack.c.h.b16 %v1988
        %v2123 = vunpack.c.l.b16 %v1989
        %v2124 = vunpack.c.h.b16 %v1989
        %v2125 = vunpack.c.l.b16 %v1990
        %v2126 = vunpack.c.h.b16 %v1990
        %v2127 = vunpack.c.l.b16 %v1991
        %v2128 = vunpack.c.h.b16 %v1991
        %v2129 = vunpack.c.l.b16 %v1992
        %v2130 = vunpack.c.h.b16 %v1992
        %v2131 = vunpack.c.l.b16 %v1993
        %v2132 = vunpack.c.h.b16 %v1993
        %v2133 = vunpack.c.l.b16 %v1994
        %v2134 = vunpack.c.h.b16 %v1994
        %v2135 = vunpack.c.l.b16 %v1995
        %v2136 = vunpack.c.h.b16 %v1995
        %v2137 = vunpack.c.l.b16 %v1996
        %v2138 = vunpack.c.h.b16 %v1996
        %v2139 = vunpack.c.l.b16 %v1997
        %v2140 = vunpack.c.h.b16 %v1997
        %v2141 = vunpack.c.l.b16 %v2022
        %v2142 = vunpack.c.h.b16 %v2022
        %v2143 = vunpack.c.l.b16 %v2023
        %v2144 = vunpack.c.h.b16 %v2023
        %v2145 = vpack.c.b16 %v2083, %v2081
        %v2146 = vpack.c.b16 %v2084, %v2082
        %v2147 = vpack.c.b16 %v2087, %v2085
        %v2148 = vpack.c.b16 %v2088, %v2086
        %v2149 = vpack.c.b16 %v2091, %v2089
        %v2150 = vpack.c.b16 %v2092, %v2090
        %v2151 = vpack.c.b16 %v2095, %v2093
        %v2152 = vpack.c.b16 %v2096, %v2094
        %v2153 = vpack.c.b16 %v2099, %v2097
        %v2154 = vpack.c.b16 %v2100, %v2098
        %v2155 = vpack.c.b16 %v2103, %v2101
        %v2156 = vpack.c.b16 %v2104, %v2102
        %v2157 = vpack.c.b16 %v2107, %v2105
        %v2158 = vpack.c.b16 %v2108, %v2106
        %v2159 = vpack.c.b16 %v2111, %v2109
        %v2160 = vpack.c.b16 %v2112, %v2110
        %v2161 = vpack.c.b16 %v2115, %v2113
        %v2162 = vpack.c.b16 %v2116, %v2114
        %v2163 = vpack.c.b16 %v2119, %v2117
        %v2164 = vpack.c.b16 %v2120, %v2118
        %v2165 = vpack.c.b16 %v2123, %v2121
        %v2166 = vpack.c.b16 %v2124, %v2122
        %v2167 = vpack.c.b16 %v2127, %v2125
        %v2168 = vpack.c.b16 %v2128, %v2126
        %v2169 = vpack.c.b16 %v2131, %v2129
        %v2170 = vpack.c.b16 %v2132, %v2130
        %v2171 = vpack.c.b16 %v2135, %v2133
        %v2172 = vpack.c.b16 %v2136, %v2134
        %v2173 = vpack.c.b16 %v2139, %v2137
        %v2174 = vpack.c.b16 %v2140, %v2138
        %v2175 = vpack.c.b16 %v2143, %v2141
        %v2176 = vpack.c.b16 %v2144, %v2142
        %v2217 = vunpack.c.l.b16 %v2025
        %v2218 = vunpack.c.l.b16 %v2026
        %v2219 = vunpack.c.l.b16 %v2027
        %v2220 = vunpack.c.l.b16 %v2028
        %v2221 = vunpack.c.l.b16 %v2029
        %v2222 = vunpack.c.l.b16 %v2030
        %v2223 = vunpack.c.l.b16 %v2031
        %v2224 = vunpack.c.l.b16 %v2032
        %v2225 = vunpack.c.l.b16 %v2033
        %v2226 = vunpack.c.l.b16 %v2034
        %v2227 = vunpack.c.l.b16 %v2035
        %v2228 = vunpack.c.l.b16 %v2036
        %v2229 = vunpack.c.l.b16 %v2037
        %v2230 = vunpack.c.l.b16 %v2038
        %v2231 = vunpack.c.l.b16 %v2039
        %v2232 = vunpack.c.l.b16 %v2040
        %v2233 = vunpack.c.l.b16 %v2041
        %v2234 = vunpack.c.l.b16 %v2042
        %v2235 = vunpack.c.l.b16 %v2043
        %v2236 = vunpack.c.l.b16 %v2044
        %v2237 = vunpack.c.l.b16 %v2045
        %v2238 = vunpack.c.l.b16 %v2046
        %v2239 = vunpack.c.l.b16 %v2047
        %v2240 = vunpack.c.l.b16 %v2048
        %v2241 = vpack.c.b16 %v2218, %v2217
        %v2242 = vpack.c.b16 %v2220, %v2219
        %v2243 = vpack.c.b16 %v2222, %v2221
        %v2244 = vpack.c.b16 %v2224, %v2223
        %v2245 = vpack.c.b16 %v2226, %v2225
        %v2246 = vpack.c.b16 %v2228, %v2227
        %v2247 = vpack.c.b16 %v2230, %v2229
        %v2248 = vpack.c.b16 %v2232, %v2231
        %v2249 = vpack.c.b16 %v2234, %v2233
        %v2250 = vpack.c.b16 %v2236, %v2235
        %v2251 = vpack.c.b16 %v2238, %v2237
        %v2252 = vpack.c.b16 %v2240, %v2239
        %vm2265 = vcmask 523264
        %v2267 = vsel %vm2265, %v2146, 0
        %v2270 = vsel %vm2265, %v2148, 0
        %v2273 = vsel %vm2265, %v2150, 0
        %v2276 = vsel %vm2265, %v2152, 0
        %v2279 = vsel %vm2265, %v2154, 0
        %v2282 = vsel %vm2265, %v2156, 0
        %v2285 = vsel %vm2265, %v2158, 0
        %v2288 = vsel %vm2265, %v2160, 0
        %v2291 = vsel %vm2265, %v2162, 0
        %v2294 = vsel %vm2265, %v2164, 0
        %v2297 = vsel %vm2265, %v2166, 0
        %v2300 = vsel %vm2265, %v2168, 0
        %v2303 = vsel %vm2265, %v2170, 0
        %v2306 = vsel %vm2265, %v2172, 0
        %v2309 = vsel %vm2265, %v2174, 0
        %v2312 = vsel %vm2265, %v2176, 0
        %2314 = vmatpush.bf16.msra.mxu0 %v2248
        %2315 = vmatpush.bf16.msra.mxu0 %v2247
        %2316 = vmatpush.bf16.msra.mxu0 %v2246
        %2317 = vmatpush.bf16.msra.mxu0 %v2245
        %2318 = vmatpush.bf16.msra.mxu0 %v2244
        %2319 = vmatpush.bf16.msra.mxu0 %v2243
        %2320 = vmatpush.bf16.msra.mxu0 %v2242
        %2321 = vmatpush.bf16.msra.mxu0 %v2241
        %2322 = vmatmul.bf16.gmra.mxu0 %v2145
        %v2323 = vpop.f32.mrf.mxu0
        %v2324 = vadd.f32 0.0, %v2323
        %v2325 = vpop.f32.mrf.mxu0
        %v2326 = vadd.f32 0.0, %v2325
        %2327 = vmatmul.bf16.gmra.mxu0 %v2147
        %v2328 = vpop.f32.mrf.mxu0
        %v2329 = vadd.f32 0.0, %v2328
        %v2330 = vpop.f32.mrf.mxu0
        %v2331 = vadd.f32 0.0, %v2330
        %2332 = vmatmul.bf16.gmra.mxu0 %v2149
        %v2333 = vpop.f32.mrf.mxu0
        %v2334 = vadd.f32 0.0, %v2333
        %v2335 = vpop.f32.mrf.mxu0
        %v2336 = vadd.f32 0.0, %v2335
        %2337 = vmatmul.bf16.gmra.mxu0 %v2151
        %v2338 = vpop.f32.mrf.mxu0
        %v2339 = vadd.f32 0.0, %v2338
        %v2340 = vpop.f32.mrf.mxu0
        %v2341 = vadd.f32 0.0, %v2340
        %2342 = vmatmul.bf16.gmra.mxu0 %v2153
        %v2343 = vpop.f32.mrf.mxu0
        %v2344 = vadd.f32 0.0, %v2343
        %v2345 = vpop.f32.mrf.mxu0
        %v2346 = vadd.f32 0.0, %v2345
        %2347 = vmatmul.bf16.gmra.mxu0 %v2155
        %v2348 = vpop.f32.mrf.mxu0
        %v2349 = vadd.f32 0.0, %v2348
        %v2350 = vpop.f32.mrf.mxu0
        %v2351 = vadd.f32 0.0, %v2350
        %2352 = vmatmul.bf16.gmra.mxu0 %v2157
        %v2353 = vpop.f32.mrf.mxu0
        %v2354 = vadd.f32 0.0, %v2353
        %v2355 = vpop.f32.mrf.mxu0
        %v2356 = vadd.f32 0.0, %v2355
        %2357 = vmatmul.bf16.gmra.mxu0 %v2159
        %v2358 = vpop.f32.mrf.mxu0
        %v2359 = vadd.f32 0.0, %v2358
        %v2360 = vpop.f32.mrf.mxu0
        %v2361 = vadd.f32 0.0, %v2360
        %2362 = vmatmul.bf16.gmra.mxu0 %v2161
        %v2363 = vpop.f32.mrf.mxu0
        %v2364 = vadd.f32 0.0, %v2363
        %v2365 = vpop.f32.mrf.mxu0
        %v2366 = vadd.f32 0.0, %v2365
        %2367 = vmatmul.bf16.gmra.mxu0 %v2163
        %v2368 = vpop.f32.mrf.mxu0
        %v2369 = vadd.f32 0.0, %v2368
        %v2370 = vpop.f32.mrf.mxu0
        %v2371 = vadd.f32 0.0, %v2370
        %2372 = vmatmul.bf16.gmra.mxu0 %v2165
        %v2373 = vpop.f32.mrf.mxu0
        %v2374 = vadd.f32 0.0, %v2373
        %v2375 = vpop.f32.mrf.mxu0
        %v2376 = vadd.f32 0.0, %v2375
        %2377 = vmatmul.bf16.gmra.mxu0 %v2167
        %v2378 = vpop.f32.mrf.mxu0
        %v2379 = vadd.f32 0.0, %v2378
        %v2380 = vpop.f32.mrf.mxu0
        %v2381 = vadd.f32 0.0, %v2380
        %2382 = vmatmul.bf16.gmra.mxu0 %v2169
        %v2383 = vpop.f32.mrf.mxu0
        %v2384 = vadd.f32 0.0, %v2383
        %v2385 = vpop.f32.mrf.mxu0
        %v2386 = vadd.f32 0.0, %v2385
        %2387 = vmatmul.bf16.gmra.mxu0 %v2171
        %v2388 = vpop.f32.mrf.mxu0
        %v2389 = vadd.f32 0.0, %v2388
        %v2390 = vpop.f32.mrf.mxu0
        %v2391 = vadd.f32 0.0, %v2390
        %2392 = vmatmul.bf16.gmra.mxu0 %v2173
        %v2393 = vpop.f32.mrf.mxu0
        %v2394 = vadd.f32 0.0, %v2393
        %v2395 = vpop.f32.mrf.mxu0
        %v2396 = vadd.f32 0.0, %v2395
        %2397 = vmatmul.bf16.gmra.mxu0 %v2175
        %v2398 = vpop.f32.mrf.mxu0
        %v2399 = vadd.f32 0.0, %v2398
        %v2400 = vpop.f32.mrf.mxu0
        %v2401 = vadd.f32 0.0, %v2400
        %2402 = vdwg.mxu0
        %2403 = vmatpush.bf16.msra.mxu0 0
        %2404 = vmatpush.bf16.msra.mxu0 0
        %2405 = vmatpush.bf16.msra.mxu0 0
        %2406 = vmatpush.bf16.msra.mxu0 0
        %2407 = vmatpush.bf16.msra.mxu0 %v2252
        %2408 = vmatpush.bf16.msra.mxu0 %v2251
        %2409 = vmatpush.bf16.msra.mxu0 %v2250
        %2410 = vmatpush.bf16.msra.mxu0 %v2249
        %2411 = vmatmul.bf16.gmra.mxu0 %v2267
        %v2412 = vpop.f32.mrf.mxu0
        %v2413 = vadd.f32 %v2324, %v2412
        %v2414 = vpop.f32.mrf.mxu0
        %v2415 = vadd.f32 %v2326, %v2414
        %2416 = vmatmul.bf16.gmra.mxu0 %v2270
        %v2417 = vpop.f32.mrf.mxu0
        %v2418 = vadd.f32 %v2329, %v2417
        %v2419 = vpop.f32.mrf.mxu0
        %v2420 = vadd.f32 %v2331, %v2419
        %2421 = vmatmul.bf16.gmra.mxu0 %v2273
        %v2422 = vpop.f32.mrf.mxu0
        %v2423 = vadd.f32 %v2334, %v2422
        %v2424 = vpop.f32.mrf.mxu0
        %v2425 = vadd.f32 %v2336, %v2424
        %2426 = vmatmul.bf16.gmra.mxu0 %v2276
        %v2427 = vpop.f32.mrf.mxu0
        %v2428 = vadd.f32 %v2339, %v2427
        %v2429 = vpop.f32.mrf.mxu0
        %v2430 = vadd.f32 %v2341, %v2429
        %2431 = vmatmul.bf16.gmra.mxu0 %v2279
        %v2432 = vpop.f32.mrf.mxu0
        %v2433 = vadd.f32 %v2344, %v2432
        %v2434 = vpop.f32.mrf.mxu0
        %v2435 = vadd.f32 %v2346, %v2434
        %2436 = vmatmul.bf16.gmra.mxu0 %v2282
        %v2437 = vpop.f32.mrf.mxu0
        %v2438 = vadd.f32 %v2349, %v2437
        %v2439 = vpop.f32.mrf.mxu0
        %v2440 = vadd.f32 %v2351, %v2439
        %2441 = vmatmul.bf16.gmra.mxu0 %v2285
        %v2442 = vpop.f32.mrf.mxu0
        %v2443 = vadd.f32 %v2354, %v2442
        %v2444 = vpop.f32.mrf.mxu0
        %v2445 = vadd.f32 %v2356, %v2444
        %2446 = vmatmul.bf16.gmra.mxu0 %v2288
        %v2447 = vpop.f32.mrf.mxu0
        %v2448 = vadd.f32 %v2359, %v2447
        %v2449 = vpop.f32.mrf.mxu0
        %v2450 = vadd.f32 %v2361, %v2449
        %2451 = vmatmul.bf16.gmra.mxu0 %v2291
        %v2452 = vpop.f32.mrf.mxu0
        %v2453 = vadd.f32 %v2364, %v2452
        %v2454 = vpop.f32.mrf.mxu0
        %v2455 = vadd.f32 %v2366, %v2454
        %2456 = vmatmul.bf16.gmra.mxu0 %v2294
        %v2457 = vpop.f32.mrf.mxu0
        %v2458 = vadd.f32 %v2369, %v2457
        %v2459 = vpop.f32.mrf.mxu0
        %v2460 = vadd.f32 %v2371, %v2459
        %2461 = vmatmul.bf16.gmra.mxu0 %v2297
        %v2462 = vpop.f32.mrf.mxu0
        %v2463 = vadd.f32 %v2374, %v2462
        %v2464 = vpop.f32.mrf.mxu0
        %v2465 = vadd.f32 %v2376, %v2464
        %2466 = vmatmul.bf16.gmra.mxu0 %v2300
        %v2467 = vpop.f32.mrf.mxu0
        %v2468 = vadd.f32 %v2379, %v2467
        %v2469 = vpop.f32.mrf.mxu0
        %v2470 = vadd.f32 %v2381, %v2469
        %2471 = vmatmul.bf16.gmra.mxu0 %v2303
        %v2472 = vpop.f32.mrf.mxu0
        %v2473 = vadd.f32 %v2384, %v2472
        %v2474 = vpop.f32.mrf.mxu0
        %v2475 = vadd.f32 %v2386, %v2474
        %2476 = vmatmul.bf16.gmra.mxu0 %v2306
        %v2477 = vpop.f32.mrf.mxu0
        %v2478 = vadd.f32 %v2389, %v2477
        %v2479 = vpop.f32.mrf.mxu0
        %v2480 = vadd.f32 %v2391, %v2479
        %2481 = vmatmul.bf16.gmra.mxu0 %v2309
        %v2482 = vpop.f32.mrf.mxu0
        %v2483 = vadd.f32 %v2394, %v2482
        %v2484 = vpop.f32.mrf.mxu0
        %v2485 = vadd.f32 %v2396, %v2484
        %2486 = vmatmul.bf16.gmra.mxu0 %v2312
        %v2487 = vpop.f32.mrf.mxu0
        %v2488 = vadd.f32 %v2399, %v2487
        %v2489 = vpop.f32.mrf.mxu0
        %v2490 = vadd.f32 %v2401, %v2489
        %2491 = vdwg.mxu0
        %v2494 = vunpack.c.l.b16 %v1966
        %v2495 = vunpack.c.h.b16 %v1966
        %v2496 = vunpack.c.l.b16 %v1967
        %v2497 = vunpack.c.h.b16 %v1967
        %v2498 = vpack.c.b16 %v2496, %v2494
        %v2499 = vpack.c.b16 %v2497, %v2495
        %v2525 = vunpack.c.l.b16 %v1998
        %v2526 = vunpack.c.l.b16 %v1999
        %v2527 = vunpack.c.l.b16 %v2000
        %v2528 = vunpack.c.l.b16 %v2001
        %v2529 = vunpack.c.l.b16 %v2002
        %v2530 = vunpack.c.l.b16 %v2003
        %v2531 = vunpack.c.l.b16 %v2004
        %v2532 = vunpack.c.l.b16 %v2005
        %v2533 = vunpack.c.l.b16 %v2006
        %v2534 = vunpack.c.l.b16 %v2007
        %v2535 = vunpack.c.l.b16 %v2008
        %v2536 = vunpack.c.l.b16 %v2009
        %v2537 = vunpack.c.l.b16 %v2010
        %v2538 = vunpack.c.l.b16 %v2011
        %v2539 = vunpack.c.l.b16 %v2012
        %v2540 = vunpack.c.l.b16 %v2013
        %v2541 = vunpack.c.l.b16 %v2014
        %v2542 = vunpack.c.l.b16 %v2015
        %v2543 = vunpack.c.l.b16 %v2016
        %v2544 = vunpack.c.l.b16 %v2017
        %v2545 = vunpack.c.l.b16 %v2018
        %v2546 = vunpack.c.l.b16 %v2019
        %v2547 = vunpack.c.l.b16 %v2020
        %v2548 = vunpack.c.l.b16 %v2021
        %v2549 = vpack.c.b16 %v2526, %v2525
        %v2550 = vpack.c.b16 %v2528, %v2527
        %v2551 = vpack.c.b16 %v2530, %v2529
        %v2552 = vpack.c.b16 %v2532, %v2531
        %v2553 = vpack.c.b16 %v2534, %v2533
        %v2554 = vpack.c.b16 %v2536, %v2535
        %v2555 = vpack.c.b16 %v2538, %v2537
        %v2556 = vpack.c.b16 %v2540, %v2539
        %v2557 = vpack.c.b16 %v2542, %v2541
        %v2558 = vpack.c.b16 %v2544, %v2543
        %v2559 = vpack.c.b16 %v2546, %v2545
        %v2560 = vpack.c.b16 %v2548, %v2547
        %v2574 = vsel %vm2265, %v2499, 0
        %2576 = vmatpush.bf16.msra.mxu0 %v2556
        %2577 = vmatpush.bf16.msra.mxu0 %v2555
        %2578 = vmatpush.bf16.msra.mxu0 %v2554
        %2579 = vmatpush.bf16.msra.mxu0 %v2553
        %2580 = vmatpush.bf16.msra.mxu0 %v2552
        %2581 = vmatpush.bf16.msra.mxu0 %v2551
        %2582 = vmatpush.bf16.msra.mxu0 %v2550
        %2583 = vmatpush.bf16.msra.mxu0 %v2549
        %2584 = vmatmul.bf16.gmra.mxu0 %v2498
        %v2585 = vpop.f32.mrf.mxu0
        %v2586 = vadd.f32 %v2413, %v2585
        %v2587 = vpop.f32.mrf.mxu0
        %v2588 = vadd.f32 %v2415, %v2587
        %2589 = vmatmul.bf16.gmra.mxu0 %v2145
        %v2590 = vpop.f32.mrf.mxu0
        %v2591 = vadd.f32 %v2418, %v2590
        %v2592 = vpop.f32.mrf.mxu0
        %v2593 = vadd.f32 %v2420, %v2592
        %2594 = vmatmul.bf16.gmra.mxu0 %v2147
        %v2595 = vpop.f32.mrf.mxu0
        %v2596 = vadd.f32 %v2423, %v2595
        %v2597 = vpop.f32.mrf.mxu0
        %v2598 = vadd.f32 %v2425, %v2597
        %2599 = vmatmul.bf16.gmra.mxu0 %v2149
        %v2600 = vpop.f32.mrf.mxu0
        %v2601 = vadd.f32 %v2428, %v2600
        %v2602 = vpop.f32.mrf.mxu0
        %v2603 = vadd.f32 %v2430, %v2602
        %2604 = vmatmul.bf16.gmra.mxu0 %v2151
        %v2605 = vpop.f32.mrf.mxu0
        %v2606 = vadd.f32 %v2433, %v2605
        %v2607 = vpop.f32.mrf.mxu0
        %v2608 = vadd.f32 %v2435, %v2607
        %2609 = vmatmul.bf16.gmra.mxu0 %v2153
        %v2610 = vpop.f32.mrf.mxu0
        %v2611 = vadd.f32 %v2438, %v2610
        %v2612 = vpop.f32.mrf.mxu0
        %v2613 = vadd.f32 %v2440, %v2612
        %2614 = vmatmul.bf16.gmra.mxu0 %v2155
        %v2615 = vpop.f32.mrf.mxu0
        %v2616 = vadd.f32 %v2443, %v2615
        %v2617 = vpop.f32.mrf.mxu0
        %v2618 = vadd.f32 %v2445, %v2617
        %2619 = vmatmul.bf16.gmra.mxu0 %v2157
        %v2620 = vpop.f32.mrf.mxu0
        %v2621 = vadd.f32 %v2448, %v2620
        %v2622 = vpop.f32.mrf.mxu0
        %v2623 = vadd.f32 %v2450, %v2622
        %2624 = vmatmul.bf16.gmra.mxu0 %v2159
        %v2625 = vpop.f32.mrf.mxu0
        %v2626 = vadd.f32 %v2453, %v2625
        %v2627 = vpop.f32.mrf.mxu0
        %v2628 = vadd.f32 %v2455, %v2627
        %2629 = vmatmul.bf16.gmra.mxu0 %v2161
        %v2630 = vpop.f32.mrf.mxu0
        %v2631 = vadd.f32 %v2458, %v2630
        %v2632 = vpop.f32.mrf.mxu0
        %v2633 = vadd.f32 %v2460, %v2632
        %2634 = vmatmul.bf16.gmra.mxu0 %v2163
        %v2635 = vpop.f32.mrf.mxu0
        %v2636 = vadd.f32 %v2463, %v2635
        %v2637 = vpop.f32.mrf.mxu0
        %v2638 = vadd.f32 %v2465, %v2637
        %2639 = vmatmul.bf16.gmra.mxu0 %v2165
        %v2640 = vpop.f32.mrf.mxu0
        %v2641 = vadd.f32 %v2468, %v2640
        %v2642 = vpop.f32.mrf.mxu0
        %v2643 = vadd.f32 %v2470, %v2642
        %2644 = vmatmul.bf16.gmra.mxu0 %v2167
        %v2645 = vpop.f32.mrf.mxu0
        %v2646 = vadd.f32 %v2473, %v2645
        %v2647 = vpop.f32.mrf.mxu0
        %v2648 = vadd.f32 %v2475, %v2647
        %2649 = vmatmul.bf16.gmra.mxu0 %v2169
        %v2650 = vpop.f32.mrf.mxu0
        %v2651 = vadd.f32 %v2478, %v2650
        %v2652 = vpop.f32.mrf.mxu0
        %v2653 = vadd.f32 %v2480, %v2652
        %2654 = vmatmul.bf16.gmra.mxu0 %v2171
        %v2655 = vpop.f32.mrf.mxu0
        %v2656 = vadd.f32 %v2483, %v2655
        %v2657 = vpop.f32.mrf.mxu0
        %v2658 = vadd.f32 %v2485, %v2657
        %2659 = vmatmul.bf16.gmra.mxu0 %v2173
        %v2660 = vpop.f32.mrf.mxu0
        %v2661 = vadd.f32 %v2488, %v2660
        %v2662 = vpop.f32.mrf.mxu0
        %v2663 = vadd.f32 %v2490, %v2662
        %2664 = vdwg.mxu0
        %2665 = vmatpush.bf16.msra.mxu0 0
        %2666 = vmatpush.bf16.msra.mxu0 0
        %2667 = vmatpush.bf16.msra.mxu0 0
        %2668 = vmatpush.bf16.msra.mxu0 0
        %2669 = vmatpush.bf16.msra.mxu0 %v2560
        %2670 = vmatpush.bf16.msra.mxu0 %v2559
        %2671 = vmatpush.bf16.msra.mxu0 %v2558
        %2672 = vmatpush.bf16.msra.mxu0 %v2557
        %2673 = vmatmul.bf16.gmra.mxu0 %v2574
        %v2674 = vpop.f32.mrf.mxu0
        %v2675 = vadd.f32 %v2586, %v2674
        %v2676 = vpop.f32.mrf.mxu0
        %v2677 = vadd.f32 %v2588, %v2676
        %2678 = vmatmul.bf16.gmra.mxu0 %v2267
        %v2679 = vpop.f32.mrf.mxu0
        %v2680 = vadd.f32 %v2591, %v2679
        %v2681 = vpop.f32.mrf.mxu0
        %v2682 = vadd.f32 %v2593, %v2681
        %2683 = vmatmul.bf16.gmra.mxu0 %v2270
        %v2684 = vpop.f32.mrf.mxu0
        %v2685 = vadd.f32 %v2596, %v2684
        %v2686 = vpop.f32.mrf.mxu0
        %v2687 = vadd.f32 %v2598, %v2686
        %2688 = vmatmul.bf16.gmra.mxu0 %v2273
        %v2689 = vpop.f32.mrf.mxu0
        %v2690 = vadd.f32 %v2601, %v2689
        %v2691 = vpop.f32.mrf.mxu0
        %v2692 = vadd.f32 %v2603, %v2691
        %2693 = vmatmul.bf16.gmra.mxu0 %v2276
        %v2694 = vpop.f32.mrf.mxu0
        %v2695 = vadd.f32 %v2606, %v2694
        %v2696 = vpop.f32.mrf.mxu0
        %v2697 = vadd.f32 %v2608, %v2696
        %2698 = vmatmul.bf16.gmra.mxu0 %v2279
        %v2699 = vpop.f32.mrf.mxu0
        %v2700 = vadd.f32 %v2611, %v2699
        %v2701 = vpop.f32.mrf.mxu0
        %v2702 = vadd.f32 %v2613, %v2701
        %2703 = vmatmul.bf16.gmra.mxu0 %v2282
        %v2704 = vpop.f32.mrf.mxu0
        %v2705 = vadd.f32 %v2616, %v2704
        %v2706 = vpop.f32.mrf.mxu0
        %v2707 = vadd.f32 %v2618, %v2706
        %2708 = vmatmul.bf16.gmra.mxu0 %v2285
        %v2709 = vpop.f32.mrf.mxu0
        %v2710 = vadd.f32 %v2621, %v2709
        %v2711 = vpop.f32.mrf.mxu0
        %v2712 = vadd.f32 %v2623, %v2711
        %2713 = vmatmul.bf16.gmra.mxu0 %v2288
        %v2714 = vpop.f32.mrf.mxu0
        %v2715 = vadd.f32 %v2626, %v2714
        %v2716 = vpop.f32.mrf.mxu0
        %v2717 = vadd.f32 %v2628, %v2716
        %2718 = vmatmul.bf16.gmra.mxu0 %v2291
        %v2719 = vpop.f32.mrf.mxu0
        %v2720 = vadd.f32 %v2631, %v2719
        %v2721 = vpop.f32.mrf.mxu0
        %v2722 = vadd.f32 %v2633, %v2721
        %2723 = vmatmul.bf16.gmra.mxu0 %v2294
        %v2724 = vpop.f32.mrf.mxu0
        %v2725 = vadd.f32 %v2636, %v2724
        %v2726 = vpop.f32.mrf.mxu0
        %v2727 = vadd.f32 %v2638, %v2726
        %2728 = vmatmul.bf16.gmra.mxu0 %v2297
        %v2729 = vpop.f32.mrf.mxu0
        %v2730 = vadd.f32 %v2641, %v2729
        %v2731 = vpop.f32.mrf.mxu0
        %v2732 = vadd.f32 %v2643, %v2731
        %2733 = vmatmul.bf16.gmra.mxu0 %v2300
        %v2734 = vpop.f32.mrf.mxu0
        %v2735 = vadd.f32 %v2646, %v2734
        %v2736 = vpop.f32.mrf.mxu0
        %v2737 = vadd.f32 %v2648, %v2736
        %2738 = vmatmul.bf16.gmra.mxu0 %v2303
        %v2739 = vpop.f32.mrf.mxu0
        %v2740 = vadd.f32 %v2651, %v2739
        %v2741 = vpop.f32.mrf.mxu0
        %v2742 = vadd.f32 %v2653, %v2741
        %2743 = vmatmul.bf16.gmra.mxu0 %v2306
        %v2744 = vpop.f32.mrf.mxu0
        %v2745 = vadd.f32 %v2656, %v2744
        %v2746 = vpop.f32.mrf.mxu0
        %v2747 = vadd.f32 %v2658, %v2746
        %2748 = vmatmul.bf16.gmra.mxu0 %v2309
        %v2749 = vpop.f32.mrf.mxu0
        %v2750 = vadd.f32 %v2661, %v2749
        %v2751 = vpop.f32.mrf.mxu0
        %v2752 = vadd.f32 %v2663, %v2751
        %2753 = vdwg.mxu0
        %v2754 = vld [vmem:[#allocation2 + $0x20] sm:$0xff]
        %v2755 = vld [vmem:[#allocation2 + $0x28] sm:$0xff]
        %v2756 = vld [vmem:[#allocation2 + $0x30] sm:$0xff]
        %v2757 = vld [vmem:[#allocation2 + $0x38] sm:$0xff]
        %v2758 = vld [vmem:[#allocation2 + $0x40] sm:$0xff]
        %v2759 = vld [vmem:[#allocation2 + $0x48] sm:$0xff]
        %v2760 = vld [vmem:[#allocation2 + $0x50] sm:$0xff]
        %v2761 = vld [vmem:[#allocation2 + $0x58] sm:$0xff]
        %v2762 = vld [vmem:[#allocation2 + $0x60] sm:$0xff]
        %v2763 = vld [vmem:[#allocation2 + $0x68] sm:$0xff]
        %v2764 = vld [vmem:[#allocation2 + $0x70] sm:$0xff]
        %v2765 = vld [vmem:[#allocation2 + $0x78] sm:$0xff]
        %v2766 = vld [vmem:[#allocation2 + $0x80] sm:$0xff]
        %v2767 = vld [vmem:[#allocation2 + $0x88] sm:$0xff]
        %v2768 = vld [vmem:[#allocation2 + $0x90] sm:$0xff]
        %v2769 = vld [vmem:[#allocation2 + $0x98] sm:$0xff]
        %v2770 = vld [vmem:[#allocation2 + $0xa0] sm:$0xff]
        %v2771 = vld [vmem:[#allocation2 + $0xa8] sm:$0xff]
        %v2772 = vld [vmem:[#allocation2 + $0xb0] sm:$0xff]
        %v2773 = vld [vmem:[#allocation2 + $0xb8] sm:$0xff]
        %v2774 = vld [vmem:[#allocation2 + $0xc0] sm:$0xff]
        %v2775 = vld [vmem:[#allocation2 + $0xc8] sm:$0xff]
        %v2776 = vld [vmem:[#allocation2 + $0xd0] sm:$0xff]
        %v2777 = vld [vmem:[#allocation2 + $0xd8] sm:$0xff]
        %v2778 = vld [vmem:[#allocation2 + $0xe0] sm:$0xff]
        %v2779 = vld [vmem:[#allocation2 + $0xe8] sm:$0xff]
        %v2780 = vld [vmem:[#allocation2 + $0xf0] sm:$0xff]
        %v2781 = vld [vmem:[#allocation2 + $0xf8] sm:$0xff]
        %v2782 = vld [vmem:[#allocation2 + $0x100] sm:$0xff]
        %v2783 = vld [vmem:[#allocation2 + $0x108] sm:$0xff]
        %v2784 = vld [vmem:[#allocation2 + $0x110] sm:$0xff]
        %v2785 = vld [vmem:[#allocation2 + $0x118] sm:$0xff]
        %s2786 = scalar_lea.vmem %s3, 192
        %v2787 = vld [vmem:[%s2786] sm:$0xf]
        %v2788 = vld [vmem:[%s2786 + $0x4] sm:$0xf]
        %v2789 = vld [vmem:[%s2786 + $0x8] sm:$0xf]
        %v2790 = vld [vmem:[%s2786 + $0xc] sm:$0xf]
        %v2791 = vld [vmem:[%s2786 + $0x10] sm:$0xf]
        %v2792 = vld [vmem:[%s2786 + $0x14] sm:$0xf]
        %v2793 = vld [vmem:[%s2786 + $0x18] sm:$0xf]
        %v2794 = vld [vmem:[%s2786 + $0x1c] sm:$0xf]
        %v2795 = vld [vmem:[%s2786 + $0x20] sm:$0xf]
        %v2796 = vld [vmem:[%s2786 + $0x24] sm:$0xf]
        %v2797 = vld [vmem:[%s2786 + $0x28] sm:$0xf]
        %v2798 = vld [vmem:[%s2786 + $0x2c] sm:$0xf]
        %v2799 = vld [vmem:[%s2786 + $0x30] sm:$0xf]
        %v2800 = vld [vmem:[%s2786 + $0x34] sm:$0xf]
        %v2801 = vld [vmem:[%s2786 + $0x38] sm:$0xf]
        %v2802 = vld [vmem:[%s2786 + $0x3c] sm:$0xf]
        %v2803 = vld [vmem:[%s2786 + $0x40] sm:$0xf]
        %v2804 = vld [vmem:[%s2786 + $0x44] sm:$0xf]
        %v2805 = vld [vmem:[%s2786 + $0x48] sm:$0xf]
        %v2806 = vld [vmem:[%s2786 + $0x4c] sm:$0xf]
        %v2807 = vld [vmem:[%s2786 + $0x50] sm:$0xf]
        %v2808 = vld [vmem:[%s2786 + $0x54] sm:$0xf]
        %v2809 = vld [vmem:[%s2786 + $0x58] sm:$0xf]
        %v2810 = vld [vmem:[%s2786 + $0x5c] sm:$0xf]
        %v2843 = vunpack.c.l.b16 %v2754
        %v2844 = vunpack.c.h.b16 %v2754
        %v2845 = vunpack.c.l.b16 %v2755
        %v2846 = vunpack.c.h.b16 %v2755
        %v2847 = vunpack.c.l.b16 %v2756
        %v2848 = vunpack.c.h.b16 %v2756
        %v2849 = vunpack.c.l.b16 %v2757
        %v2850 = vunpack.c.h.b16 %v2757
        %v2851 = vunpack.c.l.b16 %v2758
        %v2852 = vunpack.c.h.b16 %v2758
        %v2853 = vunpack.c.l.b16 %v2759
        %v2854 = vunpack.c.h.b16 %v2759
        %v2855 = vunpack.c.l.b16 %v2760
        %v2856 = vunpack.c.h.b16 %v2760
        %v2857 = vunpack.c.l.b16 %v2761
        %v2858 = vunpack.c.h.b16 %v2761
        %v2859 = vunpack.c.l.b16 %v2762
        %v2860 = vunpack.c.h.b16 %v2762
        %v2861 = vunpack.c.l.b16 %v2763
        %v2862 = vunpack.c.h.b16 %v2763
        %v2863 = vunpack.c.l.b16 %v2764
        %v2864 = vunpack.c.h.b16 %v2764
        %v2865 = vunpack.c.l.b16 %v2765
        %v2866 = vunpack.c.h.b16 %v2765
        %v2867 = vunpack.c.l.b16 %v2766
        %v2868 = vunpack.c.h.b16 %v2766
        %v2869 = vunpack.c.l.b16 %v2767
        %v2870 = vunpack.c.h.b16 %v2767
        %v2871 = vunpack.c.l.b16 %v2768
        %v2872 = vunpack.c.h.b16 %v2768
        %v2873 = vunpack.c.l.b16 %v2769
        %v2874 = vunpack.c.h.b16 %v2769
        %v2875 = vunpack.c.l.b16 %v2770
        %v2876 = vunpack.c.h.b16 %v2770
        %v2877 = vunpack.c.l.b16 %v2771
        %v2878 = vunpack.c.h.b16 %v2771
        %v2879 = vunpack.c.l.b16 %v2772
        %v2880 = vunpack.c.h.b16 %v2772
        %v2881 = vunpack.c.l.b16 %v2773
        %v2882 = vunpack.c.h.b16 %v2773
        %v2883 = vunpack.c.l.b16 %v2774
        %v2884 = vunpack.c.h.b16 %v2774
        %v2885 = vunpack.c.l.b16 %v2775
        %v2886 = vunpack.c.h.b16 %v2775
        %v2887 = vunpack.c.l.b16 %v2776
        %v2888 = vunpack.c.h.b16 %v2776
        %v2889 = vunpack.c.l.b16 %v2777
        %v2890 = vunpack.c.h.b16 %v2777
        %v2891 = vunpack.c.l.b16 %v2778
        %v2892 = vunpack.c.h.b16 %v2778
        %v2893 = vunpack.c.l.b16 %v2779
        %v2894 = vunpack.c.h.b16 %v2779
        %v2895 = vunpack.c.l.b16 %v2780
        %v2896 = vunpack.c.h.b16 %v2780
        %v2897 = vunpack.c.l.b16 %v2781
        %v2898 = vunpack.c.h.b16 %v2781
        %v2899 = vunpack.c.l.b16 %v2782
        %v2900 = vunpack.c.h.b16 %v2782
        %v2901 = vunpack.c.l.b16 %v2783
        %v2902 = vunpack.c.h.b16 %v2783
        %v2903 = vunpack.c.l.b16 %v2784
        %v2904 = vunpack.c.h.b16 %v2784
        %v2905 = vunpack.c.l.b16 %v2785
        %v2906 = vunpack.c.h.b16 %v2785
        %v2907 = vpack.c.b16 %v2845, %v2843
        %v2908 = vpack.c.b16 %v2846, %v2844
        %v2909 = vpack.c.b16 %v2849, %v2847
        %v2910 = vpack.c.b16 %v2850, %v2848
        %v2911 = vpack.c.b16 %v2853, %v2851
        %v2912 = vpack.c.b16 %v2854, %v2852
        %v2913 = vpack.c.b16 %v2857, %v2855
        %v2914 = vpack.c.b16 %v2858, %v2856
        %v2915 = vpack.c.b16 %v2861, %v2859
        %v2916 = vpack.c.b16 %v2862, %v2860
        %v2917 = vpack.c.b16 %v2865, %v2863
        %v2918 = vpack.c.b16 %v2866, %v2864
        %v2919 = vpack.c.b16 %v2869, %v2867
        %v2920 = vpack.c.b16 %v2870, %v2868
        %v2921 = vpack.c.b16 %v2873, %v2871
        %v2922 = vpack.c.b16 %v2874, %v2872
        %v2923 = vpack.c.b16 %v2877, %v2875
        %v2924 = vpack.c.b16 %v2878, %v2876
        %v2925 = vpack.c.b16 %v2881, %v2879
        %v2926 = vpack.c.b16 %v2882, %v2880
        %v2927 = vpack.c.b16 %v2885, %v2883
        %v2928 = vpack.c.b16 %v2886, %v2884
        %v2929 = vpack.c.b16 %v2889, %v2887
        %v2930 = vpack.c.b16 %v2890, %v2888
        %v2931 = vpack.c.b16 %v2893, %v2891
        %v2932 = vpack.c.b16 %v2894, %v2892
        %v2933 = vpack.c.b16 %v2897, %v2895
        %v2934 = vpack.c.b16 %v2898, %v2896
        %v2935 = vpack.c.b16 %v2901, %v2899
        %v2936 = vpack.c.b16 %v2902, %v2900
        %v2937 = vpack.c.b16 %v2905, %v2903
        %v2938 = vpack.c.b16 %v2906, %v2904
        %v2979 = vunpack.c.l.b16 %v2787
        %v2980 = vunpack.c.l.b16 %v2788
        %v2981 = vunpack.c.l.b16 %v2789
        %v2982 = vunpack.c.l.b16 %v2790
        %v2983 = vunpack.c.l.b16 %v2791
        %v2984 = vunpack.c.l.b16 %v2792
        %v2985 = vunpack.c.l.b16 %v2793
        %v2986 = vunpack.c.l.b16 %v2794
        %v2987 = vunpack.c.l.b16 %v2795
        %v2988 = vunpack.c.l.b16 %v2796
        %v2989 = vunpack.c.l.b16 %v2797
        %v2990 = vunpack.c.l.b16 %v2798
        %v2991 = vunpack.c.l.b16 %v2799
        %v2992 = vunpack.c.l.b16 %v2800
        %v2993 = vunpack.c.l.b16 %v2801
        %v2994 = vunpack.c.l.b16 %v2802
        %v2995 = vunpack.c.l.b16 %v2803
        %v2996 = vunpack.c.l.b16 %v2804
        %v2997 = vunpack.c.l.b16 %v2805
        %v2998 = vunpack.c.l.b16 %v2806
        %v2999 = vunpack.c.l.b16 %v2807
        %v3000 = vunpack.c.l.b16 %v2808
        %v3001 = vunpack.c.l.b16 %v2809
        %v3002 = vunpack.c.l.b16 %v2810
        %v3003 = vpack.c.b16 %v2980, %v2979
        %v3004 = vpack.c.b16 %v2982, %v2981
        %v3005 = vpack.c.b16 %v2984, %v2983
        %v3006 = vpack.c.b16 %v2986, %v2985
        %v3007 = vpack.c.b16 %v2988, %v2987
        %v3008 = vpack.c.b16 %v2990, %v2989
        %v3009 = vpack.c.b16 %v2992, %v2991
        %v3010 = vpack.c.b16 %v2994, %v2993
        %v3011 = vpack.c.b16 %v2996, %v2995
        %v3012 = vpack.c.b16 %v2998, %v2997
        %v3013 = vpack.c.b16 %v3000, %v2999
        %v3014 = vpack.c.b16 %v3002, %v3001
        %v3028 = vsel %vm2265, %v2908, 0
        %v3031 = vsel %vm2265, %v2910, 0
        %v3034 = vsel %vm2265, %v2912, 0
        %v3037 = vsel %vm2265, %v2914, 0
        %v3040 = vsel %vm2265, %v2916, 0
        %v3043 = vsel %vm2265, %v2918, 0
        %v3046 = vsel %vm2265, %v2920, 0
        %v3049 = vsel %vm2265, %v2922, 0
        %v3052 = vsel %vm2265, %v2924, 0
        %v3055 = vsel %vm2265, %v2926, 0
        %v3058 = vsel %vm2265, %v2928, 0
        %v3061 = vsel %vm2265, %v2930, 0
        %v3064 = vsel %vm2265, %v2932, 0
        %v3067 = vsel %vm2265, %v2934, 0
        %v3070 = vsel %vm2265, %v2936, 0
        %v3073 = vsel %vm2265, %v2938, 0
        %3075 = vmatpush.bf16.msra.mxu0 %v3010
        %3076 = vmatpush.bf16.msra.mxu0 %v3009
        %3077 = vmatpush.bf16.msra.mxu0 %v3008
        %3078 = vmatpush.bf16.msra.mxu0 %v3007
        %3079 = vmatpush.bf16.msra.mxu0 %v3006
        %3080 = vmatpush.bf16.msra.mxu0 %v3005
        %3081 = vmatpush.bf16.msra.mxu0 %v3004
        %3082 = vmatpush.bf16.msra.mxu0 %v3003
        %3083 = vmatmul.bf16.gmra.mxu0 %v2907
        %v3084 = vpop.f32.mrf.mxu0
        %v3085 = vadd.f32 0.0, %v3084
        %v3086 = vpop.f32.mrf.mxu0
        %v3087 = vadd.f32 0.0, %v3086
        %3088 = vmatmul.bf16.gmra.mxu0 %v2909
        %v3089 = vpop.f32.mrf.mxu0
        %v3090 = vadd.f32 0.0, %v3089
        %v3091 = vpop.f32.mrf.mxu0
        %v3092 = vadd.f32 0.0, %v3091
        %3093 = vmatmul.bf16.gmra.mxu0 %v2911
        %v3094 = vpop.f32.mrf.mxu0
        %v3095 = vadd.f32 0.0, %v3094
        %v3096 = vpop.f32.mrf.mxu0
        %v3097 = vadd.f32 0.0, %v3096
        %3098 = vmatmul.bf16.gmra.mxu0 %v2913
        %v3099 = vpop.f32.mrf.mxu0
        %v3100 = vadd.f32 0.0, %v3099
        %v3101 = vpop.f32.mrf.mxu0
        %v3102 = vadd.f32 0.0, %v3101
        %3103 = vmatmul.bf16.gmra.mxu0 %v2915
        %v3104 = vpop.f32.mrf.mxu0
        %v3105 = vadd.f32 0.0, %v3104
        %v3106 = vpop.f32.mrf.mxu0
        %v3107 = vadd.f32 0.0, %v3106
        %3108 = vmatmul.bf16.gmra.mxu0 %v2917
        %v3109 = vpop.f32.mrf.mxu0
        %v3110 = vadd.f32 0.0, %v3109
        %v3111 = vpop.f32.mrf.mxu0
        %v3112 = vadd.f32 0.0, %v3111
        %3113 = vmatmul.bf16.gmra.mxu0 %v2919
        %v3114 = vpop.f32.mrf.mxu0
        %v3115 = vadd.f32 0.0, %v3114
        %v3116 = vpop.f32.mrf.mxu0
        %v3117 = vadd.f32 0.0, %v3116
        %3118 = vmatmul.bf16.gmra.mxu0 %v2921
        %v3119 = vpop.f32.mrf.mxu0
        %v3120 = vadd.f32 0.0, %v3119
        %v3121 = vpop.f32.mrf.mxu0
        %v3122 = vadd.f32 0.0, %v3121
        %3123 = vmatmul.bf16.gmra.mxu0 %v2923
        %v3124 = vpop.f32.mrf.mxu0
        %v3125 = vadd.f32 0.0, %v3124
        %v3126 = vpop.f32.mrf.mxu0
        %v3127 = vadd.f32 0.0, %v3126
        %3128 = vmatmul.bf16.gmra.mxu0 %v2925
        %v3129 = vpop.f32.mrf.mxu0
        %v3130 = vadd.f32 0.0, %v3129
        %v3131 = vpop.f32.mrf.mxu0
        %v3132 = vadd.f32 0.0, %v3131
        %3133 = vmatmul.bf16.gmra.mxu0 %v2927
        %v3134 = vpop.f32.mrf.mxu0
        %v3135 = vadd.f32 0.0, %v3134
        %v3136 = vpop.f32.mrf.mxu0
        %v3137 = vadd.f32 0.0, %v3136
        %3138 = vmatmul.bf16.gmra.mxu0 %v2929
        %v3139 = vpop.f32.mrf.mxu0
        %v3140 = vadd.f32 0.0, %v3139
        %v3141 = vpop.f32.mrf.mxu0
        %v3142 = vadd.f32 0.0, %v3141
        %3143 = vmatmul.bf16.gmra.mxu0 %v2931
        %v3144 = vpop.f32.mrf.mxu0
        %v3145 = vadd.f32 0.0, %v3144
        %v3146 = vpop.f32.mrf.mxu0
        %v3147 = vadd.f32 0.0, %v3146
        %3148 = vmatmul.bf16.gmra.mxu0 %v2933
        %v3149 = vpop.f32.mrf.mxu0
        %v3150 = vadd.f32 0.0, %v3149
        %v3151 = vpop.f32.mrf.mxu0
        %v3152 = vadd.f32 0.0, %v3151
        %3153 = vmatmul.bf16.gmra.mxu0 %v2935
        %v3154 = vpop.f32.mrf.mxu0
        %v3155 = vadd.f32 0.0, %v3154
        %v3156 = vpop.f32.mrf.mxu0
        %v3157 = vadd.f32 0.0, %v3156
        %3158 = vmatmul.bf16.gmra.mxu0 %v2937
        %v3159 = vpop.f32.mrf.mxu0
        %v3160 = vadd.f32 0.0, %v3159
        %v3161 = vpop.f32.mrf.mxu0
        %v3162 = vadd.f32 0.0, %v3161
        %3163 = vdwg.mxu0
        %3164 = vmatpush.bf16.msra.mxu0 0
        %3165 = vmatpush.bf16.msra.mxu0 0
        %3166 = vmatpush.bf16.msra.mxu0 0
        %3167 = vmatpush.bf16.msra.mxu0 0
        %3168 = vmatpush.bf16.msra.mxu0 %v3014
        %3169 = vmatpush.bf16.msra.mxu0 %v3013
        %3170 = vmatpush.bf16.msra.mxu0 %v3012
        %3171 = vmatpush.bf16.msra.mxu0 %v3011
        %3172 = vmatmul.bf16.gmra.mxu0 %v3028
        %v3173 = vpop.f32.mrf.mxu0
        %v3174 = vadd.f32 %v3085, %v3173
        %v3175 = vpop.f32.mrf.mxu0
        %v3176 = vadd.f32 %v3087, %v3175
        %3177 = vmatmul.bf16.gmra.mxu0 %v3031
        %v3178 = vpop.f32.mrf.mxu0
        %v3179 = vadd.f32 %v3090, %v3178
        %v3180 = vpop.f32.mrf.mxu0
        %v3181 = vadd.f32 %v3092, %v3180
        %3182 = vmatmul.bf16.gmra.mxu0 %v3034
        %v3183 = vpop.f32.mrf.mxu0
        %v3184 = vadd.f32 %v3095, %v3183
        %v3185 = vpop.f32.mrf.mxu0
        %v3186 = vadd.f32 %v3097, %v3185
        %3187 = vmatmul.bf16.gmra.mxu0 %v3037
        %v3188 = vpop.f32.mrf.mxu0
        %v3189 = vadd.f32 %v3100, %v3188
        %v3190 = vpop.f32.mrf.mxu0
        %v3191 = vadd.f32 %v3102, %v3190
        %3192 = vmatmul.bf16.gmra.mxu0 %v3040
        %v3193 = vpop.f32.mrf.mxu0
        %v3194 = vadd.f32 %v3105, %v3193
        %v3195 = vpop.f32.mrf.mxu0
        %v3196 = vadd.f32 %v3107, %v3195
        %3197 = vmatmul.bf16.gmra.mxu0 %v3043
        %v3198 = vpop.f32.mrf.mxu0
        %v3199 = vadd.f32 %v3110, %v3198
        %v3200 = vpop.f32.mrf.mxu0
        %v3201 = vadd.f32 %v3112, %v3200
        %3202 = vmatmul.bf16.gmra.mxu0 %v3046
        %v3203 = vpop.f32.mrf.mxu0
        %v3204 = vadd.f32 %v3115, %v3203
        %v3205 = vpop.f32.mrf.mxu0
        %v3206 = vadd.f32 %v3117, %v3205
        %3207 = vmatmul.bf16.gmra.mxu0 %v3049
        %v3208 = vpop.f32.mrf.mxu0
        %v3209 = vadd.f32 %v3120, %v3208
        %v3210 = vpop.f32.mrf.mxu0
        %v3211 = vadd.f32 %v3122, %v3210
        %3212 = vmatmul.bf16.gmra.mxu0 %v3052
        %v3213 = vpop.f32.mrf.mxu0
        %v3214 = vadd.f32 %v3125, %v3213
        %v3215 = vpop.f32.mrf.mxu0
        %v3216 = vadd.f32 %v3127, %v3215
        %3217 = vmatmul.bf16.gmra.mxu0 %v3055
        %v3218 = vpop.f32.mrf.mxu0
        %v3219 = vadd.f32 %v3130, %v3218
        %v3220 = vpop.f32.mrf.mxu0
        %v3221 = vadd.f32 %v3132, %v3220
        %3222 = vmatmul.bf16.gmra.mxu0 %v3058
        %v3223 = vpop.f32.mrf.mxu0
        %v3224 = vadd.f32 %v3135, %v3223
        %v3225 = vpop.f32.mrf.mxu0
        %v3226 = vadd.f32 %v3137, %v3225
        %3227 = vmatmul.bf16.gmra.mxu0 %v3061
        %v3228 = vpop.f32.mrf.mxu0
        %v3229 = vadd.f32 %v3140, %v3228
        %v3230 = vpop.f32.mrf.mxu0
        %v3231 = vadd.f32 %v3142, %v3230
        %3232 = vmatmul.bf16.gmra.mxu0 %v3064
        %v3233 = vpop.f32.mrf.mxu0
        %v3234 = vadd.f32 %v3145, %v3233
        %v3235 = vpop.f32.mrf.mxu0
        %v3236 = vadd.f32 %v3147, %v3235
        %3237 = vmatmul.bf16.gmra.mxu0 %v3067
        %v3238 = vpop.f32.mrf.mxu0
        %v3239 = vadd.f32 %v3150, %v3238
        %v3240 = vpop.f32.mrf.mxu0
        %v3241 = vadd.f32 %v3152, %v3240
        %3242 = vmatmul.bf16.gmra.mxu0 %v3070
        %v3243 = vpop.f32.mrf.mxu0
        %v3244 = vadd.f32 %v3155, %v3243
        %v3245 = vpop.f32.mrf.mxu0
        %v3246 = vadd.f32 %v3157, %v3245
        %3247 = vmatmul.bf16.gmra.mxu0 %v3073
        %v3248 = vpop.f32.mrf.mxu0
        %v3249 = vadd.f32 %v3160, %v3248
        %v3250 = vpop.f32.mrf.mxu0
        %v3251 = vadd.f32 %v3162, %v3250
        %3252 = vdwg.mxu0
        %v3253 = vadd.f32 %v2675, %v3174
        %v3254 = vadd.f32 %v2677, %v3176
        %v3255 = vadd.f32 %v2680, %v3179
        %v3256 = vadd.f32 %v2682, %v3181
        %v3257 = vadd.f32 %v2685, %v3184
        %v3258 = vadd.f32 %v2687, %v3186
        %v3259 = vadd.f32 %v2690, %v3189
        %v3260 = vadd.f32 %v2692, %v3191
        %v3261 = vadd.f32 %v2695, %v3194
        %v3262 = vadd.f32 %v2697, %v3196
        %v3263 = vadd.f32 %v2700, %v3199
        %v3264 = vadd.f32 %v2702, %v3201
        %v3265 = vadd.f32 %v2705, %v3204
        %v3266 = vadd.f32 %v2707, %v3206
        %v3267 = vadd.f32 %v2710, %v3209
        %v3268 = vadd.f32 %v2712, %v3211
        %v3269 = vadd.f32 %v2715, %v3214
        %v3270 = vadd.f32 %v2717, %v3216
        %v3271 = vadd.f32 %v2720, %v3219
        %v3272 = vadd.f32 %v2722, %v3221
        %v3273 = vadd.f32 %v2725, %v3224
        %v3274 = vadd.f32 %v2727, %v3226
        %v3275 = vadd.f32 %v2730, %v3229
        %v3276 = vadd.f32 %v2732, %v3231
        %v3277 = vadd.f32 %v2735, %v3234
        %v3278 = vadd.f32 %v2737, %v3236
        %v3279 = vadd.f32 %v2740, %v3239
        %v3280 = vadd.f32 %v2742, %v3241
        %v3281 = vadd.f32 %v2745, %v3244
        %v3282 = vadd.f32 %v2747, %v3246
        %v3283 = vadd.f32 %v2750, %v3249
        %v3284 = vadd.f32 %v2752, %v3251
        %v3285 = vld [vmem:[%s4] sm:$0x1]
        %v3287 = vperm.slane %v3285, 0
        %v3289 = vadd.f32 %v3253, %v3287
        %v3290 = vadd.f32 %v3254, %v3287
        %v3291 = vadd.f32 %v3255, %v3287
        %v3292 = vadd.f32 %v3256, %v3287
        %v3293 = vadd.f32 %v3257, %v3287
        %v3294 = vadd.f32 %v3258, %v3287
        %v3295 = vadd.f32 %v3259, %v3287
        %v3296 = vadd.f32 %v3260, %v3287
        %v3297 = vadd.f32 %v3261, %v3287
        %v3298 = vadd.f32 %v3262, %v3287
        %v3299 = vadd.f32 %v3263, %v3287
        %v3300 = vadd.f32 %v3264, %v3287
        %v3301 = vadd.f32 %v3265, %v3287
        %v3302 = vadd.f32 %v3266, %v3287
        %v3303 = vadd.f32 %v3267, %v3287
        %v3304 = vadd.f32 %v3268, %v3287
        %v3305 = vadd.f32 %v3269, %v3287
        %v3306 = vadd.f32 %v3270, %v3287
        %v3307 = vadd.f32 %v3271, %v3287
        %v3308 = vadd.f32 %v3272, %v3287
        %v3309 = vadd.f32 %v3273, %v3287
        %v3310 = vadd.f32 %v3274, %v3287
        %v3311 = vadd.f32 %v3275, %v3287
        %v3312 = vadd.f32 %v3276, %v3287
        %v3313 = vadd.f32 %v3277, %v3287
        %v3314 = vadd.f32 %v3278, %v3287
        %v3315 = vadd.f32 %v3279, %v3287
        %v3316 = vadd.f32 %v3280, %v3287
        %v3317 = vadd.f32 %v3281, %v3287
        %v3318 = vadd.f32 %v3282, %v3287
        %v3319 = vadd.f32 %v3283, %v3287
        %v3320 = vadd.f32 %v3284, %v3287
        %v3321 = vmax.f32 %v3289, 0.0
        %v3322 = vmax.f32 %v3290, 0.0
        %v3323 = vmax.f32 %v3291, 0.0
        %v3324 = vmax.f32 %v3292, 0.0
        %v3325 = vmax.f32 %v3293, 0.0
        %v3326 = vmax.f32 %v3294, 0.0
        %v3327 = vmax.f32 %v3295, 0.0
        %v3328 = vmax.f32 %v3296, 0.0
        %v3329 = vmax.f32 %v3297, 0.0
        %v3330 = vmax.f32 %v3298, 0.0
        %v3331 = vmax.f32 %v3299, 0.0
        %v3332 = vmax.f32 %v3300, 0.0
        %v3333 = vmax.f32 %v3301, 0.0
        %v3334 = vmax.f32 %v3302, 0.0
        %v3335 = vmax.f32 %v3303, 0.0
        %v3336 = vmax.f32 %v3304, 0.0
        %v3337 = vmax.f32 %v3305, 0.0
        %v3338 = vmax.f32 %v3306, 0.0
        %v3339 = vmax.f32 %v3307, 0.0
        %v3340 = vmax.f32 %v3308, 0.0
        %v3341 = vmax.f32 %v3309, 0.0
        %v3342 = vmax.f32 %v3310, 0.0
        %v3343 = vmax.f32 %v3311, 0.0
        %v3344 = vmax.f32 %v3312, 0.0
        %v3345 = vmax.f32 %v3313, 0.0
        %v3346 = vmax.f32 %v3314, 0.0
        %v3347 = vmax.f32 %v3315, 0.0
        %v3348 = vmax.f32 %v3316, 0.0
        %v3349 = vmax.f32 %v3317, 0.0
        %v3350 = vmax.f32 %v3318, 0.0
        %v3351 = vmax.f32 %v3319, 0.0
        %v3352 = vmax.f32 %v3320, 0.0
        %v3353 = vpack.c.bf16 %v3322, %v3321
        %v3354 = vpack.c.bf16 %v3324, %v3323
        %v3355 = vpack.c.bf16 %v3326, %v3325
        %v3356 = vpack.c.bf16 %v3328, %v3327
        %v3357 = vpack.c.bf16 %v3330, %v3329
        %v3358 = vpack.c.bf16 %v3332, %v3331
        %v3359 = vpack.c.bf16 %v3334, %v3333
        %v3360 = vpack.c.bf16 %v3336, %v3335
        %v3361 = vpack.c.bf16 %v3338, %v3337
        %v3362 = vpack.c.bf16 %v3340, %v3339
        %v3363 = vpack.c.bf16 %v3342, %v3341
        %v3364 = vpack.c.bf16 %v3344, %v3343
        %v3365 = vpack.c.bf16 %v3346, %v3345
        %v3366 = vpack.c.bf16 %v3348, %v3347
        %v3367 = vpack.c.bf16 %v3350, %v3349
        %v3368 = vpack.c.bf16 %v3352, %v3351
        %v3369 = vld [vmem:[%s5] sm:$0xff]
        %v3370 = vld [vmem:[%s5 + $0x8] sm:$0xff]
        %v3371 = vld [vmem:[%s5 + $0x10] sm:$0xff]
        %v3372 = vld [vmem:[%s5 + $0x18] sm:$0xff]
        %v3373 = vld [vmem:[%s5 + $0x20] sm:$0xff]
        %v3374 = vld [vmem:[%s5 + $0x28] sm:$0xff]
        %v3375 = vld [vmem:[%s5 + $0x30] sm:$0xff]
        %v3376 = vld [vmem:[%s5 + $0x38] sm:$0xff]
        %v3377 = vld [vmem:[%s6] sm:$0x3]
        %v3379 = vperm.slane %v3377, 0
        %v3380 = vperm.slane %v3377, 1
        %v3391 = vunpack.c.l.b16 %v3369
        %v3392 = vunpack.c.h.b16 %v3369
        %v3393 = vunpack.c.l.b16 %v3370
        %v3394 = vunpack.c.h.b16 %v3370
        %v3395 = vunpack.c.l.b16 %v3371
        %v3396 = vunpack.c.h.b16 %v3371
        %v3397 = vunpack.c.l.b16 %v3372
        %v3398 = vunpack.c.h.b16 %v3372
        %v3399 = vunpack.c.l.b16 %v3373
        %v3400 = vunpack.c.h.b16 %v3373
        %v3401 = vunpack.c.l.b16 %v3374
        %v3402 = vunpack.c.h.b16 %v3374
        %v3403 = vunpack.c.l.b16 %v3375
        %v3404 = vunpack.c.h.b16 %v3375
        %v3405 = vunpack.c.l.b16 %v3376
        %v3406 = vunpack.c.h.b16 %v3376
        %v3407 = vpack.c.b16 %v3393, %v3391
        %v3408 = vpack.c.b16 %v3394, %v3392
        %v3409 = vpack.c.b16 %v3397, %v3395
        %v3410 = vpack.c.b16 %v3398, %v3396
        %v3411 = vpack.c.b16 %v3401, %v3399
        %v3412 = vpack.c.b16 %v3402, %v3400
        %v3413 = vpack.c.b16 %v3405, %v3403
        %v3414 = vpack.c.b16 %v3406, %v3404
        %v3424 = vsel %vm2265, %v3353, 0
        %v3427 = vsel %vm2265, %v3354, 0
        %v3430 = vsel %vm2265, %v3355, 0
        %v3433 = vsel %vm2265, %v3356, 0
        %v3436 = vsel %vm2265, %v3357, 0
        %v3439 = vsel %vm2265, %v3358, 0
        %v3442 = vsel %vm2265, %v3359, 0
        %v3445 = vsel %vm2265, %v3360, 0
        %v3448 = vsel %vm2265, %v3361, 0
        %v3451 = vsel %vm2265, %v3362, 0
        %v3454 = vsel %vm2265, %v3363, 0
        %v3457 = vsel %vm2265, %v3364, 0
        %v3460 = vsel %vm2265, %v3365, 0
        %v3463 = vsel %vm2265, %v3366, 0
        %v3466 = vsel %vm2265, %v3367, 0
        %v3469 = vsel %vm2265, %v3368, 0
        %3471 = vmatpush.bf16.msra.mxu0 0
        %3472 = vmatpush.bf16.msra.mxu0 0
        %3473 = vmatpush.bf16.msra.mxu0 0
        %3474 = vmatpush.bf16.msra.mxu0 0
        %3475 = vmatpush.bf16.msra.mxu0 %v3413
        %3476 = vmatpush.bf16.msra.mxu0 %v3411
        %3477 = vmatpush.bf16.msra.mxu0 %v3409
        %3478 = vmatpush.bf16.msra.mxu0 %v3407
        %3479 = vmatmul.bf16.gmra.mxu0 %v3424
        %v3480 = vpop.f32.mrf.mxu0
        %v3481 = vadd.f32 %v3379, %v3480
        %v3482 = vpop.f32.mrf.mxu0
        %v3483 = vadd.f32 %v3379, %v3482
        %3484 = vmatmul.bf16.gmra.mxu0 %v3427
        %v3485 = vpop.f32.mrf.mxu0
        %v3486 = vadd.f32 %v3379, %v3485
        %v3487 = vpop.f32.mrf.mxu0
        %v3488 = vadd.f32 %v3379, %v3487
        %3489 = vmatmul.bf16.gmra.mxu0 %v3430
        %v3490 = vpop.f32.mrf.mxu0
        %v3491 = vadd.f32 %v3379, %v3490
        %v3492 = vpop.f32.mrf.mxu0
        %v3493 = vadd.f32 %v3379, %v3492
        %3494 = vmatmul.bf16.gmra.mxu0 %v3433
        %v3495 = vpop.f32.mrf.mxu0
        %v3496 = vadd.f32 %v3379, %v3495
        %v3497 = vpop.f32.mrf.mxu0
        %v3498 = vadd.f32 %v3379, %v3497
        %3499 = vmatmul.bf16.gmra.mxu0 %v3436
        %v3500 = vpop.f32.mrf.mxu0
        %v3501 = vadd.f32 %v3379, %v3500
        %v3502 = vpop.f32.mrf.mxu0
        %v3503 = vadd.f32 %v3379, %v3502
        %3504 = vmatmul.bf16.gmra.mxu0 %v3439
        %v3505 = vpop.f32.mrf.mxu0
        %v3506 = vadd.f32 %v3379, %v3505
        %v3507 = vpop.f32.mrf.mxu0
        %v3508 = vadd.f32 %v3379, %v3507
        %3509 = vmatmul.bf16.gmra.mxu0 %v3442
        %v3510 = vpop.f32.mrf.mxu0
        %v3511 = vadd.f32 %v3379, %v3510
        %v3512 = vpop.f32.mrf.mxu0
        %v3513 = vadd.f32 %v3379, %v3512
        %3514 = vmatmul.bf16.gmra.mxu0 %v3445
        %v3515 = vpop.f32.mrf.mxu0
        %v3516 = vadd.f32 %v3379, %v3515
        %v3517 = vpop.f32.mrf.mxu0
        %v3518 = vadd.f32 %v3379, %v3517
        %3519 = vmatmul.bf16.gmra.mxu0 %v3448
        %v3520 = vpop.f32.mrf.mxu0
        %v3521 = vadd.f32 %v3379, %v3520
        %v3522 = vpop.f32.mrf.mxu0
        %v3523 = vadd.f32 %v3379, %v3522
        %3524 = vmatmul.bf16.gmra.mxu0 %v3451
        %v3525 = vpop.f32.mrf.mxu0
        %v3526 = vadd.f32 %v3379, %v3525
        %v3527 = vpop.f32.mrf.mxu0
        %v3528 = vadd.f32 %v3379, %v3527
        %3529 = vmatmul.bf16.gmra.mxu0 %v3454
        %v3530 = vpop.f32.mrf.mxu0
        %v3531 = vadd.f32 %v3379, %v3530
        %v3532 = vpop.f32.mrf.mxu0
        %v3533 = vadd.f32 %v3379, %v3532
        %3534 = vmatmul.bf16.gmra.mxu0 %v3457
        %v3535 = vpop.f32.mrf.mxu0
        %v3536 = vadd.f32 %v3379, %v3535
        %v3537 = vpop.f32.mrf.mxu0
        %v3538 = vadd.f32 %v3379, %v3537
        %3539 = vmatmul.bf16.gmra.mxu0 %v3460
        %v3540 = vpop.f32.mrf.mxu0
        %v3541 = vadd.f32 %v3379, %v3540
        %v3542 = vpop.f32.mrf.mxu0
        %v3543 = vadd.f32 %v3379, %v3542
        %3544 = vmatmul.bf16.gmra.mxu0 %v3463
        %v3545 = vpop.f32.mrf.mxu0
        %v3546 = vadd.f32 %v3379, %v3545
        %v3547 = vpop.f32.mrf.mxu0
        %v3548 = vadd.f32 %v3379, %v3547
        %3549 = vmatmul.bf16.gmra.mxu0 %v3466
        %v3550 = vpop.f32.mrf.mxu0
        %v3551 = vadd.f32 %v3379, %v3550
        %v3552 = vpop.f32.mrf.mxu0
        %v3553 = vadd.f32 %v3379, %v3552
        %3554 = vmatmul.bf16.gmra.mxu0 %v3469
        %v3555 = vpop.f32.mrf.mxu0
        %v3556 = vadd.f32 %v3379, %v3555
        %v3557 = vpop.f32.mrf.mxu0
        %v3558 = vadd.f32 %v3379, %v3557
        %3559 = vdwg.mxu0
        %3560 = vmatpush.bf16.msra.mxu0 0
        %3561 = vmatpush.bf16.msra.mxu0 0
        %3562 = vmatpush.bf16.msra.mxu0 0
        %3563 = vmatpush.bf16.msra.mxu0 0
        %3564 = vmatpush.bf16.msra.mxu0 %v3414
        %3565 = vmatpush.bf16.msra.mxu0 %v3412
        %3566 = vmatpush.bf16.msra.mxu0 %v3410
        %3567 = vmatpush.bf16.msra.mxu0 %v3408
        %3568 = vmatmul.bf16.gmra.mxu0 %v3424
        %v3569 = vpop.f32.mrf.mxu0
        %v3570 = vadd.f32 %v3380, %v3569
        %v3571 = vpop.f32.mrf.mxu0
        %v3572 = vadd.f32 %v3380, %v3571
        %3573 = vmatmul.bf16.gmra.mxu0 %v3427
        %v3574 = vpop.f32.mrf.mxu0
        %v3575 = vadd.f32 %v3380, %v3574
        %v3576 = vpop.f32.mrf.mxu0
        %v3577 = vadd.f32 %v3380, %v3576
        %3578 = vmatmul.bf16.gmra.mxu0 %v3430
        %v3579 = vpop.f32.mrf.mxu0
        %v3580 = vadd.f32 %v3380, %v3579
        %v3581 = vpop.f32.mrf.mxu0
        %v3582 = vadd.f32 %v3380, %v3581
        %3583 = vmatmul.bf16.gmra.mxu0 %v3433
        %v3584 = vpop.f32.mrf.mxu0
        %v3585 = vadd.f32 %v3380, %v3584
        %v3586 = vpop.f32.mrf.mxu0
        %v3587 = vadd.f32 %v3380, %v3586
        %3588 = vmatmul.bf16.gmra.mxu0 %v3436
        %v3589 = vpop.f32.mrf.mxu0
        %v3590 = vadd.f32 %v3380, %v3589
        %v3591 = vpop.f32.mrf.mxu0
        %v3592 = vadd.f32 %v3380, %v3591
        %3593 = vmatmul.bf16.gmra.mxu0 %v3439
        %v3594 = vpop.f32.mrf.mxu0
        %v3595 = vadd.f32 %v3380, %v3594
        %v3596 = vpop.f32.mrf.mxu0
        %v3597 = vadd.f32 %v3380, %v3596
        %3598 = vmatmul.bf16.gmra.mxu0 %v3442
        %v3599 = vpop.f32.mrf.mxu0
        %v3600 = vadd.f32 %v3380, %v3599
        %v3601 = vpop.f32.mrf.mxu0
        %v3602 = vadd.f32 %v3380, %v3601
        %3603 = vmatmul.bf16.gmra.mxu0 %v3445
        %v3604 = vpop.f32.mrf.mxu0
        %v3605 = vadd.f32 %v3380, %v3604
        %v3606 = vpop.f32.mrf.mxu0
        %v3607 = vadd.f32 %v3380, %v3606
        %3608 = vmatmul.bf16.gmra.mxu0 %v3448
        %v3609 = vpop.f32.mrf.mxu0
        %v3610 = vadd.f32 %v3380, %v3609
        %v3611 = vpop.f32.mrf.mxu0
        %v3612 = vadd.f32 %v3380, %v3611
        %3613 = vmatmul.bf16.gmra.mxu0 %v3451
        %v3614 = vpop.f32.mrf.mxu0
        %v3615 = vadd.f32 %v3380, %v3614
        %v3616 = vpop.f32.mrf.mxu0
        %v3617 = vadd.f32 %v3380, %v3616
        %3618 = vmatmul.bf16.gmra.mxu0 %v3454
        %v3619 = vpop.f32.mrf.mxu0
        %v3620 = vadd.f32 %v3380, %v3619
        %v3621 = vpop.f32.mrf.mxu0
        %v3622 = vadd.f32 %v3380, %v3621
        %3623 = vmatmul.bf16.gmra.mxu0 %v3457
        %v3624 = vpop.f32.mrf.mxu0
        %v3625 = vadd.f32 %v3380, %v3624
        %v3626 = vpop.f32.mrf.mxu0
        %v3627 = vadd.f32 %v3380, %v3626
        %3628 = vmatmul.bf16.gmra.mxu0 %v3460
        %v3629 = vpop.f32.mrf.mxu0
        %v3630 = vadd.f32 %v3380, %v3629
        %v3631 = vpop.f32.mrf.mxu0
        %v3632 = vadd.f32 %v3380, %v3631
        %3633 = vmatmul.bf16.gmra.mxu0 %v3463
        %v3634 = vpop.f32.mrf.mxu0
        %v3635 = vadd.f32 %v3380, %v3634
        %v3636 = vpop.f32.mrf.mxu0
        %v3637 = vadd.f32 %v3380, %v3636
        %3638 = vmatmul.bf16.gmra.mxu0 %v3466
        %v3639 = vpop.f32.mrf.mxu0
        %v3640 = vadd.f32 %v3380, %v3639
        %v3641 = vpop.f32.mrf.mxu0
        %v3642 = vadd.f32 %v3380, %v3641
        %3643 = vmatmul.bf16.gmra.mxu0 %v3469
        %v3644 = vpop.f32.mrf.mxu0
        %v3645 = vadd.f32 %v3380, %v3644
        %v3646 = vpop.f32.mrf.mxu0
        %v3647 = vadd.f32 %v3380, %v3646
        %3648 = vdwg.mxu0
        %v3649 = vmax.f32 %v3481, 0.0
        %v3650 = vmax.f32 %v3570, 0.0
        %v3651 = vmax.f32 %v3483, 0.0
        %v3652 = vmax.f32 %v3572, 0.0
        %v3653 = vmax.f32 %v3486, 0.0
        %v3654 = vmax.f32 %v3575, 0.0
        %v3655 = vmax.f32 %v3488, 0.0
        %v3656 = vmax.f32 %v3577, 0.0
        %v3657 = vmax.f32 %v3491, 0.0
        %v3658 = vmax.f32 %v3580, 0.0
        %v3659 = vmax.f32 %v3493, 0.0
        %v3660 = vmax.f32 %v3582, 0.0
        %v3661 = vmax.f32 %v3496, 0.0
        %v3662 = vmax.f32 %v3585, 0.0
        %v3663 = vmax.f32 %v3498, 0.0
        %v3664 = vmax.f32 %v3587, 0.0
        %v3665 = vmax.f32 %v3501, 0.0
        %v3666 = vmax.f32 %v3590, 0.0
        %v3667 = vmax.f32 %v3503, 0.0
        %v3668 = vmax.f32 %v3592, 0.0
        %v3669 = vmax.f32 %v3506, 0.0
        %v3670 = vmax.f32 %v3595, 0.0
        %v3671 = vmax.f32 %v3508, 0.0
        %v3672 = vmax.f32 %v3597, 0.0
        %v3673 = vmax.f32 %v3511, 0.0
        %v3674 = vmax.f32 %v3600, 0.0
        %v3675 = vmax.f32 %v3513, 0.0
        %v3676 = vmax.f32 %v3602, 0.0
        %v3677 = vmax.f32 %v3516, 0.0
        %v3678 = vmax.f32 %v3605, 0.0
        %v3679 = vmax.f32 %v3518, 0.0
        %v3680 = vmax.f32 %v3607, 0.0
        %v3681 = vmax.f32 %v3521, 0.0
        %v3682 = vmax.f32 %v3610, 0.0
        %v3683 = vmax.f32 %v3523, 0.0
        %v3684 = vmax.f32 %v3612, 0.0
        %v3685 = vmax.f32 %v3526, 0.0
        %v3686 = vmax.f32 %v3615, 0.0
        %v3687 = vmax.f32 %v3528, 0.0
        %v3688 = vmax.f32 %v3617, 0.0
        %v3689 = vmax.f32 %v3531, 0.0
        %v3690 = vmax.f32 %v3620, 0.0
        %v3691 = vmax.f32 %v3533, 0.0
        %v3692 = vmax.f32 %v3622, 0.0
        %v3693 = vmax.f32 %v3536, 0.0
        %v3694 = vmax.f32 %v3625, 0.0
        %v3695 = vmax.f32 %v3538, 0.0
        %v3696 = vmax.f32 %v3627, 0.0
        %v3697 = vmax.f32 %v3541, 0.0
        %v3698 = vmax.f32 %v3630, 0.0
        %v3699 = vmax.f32 %v3543, 0.0
        %v3700 = vmax.f32 %v3632, 0.0
        %v3701 = vmax.f32 %v3546, 0.0
        %v3702 = vmax.f32 %v3635, 0.0
        %v3703 = vmax.f32 %v3548, 0.0
        %v3704 = vmax.f32 %v3637, 0.0
        %v3705 = vmax.f32 %v3551, 0.0
        %v3706 = vmax.f32 %v3640, 0.0
        %v3707 = vmax.f32 %v3553, 0.0
        %v3708 = vmax.f32 %v3642, 0.0
        %v3709 = vmax.f32 %v3556, 0.0
        %v3710 = vmax.f32 %v3645, 0.0
        %v3711 = vmax.f32 %v3558, 0.0
        %v3712 = vmax.f32 %v3647, 0.0
        %v3713 = vld [vmem:[%s267] sm:$0xff]
        %v3714 = vld [vmem:[%s267 + $0x8] sm:$0xff]
        %v3715 = vld [vmem:[%s267 + $0x10] sm:$0xff]
        %v3716 = vld [vmem:[%s267 + $0x18] sm:$0xff]
        %v3717 = vld [vmem:[%s267 + $0x20] sm:$0xff]
        %v3718 = vld [vmem:[%s267 + $0x28] sm:$0xff]
        %v3719 = vld [vmem:[%s267 + $0x30] sm:$0xff]
        %v3720 = vld [vmem:[%s267 + $0x38] sm:$0xff]
        %v3721 = vld [vmem:[%s267 + $0x40] sm:$0xff]
        %v3722 = vld [vmem:[%s267 + $0x48] sm:$0xff]
        %v3723 = vld [vmem:[%s267 + $0x50] sm:$0xff]
        %v3724 = vld [vmem:[%s267 + $0x58] sm:$0xff]
        %v3725 = vld [vmem:[%s267 + $0x60] sm:$0xff]
        %v3726 = vld [vmem:[%s267 + $0x68] sm:$0xff]
        %v3727 = vld [vmem:[%s267 + $0x70] sm:$0xff]
        %v3728 = vld [vmem:[%s267 + $0x78] sm:$0xff]
        %v3729 = vld [vmem:[%s267 + $0x80] sm:$0xff]
        %v3730 = vld [vmem:[%s267 + $0x88] sm:$0xff]
        %v3731 = vld [vmem:[%s267 + $0x90] sm:$0xff]
        %v3732 = vld [vmem:[%s267 + $0x98] sm:$0xff]
        %v3733 = vld [vmem:[%s267 + $0xa0] sm:$0xff]
        %v3734 = vld [vmem:[%s267 + $0xa8] sm:$0xff]
        %v3735 = vld [vmem:[%s267 + $0xb0] sm:$0xff]
        %v3736 = vld [vmem:[%s267 + $0xb8] sm:$0xff]
        %v3737 = vld [vmem:[%s267 + $0xc0] sm:$0xff]
        %v3738 = vld [vmem:[%s267 + $0xc8] sm:$0xff]
        %v3739 = vld [vmem:[%s267 + $0xd0] sm:$0xff]
        %v3740 = vld [vmem:[%s267 + $0xd8] sm:$0xff]
        %v3741 = vld [vmem:[%s267 + $0xe0] sm:$0xff]
        %v3742 = vld [vmem:[%s267 + $0xe8] sm:$0xff]
        %v3743 = vld [vmem:[%s267 + $0xf0] sm:$0xff]
        %v3744 = vld [vmem:[%s267 + $0xf8] sm:$0xff]
        %v3745 = vunpack.c.l.bf16 %v3713
        %v3746 = vunpack.c.h.bf16 %v3713
        %v3747 = vunpack.c.l.bf16 %v3714
        %v3748 = vunpack.c.h.bf16 %v3714
        %v3749 = vunpack.c.l.bf16 %v3715
        %v3750 = vunpack.c.h.bf16 %v3715
        %v3751 = vunpack.c.l.bf16 %v3716
        %v3752 = vunpack.c.h.bf16 %v3716
        %v3753 = vunpack.c.l.bf16 %v3717
        %v3754 = vunpack.c.h.bf16 %v3717
        %v3755 = vunpack.c.l.bf16 %v3718
        %v3756 = vunpack.c.h.bf16 %v3718
        %v3757 = vunpack.c.l.bf16 %v3719
        %v3758 = vunpack.c.h.bf16 %v3719
        %v3759 = vunpack.c.l.bf16 %v3720
        %v3760 = vunpack.c.h.bf16 %v3720
        %v3761 = vunpack.c.l.bf16 %v3721
        %v3762 = vunpack.c.h.bf16 %v3721
        %v3763 = vunpack.c.l.bf16 %v3722
        %v3764 = vunpack.c.h.bf16 %v3722
        %v3765 = vunpack.c.l.bf16 %v3723
        %v3766 = vunpack.c.h.bf16 %v3723
        %v3767 = vunpack.c.l.bf16 %v3724
        %v3768 = vunpack.c.h.bf16 %v3724
        %v3769 = vunpack.c.l.bf16 %v3725
        %v3770 = vunpack.c.h.bf16 %v3725
        %v3771 = vunpack.c.l.bf16 %v3726
        %v3772 = vunpack.c.h.bf16 %v3726
        %v3773 = vunpack.c.l.bf16 %v3727
        %v3774 = vunpack.c.h.bf16 %v3727
        %v3775 = vunpack.c.l.bf16 %v3728
        %v3776 = vunpack.c.h.bf16 %v3728
        %v3777 = vunpack.c.l.bf16 %v3729
        %v3778 = vunpack.c.h.bf16 %v3729
        %v3779 = vunpack.c.l.bf16 %v3730
        %v3780 = vunpack.c.h.bf16 %v3730
        %v3781 = vunpack.c.l.bf16 %v3731
        %v3782 = vunpack.c.h.bf16 %v3731
        %v3783 = vunpack.c.l.bf16 %v3732
        %v3784 = vunpack.c.h.bf16 %v3732
        %v3785 = vunpack.c.l.bf16 %v3733
        %v3786 = vunpack.c.h.bf16 %v3733
        %v3787 = vunpack.c.l.bf16 %v3734
        %v3788 = vunpack.c.h.bf16 %v3734
        %v3789 = vunpack.c.l.bf16 %v3735
        %v3790 = vunpack.c.h.bf16 %v3735
        %v3791 = vunpack.c.l.bf16 %v3736
        %v3792 = vunpack.c.h.bf16 %v3736
        %v3793 = vunpack.c.l.bf16 %v3737
        %v3794 = vunpack.c.h.bf16 %v3737
        %v3795 = vunpack.c.l.bf16 %v3738
        %v3796 = vunpack.c.h.bf16 %v3738
        %v3797 = vunpack.c.l.bf16 %v3739
        %v3798 = vunpack.c.h.bf16 %v3739
        %v3799 = vunpack.c.l.bf16 %v3740
        %v3800 = vunpack.c.h.bf16 %v3740
        %v3801 = vunpack.c.l.bf16 %v3741
        %v3802 = vunpack.c.h.bf16 %v3741
        %v3803 = vunpack.c.l.bf16 %v3742
        %v3804 = vunpack.c.h.bf16 %v3742
        %v3805 = vunpack.c.l.bf16 %v3743
        %v3806 = vunpack.c.h.bf16 %v3743
        %v3807 = vunpack.c.l.bf16 %v3744
        %v3808 = vunpack.c.h.bf16 %v3744
        %v3809 = vadd.f32 %v3649, %v3745
        %v3810 = vadd.f32 %v3650, %v3746
        %v3811 = vadd.f32 %v3651, %v3747
        %v3812 = vadd.f32 %v3652, %v3748
        %v3813 = vadd.f32 %v3653, %v3749
        %v3814 = vadd.f32 %v3654, %v3750
        %v3815 = vadd.f32 %v3655, %v3751
        %v3816 = vadd.f32 %v3656, %v3752
        %v3817 = vadd.f32 %v3657, %v3753
        %v3818 = vadd.f32 %v3658, %v3754
        %v3819 = vadd.f32 %v3659, %v3755
        %v3820 = vadd.f32 %v3660, %v3756
        %v3821 = vadd.f32 %v3661, %v3757
        %v3822 = vadd.f32 %v3662, %v3758
        %v3823 = vadd.f32 %v3663, %v3759
        %v3824 = vadd.f32 %v3664, %v3760
        %v3825 = vadd.f32 %v3665, %v3761
        %v3826 = vadd.f32 %v3666, %v3762
        %v3827 = vadd.f32 %v3667, %v3763
        %v3828 = vadd.f32 %v3668, %v3764
        %v3829 = vadd.f32 %v3669, %v3765
        %v3830 = vadd.f32 %v3670, %v3766
        %v3831 = vadd.f32 %v3671, %v3767
        %v3832 = vadd.f32 %v3672, %v3768
        %v3833 = vadd.f32 %v3673, %v3769
        %v3834 = vadd.f32 %v3674, %v3770
        %v3835 = vadd.f32 %v3675, %v3771
        %v3836 = vadd.f32 %v3676, %v3772
        %v3837 = vadd.f32 %v3677, %v3773
        %v3838 = vadd.f32 %v3678, %v3774
        %v3839 = vadd.f32 %v3679, %v3775
        %v3840 = vadd.f32 %v3680, %v3776
        %v3841 = vadd.f32 %v3681, %v3777
        %v3842 = vadd.f32 %v3682, %v3778
        %v3843 = vadd.f32 %v3683, %v3779
        %v3844 = vadd.f32 %v3684, %v3780
        %v3845 = vadd.f32 %v3685, %v3781
        %v3846 = vadd.f32 %v3686, %v3782
        %v3847 = vadd.f32 %v3687, %v3783
        %v3848 = vadd.f32 %v3688, %v3784
        %v3849 = vadd.f32 %v3689, %v3785
        %v3850 = vadd.f32 %v3690, %v3786
        %v3851 = vadd.f32 %v3691, %v3787
        %v3852 = vadd.f32 %v3692, %v3788
        %v3853 = vadd.f32 %v3693, %v3789
        %v3854 = vadd.f32 %v3694, %v3790
        %v3855 = vadd.f32 %v3695, %v3791
        %v3856 = vadd.f32 %v3696, %v3792
        %v3857 = vadd.f32 %v3697, %v3793
        %v3858 = vadd.f32 %v3698, %v3794
        %v3859 = vadd.f32 %v3699, %v3795
        %v3860 = vadd.f32 %v3700, %v3796
        %v3861 = vadd.f32 %v3701, %v3797
        %v3862 = vadd.f32 %v3702, %v3798
        %v3863 = vadd.f32 %v3703, %v3799
        %v3864 = vadd.f32 %v3704, %v3800
        %v3865 = vadd.f32 %v3705, %v3801
        %v3866 = vadd.f32 %v3706, %v3802
        %v3867 = vadd.f32 %v3707, %v3803
        %v3868 = vadd.f32 %v3708, %v3804
        %v3869 = vadd.f32 %v3709, %v3805
        %v3870 = vadd.f32 %v3710, %v3806
        %v3871 = vadd.f32 %v3711, %v3807
        %v3872 = vadd.f32 %v3712, %v3808
        %v3873 = vmax.f32 %v3809, 0.0
        %v3874 = vmax.f32 %v3810, 0.0
        %v3875 = vmax.f32 %v3811, 0.0
        %v3876 = vmax.f32 %v3812, 0.0
        %v3877 = vmax.f32 %v3813, 0.0
        %v3878 = vmax.f32 %v3814, 0.0
        %v3879 = vmax.f32 %v3815, 0.0
        %v3880 = vmax.f32 %v3816, 0.0
        %v3881 = vmax.f32 %v3817, 0.0
        %v3882 = vmax.f32 %v3818, 0.0
        %v3883 = vmax.f32 %v3819, 0.0
        %v3884 = vmax.f32 %v3820, 0.0
        %v3885 = vmax.f32 %v3821, 0.0
        %v3886 = vmax.f32 %v3822, 0.0
        %v3887 = vmax.f32 %v3823, 0.0
        %v3888 = vmax.f32 %v3824, 0.0
        %v3889 = vmax.f32 %v3825, 0.0
        %v3890 = vmax.f32 %v3826, 0.0
        %v3891 = vmax.f32 %v3827, 0.0
        %v3892 = vmax.f32 %v3828, 0.0
        %v3893 = vmax.f32 %v3829, 0.0
        %v3894 = vmax.f32 %v3830, 0.0
        %v3895 = vmax.f32 %v3831, 0.0
        %v3896 = vmax.f32 %v3832, 0.0
        %v3897 = vmax.f32 %v3833, 0.0
        %v3898 = vmax.f32 %v3834, 0.0
        %v3899 = vmax.f32 %v3835, 0.0
        %v3900 = vmax.f32 %v3836, 0.0
        %v3901 = vmax.f32 %v3837, 0.0
        %v3902 = vmax.f32 %v3838, 0.0
        %v3903 = vmax.f32 %v3839, 0.0
        %v3904 = vmax.f32 %v3840, 0.0
        %v3905 = vmax.f32 %v3841, 0.0
        %v3906 = vmax.f32 %v3842, 0.0
        %v3907 = vmax.f32 %v3843, 0.0
        %v3908 = vmax.f32 %v3844, 0.0
        %v3909 = vmax.f32 %v3845, 0.0
        %v3910 = vmax.f32 %v3846, 0.0
        %v3911 = vmax.f32 %v3847, 0.0
        %v3912 = vmax.f32 %v3848, 0.0
        %v3913 = vmax.f32 %v3849, 0.0
        %v3914 = vmax.f32 %v3850, 0.0
        %v3915 = vmax.f32 %v3851, 0.0
        %v3916 = vmax.f32 %v3852, 0.0
        %v3917 = vmax.f32 %v3853, 0.0
        %v3918 = vmax.f32 %v3854, 0.0
        %v3919 = vmax.f32 %v3855, 0.0
        %v3920 = vmax.f32 %v3856, 0.0
        %v3921 = vmax.f32 %v3857, 0.0
        %v3922 = vmax.f32 %v3858, 0.0
        %v3923 = vmax.f32 %v3859, 0.0
        %v3924 = vmax.f32 %v3860, 0.0
        %v3925 = vmax.f32 %v3861, 0.0
        %v3926 = vmax.f32 %v3862, 0.0
        %v3927 = vmax.f32 %v3863, 0.0
        %v3928 = vmax.f32 %v3864, 0.0
        %v3929 = vmax.f32 %v3865, 0.0
        %v3930 = vmax.f32 %v3866, 0.0
        %v3931 = vmax.f32 %v3867, 0.0
        %v3932 = vmax.f32 %v3868, 0.0
        %v3933 = vmax.f32 %v3869, 0.0
        %v3934 = vmax.f32 %v3870, 0.0
        %v3935 = vmax.f32 %v3871, 0.0
        %v3936 = vmax.f32 %v3872, 0.0
        %v3937 = vpack.c.bf16 %v3874, %v3873
        %v3938 = vpack.c.bf16 %v3876, %v3875
        %v3939 = vpack.c.bf16 %v3878, %v3877
        %v3940 = vpack.c.bf16 %v3880, %v3879
        %v3941 = vpack.c.bf16 %v3882, %v3881
        %v3942 = vpack.c.bf16 %v3884, %v3883
        %v3943 = vpack.c.bf16 %v3886, %v3885
        %v3944 = vpack.c.bf16 %v3888, %v3887
        %v3945 = vpack.c.bf16 %v3890, %v3889
        %v3946 = vpack.c.bf16 %v3892, %v3891
        %v3947 = vpack.c.bf16 %v3894, %v3893
        %v3948 = vpack.c.bf16 %v3896, %v3895
        %v3949 = vpack.c.bf16 %v3898, %v3897
        %v3950 = vpack.c.bf16 %v3900, %v3899
        %v3951 = vpack.c.bf16 %v3902, %v3901
        %v3952 = vpack.c.bf16 %v3904, %v3903
        %v3953 = vpack.c.bf16 %v3906, %v3905
        %v3954 = vpack.c.bf16 %v3908, %v3907
        %v3955 = vpack.c.bf16 %v3910, %v3909
        %v3956 = vpack.c.bf16 %v3912, %v3911
        %v3957 = vpack.c.bf16 %v3914, %v3913
        %v3958 = vpack.c.bf16 %v3916, %v3915
        %v3959 = vpack.c.bf16 %v3918, %v3917
        %v3960 = vpack.c.bf16 %v3920, %v3919
        %v3961 = vpack.c.bf16 %v3922, %v3921
        %v3962 = vpack.c.bf16 %v3924, %v3923
        %v3963 = vpack.c.bf16 %v3926, %v3925
        %v3964 = vpack.c.bf16 %v3928, %v3927
        %v3965 = vpack.c.bf16 %v3930, %v3929
        %v3966 = vpack.c.bf16 %v3932, %v3931
        %v3967 = vpack.c.bf16 %v3934, %v3933
        %v3968 = vpack.c.bf16 %v3936, %v3935
        %3969 = vst [vmem:[%s298] sm:$0xff] %v3937
        %3970 = vst [vmem:[%s298 + $0x8] sm:$0xff] %v3938
        %3971 = vst [vmem:[%s298 + $0x10] sm:$0xff] %v3939
        %3972 = vst [vmem:[%s298 + $0x18] sm:$0xff] %v3940
        %3973 = vst [vmem:[%s298 + $0x20] sm:$0xff] %v3941
        %3974 = vst [vmem:[%s298 + $0x28] sm:$0xff] %v3942
        %3975 = vst [vmem:[%s298 + $0x30] sm:$0xff] %v3943
        %3976 = vst [vmem:[%s298 + $0x38] sm:$0xff] %v3944
        %3977 = vst [vmem:[%s298 + $0x40] sm:$0xff] %v3945
        %3978 = vst [vmem:[%s298 + $0x48] sm:$0xff] %v3946
        %3979 = vst [vmem:[%s298 + $0x50] sm:$0xff] %v3947
        %3980 = vst [vmem:[%s298 + $0x58] sm:$0xff] %v3948
        %3981 = vst [vmem:[%s298 + $0x60] sm:$0xff] %v3949
        %3982 = vst [vmem:[%s298 + $0x68] sm:$0xff] %v3950
        %3983 = vst [vmem:[%s298 + $0x70] sm:$0xff] %v3951
        %3984 = vst [vmem:[%s298 + $0x78] sm:$0xff] %v3952
        %3985 = vst [vmem:[%s298 + $0x80] sm:$0xff] %v3953
        %3986 = vst [vmem:[%s298 + $0x88] sm:$0xff] %v3954
        %3987 = vst [vmem:[%s298 + $0x90] sm:$0xff] %v3955
        %3988 = vst [vmem:[%s298 + $0x98] sm:$0xff] %v3956
        %3989 = vst [vmem:[%s298 + $0xa0] sm:$0xff] %v3957
        %3990 = vst [vmem:[%s298 + $0xa8] sm:$0xff] %v3958
        %3991 = vst [vmem:[%s298 + $0xb0] sm:$0xff] %v3959
        %3992 = vst [vmem:[%s298 + $0xb8] sm:$0xff] %v3960
        %3993 = vst [vmem:[%s298 + $0xc0] sm:$0xff] %v3961
        %3994 = vst [vmem:[%s298 + $0xc8] sm:$0xff] %v3962
        %3995 = vst [vmem:[%s298 + $0xd0] sm:$0xff] %v3963
        %3996 = vst [vmem:[%s298 + $0xd8] sm:$0xff] %v3964
        %3997 = vst [vmem:[%s298 + $0xe0] sm:$0xff] %v3965
        %3998 = vst [vmem:[%s298 + $0xe8] sm:$0xff] %v3966
        %3999 = vst [vmem:[%s298 + $0xf0] sm:$0xff] %v3967
        %4000 = vst [vmem:[%s298 + $0xf8] sm:$0xff] %v3968
        %s4001 = sand.u32 %s184, 1
        %s4002 = scalar_lea.sflag [#allocation5], %s4001
        %s4003 = sand.u32 %s184, 1
        %s4004 = smul.addr %s4003, 256
        %s4005 = scalar_lea.vmem [#allocation6], %s4004
        // Predicated region
        $region53: #{tpu_custom_call.1} parent=47 // pred_check
          %p4006 = pneg %p194
        $region54: #{tpu_custom_call.1} parent=47 // pred_check_branch
          %4008 = sbr.rel (%p4006) target = $region56
        $region55: #{tpu_custom_call.1} parent=47 // pred_region
          %4010 = vsyncadd %s4002, 0
          %s4011 = smul.addr %s24, 64
          %s4012 = smul.addr %s4011, 4
          %s4013 = scalar_lea.hbm %s7, %s4012
          %s4014 = sshll.u32 %s4005, 4
          %s4015 = int_to_ptr.vmem [resolvable:$true] %s4014
          %s4016 = sshll.u32 %s4013, 4
          %s4017 = int_to_ptr.hbm [resolvable:$true] %s4016
          %4022 = dma.vmem_to_hbm [thread:$0]  %s4015, 4096, %s4017, %s4002, 128, 128, 8
        $region56: #{tpu_custom_call.1} parent=47 // pred_fallthru
          _
      $region48: #{tpu_custom_call.1} parent=5 // pred_fallthru
        _
      %p4023 = scmp.le.s32.totalorder 2, %s19
      // Predicated region
      $region57: #{tpu_custom_call.1} parent=5 // pred_check
        %p4024 = pneg %p4023
      $region58: #{tpu_custom_call.1} parent=5 // pred_check_branch
        %4026 = sbr.rel (%p4024) target = $region60
      $region59: #{tpu_custom_call.1} parent=5 // pred_region
        %s4027 = ssub.s32 %s19, 2
        // Predicated region
        $region61: #{tpu_custom_call.1} parent=59 // pred_check
          %p4028 = pneg %p200
        $region62: #{tpu_custom_call.1} parent=59 // pred_check_branch
          %4030 = sbr.rel (%p4028) target = $region64
        $region63: #{tpu_custom_call.1} parent=59 // pred_region
          %s4031 = sand.u32 %s185, 1
          %s4032 = scalar_lea.sflag [#allocation5], %s4031
          %s4033 = sand.u32 %s185, 1
          %s4034 = smul.addr %s4033, 256
          %s4035 = scalar_lea.vmem [#allocation6], %s4034
          %4037 = dma.done %s4032, 4096
        $region64: #{tpu_custom_call.1} parent=59 // pred_fallthru
          _
      $region60: #{tpu_custom_call.1} parent=5 // pred_fallthru
        _
    $region6: #{tpu_custom_call.1} parent=1 // loop_footer
      %s23 = sadd.s32 1, %s19
    $region7: #{tpu_custom_call.1} parent=1 // loop_footer_branch
      %18 = sbr.rel target = $region3
    $region8: #{tpu_custom_call.1} parent=1 // loop_exit
      _
    %4038 = vsyncpa [#allocation4], 1
    %s4039 = scalar_lea.sflag [#allocation4], 1
    %4040 = vsyncpa %s4039, 1
    %4041 = vsyncpa [#allocation5], 1
    %s4042 = scalar_lea.sflag [#allocation5], 1
    %4043 = vsyncpa %s4042, 1

</llo_original>
